<compile_context>
chip_gen: v7x
topology: tpu7x:2x2x1
jax: 0.10.0
libtpu: 0.0.40
codegen_flags: <defaults>
</compile_context>

<pallas_src>
import functools

import jax
import jax.numpy as jnp
from jax.experimental import pallas as pl
from jax.experimental.pallas import tpu as pltpu


# ----------------------------- helpers -----------------------------

def _round_up(x, m):
    return (x + m - 1) // m * m


def _choose_channel_tile(n_channels, n_patch, per_channel_bytes, fixed_bytes,
                         budget_bytes, target_rows=512, max_rows=2048):
    """Channel tile TB (multiple of 8 -> sublane-dense input/output blocks).

    TB is sized so TB * n_patch approaches `target_rows` matmul rows (amortizes
    the ~0.35us grid-step overhead and MXU fill/drain), subject to:
      * the VMEM budget (resident weights + double-buffered blocks + activations),
      * a cap on total rows (bounds the activation working set),
      * keeping >= 2 grid steps so both v7x TensorCores get work.
    The caller zero-pads the channel dim up to a multiple of 2*TB, so TB does not
    need to divide n_channels.
    """
    cap = min((budget_bytes - fixed_bytes) // max(per_channel_bytes, 1),
              max_rows // max(n_patch, 1),
              max(8, (n_channels + 1) // 2))
    cap = max(8, cap // 8 * 8)

    def padded_channels(tb):
        return _round_up(max(_round_up(n_channels, tb), 2 * tb), 2 * tb)

    def score(tb):
        useful = n_channels / padded_channels(tb)        # fraction of non-padded work
        rows = min(1.0, (tb * n_patch) / target_rows)    # step-overhead amortization
        return useful * rows

    return max(range(8, cap + 1, 8), key=lambda tb: (score(tb), -tb))


# ----------------------------- fused Pallas kernel -----------------------------

def _fused_patchtst_kernel(
        x_ref,                        # (TB, P, patch_len)            bf16
        w_emb_ref,                    # (patch_len, D)                bf16
        pos_ref,                      # (P, D)  (pos + b_emb folded)  f32
        w_qkv_ref, b_qkv_ref,         # (D, 3D) bf16 (1/sqrt(dh) folded into Q), (1, 3D) f32
        w_o_ref, b_o_ref,             # (D, D)  bf16, (1, D) f32
        ln1_g_ref, ln1_b_ref,         # (1, D)  f32
        w1_ref, b1_ref,               # (D, Fp) bf16, (1, Fp) f32   (Fp = d_ff padded to 128)
        w2_ref, b2_ref,               # (Fp, D) bf16, (1, D) f32
        ln2_g_ref, ln2_b_ref,         # (1, D)  f32
        w_head_ref, b_head_ref,       # (P*D, out_pad) bf16, (1, out_pad) f32
        o_ref,                        # (TB, out_pad)                 f32
        head_in_ref,                  # VMEM scratch (TB, P*D)        bf16
        *, n_heads):
    TB, P, _ = x_ref.shape
    D = w_emb_ref.shape[1]
    dh = D // n_heads

    def mm(a, w):
        # bf16 operands on the MXU, f32 accumulation.
        return jnp.dot(a.astype(jnp.bfloat16), w, preferred_element_type=jnp.float32)

    def layer_norm(y, g, b):
        mu = jnp.mean(y, axis=-1, keepdims=True)
        var = jnp.mean(jnp.square(y - mu), axis=-1, keepdims=True)
        return (y - mu) * jax.lax.rsqrt(var + 1e-5) * g + b

    # ---- patch embedding + (positional embedding + embedding bias) ----
    x = x_ref[...].reshape(TB * P, -1)
    z = mm(x, w_emb_ref[...])                                        # (TB*P, D) f32
    z = (z.reshape(TB, P, D) + pos_ref[...][None]).reshape(TB * P, D)

    # ---- multi-head self-attention: one fused QKV matmul, heads batched ----
    qkv = mm(z, w_qkv_ref[...]) + b_qkv_ref[...]                     # (TB*P, 3D) f32

    def split_heads(off):
        # lanes [off+h*dh : off+(h+1)*dh] -> batch dim: (TB*P, D) -> (H*TB, P, dh).
        # Only lane slices + leading-dim reshapes + a leading-dim concat (all
        # known-good Mosaic patterns); no 4D transpose / multi-batch dot needed.
        parts = [qkv[:, off + h * dh: off + (h + 1) * dh].reshape(TB, P, dh)
                 for h in range(n_heads)]
        return jnp.concatenate(parts, axis=0).astype(jnp.bfloat16)

    qh = split_heads(0)
    kh = split_heads(D)
    vh = split_heads(2 * D)

    s = jnp.einsum('bqd,bkd->bqk', qh, kh,
                   preferred_element_type=jnp.float32)               # (H*TB, P, P)
    s = s - jnp.max(s, axis=-1, keepdims=True)
    p = jnp.exp(s)
    p = p * pl.reciprocal(jnp.sum(p, axis=-1, keepdims=True), approx=True)
    ctx = jnp.einsum('bqk,bkd->bqd', p.astype(jnp.bfloat16), vh,
                     preferred_element_type=jnp.float32)             # (H*TB, P, dh)
    ctx = ctx.reshape(n_heads, TB, P, dh)
    attn = jnp.concatenate([ctx[h].reshape(TB * P, dh) for h in range(n_heads)],
                           axis=-1)                                  # (TB*P, D)
    attn = mm(attn, w_o_ref[...]) + b_o_ref[...]

    z = layer_norm(z + attn, ln1_g_ref[...], ln1_b_ref[...])

    # ---- feed-forward (d_ff zero-padded to a lane-dense width; GELU(0)=0) ----
    # TODO(synk): torch.nn.GELU defaults to the exact erf form; the tanh
    # approximation is kept here for guaranteed Mosaic lowering.
    h1 = jax.nn.gelu(mm(z, w1_ref[...]) + b1_ref[...])
    ff = mm(h1, w2_ref[...]) + b2_ref[...]
    z = layer_norm(z + ff, ln2_g_ref[...], ln2_b_ref[...])

    # ---- flatten head: relayout z into a (TB, P*D) bf16 scratch, ONE long-K matmul ----
    z3 = z.reshape(TB, P, D)
    for p_idx in range(P):                                           # static unroll: P stores
        head_in_ref[:, p_idx * D:(p_idx + 1) * D] = z3[:, p_idx, :].astype(jnp.bfloat16)
    o_ref[...] = (jnp.dot(head_in_ref[...], w_head_ref[...],
                          preferred_element_type=jnp.float32)
                  + b_head_ref[...]).astype(o_ref.dtype)


# ----------------------------- parameters -----------------------------

def init_params(key, *, n_vars, in_len, out_len, patch_len, stride,
                d_model, d_ff, n_heads, n_cluster):
    del n_vars, n_heads  # channel-independent backbone; shapes don't depend on them
    n_patch = (in_len - patch_len) // stride + 1
    keys = jax.random.split(key, 10)
    s = 0.05

    def rnd(k, shape):
        return jax.random.normal(k, shape, dtype=jnp.float32) * s

    return dict(
        # patch embedding + learnable positional embedding
        W_emb=rnd(keys[0], (patch_len, d_model)),
        b_emb=jnp.zeros((d_model,), jnp.float32),
        pos=rnd(keys[1], (n_patch, d_model)),
        # single transformer encoder layer (post-norm, GELU FFN)
        Wq=rnd(keys[2], (d_model, d_model)), bq=jnp.zeros((d_model,), jnp.float32),
        Wk=rnd(keys[3], (d_model, d_model)), bk=jnp.zeros((d_model,), jnp.float32),
        Wv=rnd(keys[4], (d_model, d_model)), bv=jnp.zeros((d_model,), jnp.float32),
        Wo=rnd(keys[5], (d_model, d_model)), bo=jnp.zeros((d_model,), jnp.float32),
        ln1_g=jnp.ones((d_model,), jnp.float32), ln1_b=jnp.zeros((d_model,), jnp.float32),
        W1=rnd(keys[6], (d_model, d_ff)), b1=jnp.zeros((d_ff,), jnp.float32),
        W2=rnd(keys[7], (d_ff, d_model)), b2=jnp.zeros((d_model,), jnp.float32),
        ln2_g=jnp.ones((d_model,), jnp.float32), ln2_b=jnp.zeros((d_model,), jnp.float32),
        # flatten head: (n_patch * d_model) -> out_len per channel
        W_head=rnd(keys[8], (n_patch * d_model, out_len)),
        b_head=jnp.zeros((out_len,), jnp.float32),
        # matches `self.cluster_emb = torch.empty(n_cluster, d_model)` — unused here
        cluster_emb=rnd(keys[9], (n_cluster, d_model)),
    )


def pack_params(params, *, d_model, n_heads, out_len):
    """One-time repack: fuse QKV (scale folded into Q), fold b_emb into pos, pad
    d_ff and the head output to lane-dense widths, cast MXU weights to bf16."""
    dh = d_model // n_heads
    scale = 1.0 / float(dh) ** 0.5
    w_qkv = jnp.concatenate([params["Wq"] * scale, params["Wk"], params["Wv"]], axis=1)
    b_qkv = jnp.concatenate([params["bq"] * scale, params["bk"], params["bv"]])

    # head output: lane-dense (multiple of 128); zero columns sliced away outside
    out_pad = _round_up(out_len, 128)
    w_head = jnp.zeros((params["W_head"].shape[0], out_pad), jnp.float32)
    w_head = w_head.at[:, :out_len].set(params["W_head"])
    b_head = jnp.zeros((out_pad,), jnp.float32).at[:out_len].set(params["b_head"])

    # d_ff padded to a multiple of 128 lanes; zero W1 cols / W2 rows are inert
    d_ff = params["W1"].shape[1]
    d_ff_pad = _round_up(d_ff, 128)
    w1 = jnp.zeros((d_model, d_ff_pad), jnp.float32).at[:, :d_ff].set(params["W1"])
    b1 = jnp.zeros((d_ff_pad,), jnp.float32).at[:d_ff].set(params["b1"])
    w2 = jnp.zeros((d_ff_pad, d_model), jnp.float32).at[:d_ff, :].set(params["W2"])

    pos_bias = params["pos"] + params["b_emb"][None, :]   # b_emb folded into pos

    bf16 = jnp.bfloat16
    return dict(
        w_emb=params["W_emb"].astype(bf16),
        pos_bias=pos_bias,
        w_qkv=w_qkv.astype(bf16), b_qkv=b_qkv.reshape(1, -1),
        w_o=params["Wo"].astype(bf16), b_o=params["bo"].reshape(1, -1),
        ln1_g=params["ln1_g"].reshape(1, -1), ln1_b=params["ln1_b"].reshape(1, -1),
        w1=w1.astype(bf16), b1=b1.reshape(1, -1),
        w2=w2.astype(bf16), b2=params["b2"].reshape(1, -1),
        ln2_g=params["ln2_g"].reshape(1, -1), ln2_b=params["ln2_b"].reshape(1, -1),
        w_head=w_head.astype(bf16), b_head=b_head.reshape(1, -1),
    )


# ----------------------------- forward -----------------------------

def patchtstc_forward(x_seq, packed, *, patch_len, stride, d_model, n_heads,
                      out_len, baseline=False, channel_tile=None):
    # layout: x_seq is (B, in_len, n_vars)
    B, L, C = x_seq.shape

    base = jnp.mean(x_seq, axis=1, keepdims=True) if baseline else 0.0  # (B,1,C) or 0

    # x_seq.permute(0, 2, 1) -> (B, n_vars, in_len)
    x = jnp.transpose(x_seq, (0, 2, 1))

    # --- patching (channel-independent) ---
    n_patch = (L - patch_len) // stride + 1
    if stride == patch_len and n_patch * patch_len == L:
        patches = x.reshape(B * C, n_patch, patch_len)          # free reshape
    else:
        idx = jnp.arange(n_patch)[:, None] * stride + jnp.arange(patch_len)[None, :]
        patches = x[:, :, idx].reshape(B * C, n_patch, patch_len)

    BC = B * C
    Fp = packed["w1"].shape[1]
    out_pad = packed["w_head"].shape[1]

    # --- VMEM bookkeeping for the channel-tile choice ---
    weight_bytes = sum(int(v.size) * v.dtype.itemsize for v in packed.values())
    fixed_bytes = 2 * weight_bytes              # BlockSpec double-buffers even constant blocks
    per_channel_bytes = (
        2 * n_patch * patch_len * 2             # input block (bf16), double-buffered
        + 2 * out_pad * 4                       # output block (f32), double-buffered
        + 4 * n_patch * (8 * d_model + 2 * Fp)  # f32 activations (z, qkv, heads, ffn)
        + 8 * n_heads * n_patch * n_patch       # attention scores + probs
        + 2 * n_patch * d_model                 # flatten-head scratch (bf16)
    )
    try:
        vmem_cap = int(pltpu.get_tpu_info().vmem_capacity_bytes)
    except Exception:
        vmem_cap = 64 * 1024 * 1024             # conservative (v7x-sized) fallback

    if channel_tile is None:
        TB = _choose_channel_tile(BC, n_patch, per_channel_bytes, fixed_bytes,
                                  budget_bytes=int(vmem_cap * 0.6))
    else:
        TB = max(8, _round_up(channel_tile, 8))  # keep blocks sublane-dense

    # zero-pad the channel dim so the grid is even and >= 2 (both v7x TCs busy);
    # padded channels are numerically inert and sliced away below.
    BC_pad = _round_up(max(_round_up(BC, TB), 2 * TB), 2 * TB)
    G = BC_pad // TB
    if BC_pad != BC:
        patches = jnp.concatenate(
            [patches, jnp.zeros((BC_pad - BC, n_patch, patch_len), patches.dtype)],
            axis=0)
    patches = patches.astype(jnp.bfloat16)       # halves the only per-step DMA

    kernel = functools.partial(_fused_patchtst_kernel, n_heads=n_heads)

    def wspec(arr):
        # full-array, grid-invariant block: stays resident in VMEM across grid steps
        zeros = (0,) * arr.ndim
        return pl.BlockSpec(arr.shape, lambda i: zeros)

    in_specs = [
        pl.BlockSpec((TB, n_patch, patch_len), lambda i: (i, 0, 0)),
        wspec(packed["w_emb"]), wspec(packed["pos_bias"]),
        wspec(packed["w_qkv"]), wspec(packed["b_qkv"]),
        wspec(packed["w_o"]), wspec(packed["b_o"]),
        wspec(packed["ln1_g"]), wspec(packed["ln1_b"]),
        wspec(packed["w1"]), wspec(packed["b1"]),
        wspec(packed["w2"]), wspec(packed["b2"]),
        wspec(packed["ln2_g"]), wspec(packed["ln2_b"]),
        wspec(packed["w_head"]), wspec(packed["b_head"]),
    ]

    out = pl.pallas_call(
        kernel,
        out_shape=jax.ShapeDtypeStruct((BC_pad, out_pad), jnp.float32),
        grid=(G,),
        in_specs=in_specs,
        out_specs=pl.BlockSpec((TB, out_pad), lambda i: (i, 0)),
        scratch_shapes=[pltpu.VMEM((TB, n_patch * d_model), jnp.bfloat16)],
        compiler_params=pltpu.CompilerParams(
            dimension_semantics=("parallel",),
            # raise the scoped VMEM limit (v5e default is 16 MiB), stay under
            # v7x's 64 MiB physical per-core VMEM.
            vmem_limit_bytes=min(int(vmem_cap * 0.9), 100 * 1024 * 1024)),
    )(patches,
      packed["w_emb"], packed["pos_bias"],
      packed["w_qkv"], packed["b_qkv"],
      packed["w_o"], packed["b_o"],
      packed["ln1_g"], packed["ln1_b"],
      packed["w1"], packed["b1"], packed["w2"], packed["b2"],
      packed["ln2_g"], packed["ln2_b"],
      packed["w_head"], packed["b_head"])

    # (BC_pad, out_pad) -> (B*C, out_len) -> (B, out_len, n_vars)
    out_c = out[:BC, :out_len]
    out_t = jnp.transpose(out_c.reshape(B, C, out_len), (0, 2, 1))
    return base + out_t


# ----------------------------- main -----------------------------

if __name__ == "__main__":
    # small, shape-consistent config (args analog); B*n_vars = 16 -> TB=8, G=2
    B, IN_LEN, N_VARS = 2, 16, 8        # batch, in_len, data_dim
    OUT_LEN = 8
    PATCH_LEN = 8
    STRIDE = 8
    D_MODEL, D_FF, N_HEADS = 32, 64, 4
    N_CLUSTER = 3

    key = jax.random.PRNGKey(0)
    k_par, k_x = jax.random.split(key)

    params = init_params(
        k_par, n_vars=N_VARS, in_len=IN_LEN, out_len=OUT_LEN,
        patch_len=PATCH_LEN, stride=STRIDE, d_model=D_MODEL,
        d_ff=D_FF, n_heads=N_HEADS, n_cluster=N_CLUSTER)
    packed = pack_params(params, d_model=D_MODEL, n_heads=N_HEADS, out_len=OUT_LEN)

    x_seq = jax.random.normal(k_x, (B, IN_LEN, N_VARS), dtype=jnp.float32)

    fwd = jax.jit(functools.partial(
        patchtstc_forward, patch_len=PATCH_LEN, stride=STRIDE,
        d_model=D_MODEL, n_heads=N_HEADS, out_len=OUT_LEN, baseline=False))

    out = fwd(x_seq, packed)
    out = jax.block_until_ready(out)

    assert out.shape == (B, OUT_LEN, N_VARS), out.shape
    assert bool(jnp.all(jnp.isfinite(out)))
    print("KERNEL_OK")
</pallas_src>

<mosaic_0001>
module attributes {stable_mosaic.version = 11 : i64} {
  func.func @_fused_patchtst_kernel(%arg0: i32, %arg1: memref<8x2x8xbf16, #tpu.memory_space<vmem>>, %arg2: memref<8x32xbf16, #tpu.memory_space<vmem>>, %arg3: memref<2x32xf32, #tpu.memory_space<vmem>>, %arg4: memref<32x96xbf16, #tpu.memory_space<vmem>>, %arg5: memref<1x96xf32, #tpu.memory_space<vmem>>, %arg6: memref<32x32xbf16, #tpu.memory_space<vmem>>, %arg7: memref<1x32xf32, #tpu.memory_space<vmem>>, %arg8: memref<1x32xf32, #tpu.memory_space<vmem>>, %arg9: memref<1x32xf32, #tpu.memory_space<vmem>>, %arg10: memref<32x128xbf16, #tpu.memory_space<vmem>>, %arg11: memref<1x128xf32, #tpu.memory_space<vmem>>, %arg12: memref<128x32xbf16, #tpu.memory_space<vmem>>, %arg13: memref<1x32xf32, #tpu.memory_space<vmem>>, %arg14: memref<1x32xf32, #tpu.memory_space<vmem>>, %arg15: memref<1x32xf32, #tpu.memory_space<vmem>>, %arg16: memref<64x128xbf16, #tpu.memory_space<vmem>>, %arg17: memref<1x128xf32, #tpu.memory_space<vmem>>, %arg18: memref<8x128xf32, #tpu.memory_space<vmem>>, %arg19: memref<8x64xbf16, #tpu.memory_space<vmem>>) attributes {dimension_semantics = [#tpu.dimension_semantics<parallel>], iteration_bounds = array<i64: 2>, scalar_prefetch = 0 : i64, scratch_operands = 1 : i64, tpu.core_type = #tpu.core_type<tc>, window_params = [{transform_indices = @transform_0, window_bounds = array<i64: 8, 2, 8>}, {pipeline_mode = #tpu.pipeline_mode<synchronous>, transform_indices = @transform_1, window_bounds = array<i64: 8, 32>}, {pipeline_mode = #tpu.pipeline_mode<synchronous>, transform_indices = @transform_2, window_bounds = array<i64: 2, 32>}, {pipeline_mode = #tpu.pipeline_mode<synchronous>, transform_indices = @transform_3, window_bounds = array<i64: 32, 96>}, {pipeline_mode = #tpu.pipeline_mode<synchronous>, transform_indices = @transform_4, window_bounds = array<i64: 1, 96>}, {pipeline_mode = #tpu.pipeline_mode<synchronous>, transform_indices = @transform_5, window_bounds = array<i64: 32, 32>}, {pipeline_mode = #tpu.pipeline_mode<synchronous>, transform_indices = @transform_6, window_bounds = array<i64: 1, 32>}, {pipeline_mode = #tpu.pipeline_mode<synchronous>, transform_indices = @transform_7, window_bounds = array<i64: 1, 32>}, {pipeline_mode = #tpu.pipeline_mode<synchronous>, transform_indices = @transform_8, window_bounds = array<i64: 1, 32>}, {pipeline_mode = #tpu.pipeline_mode<synchronous>, transform_indices = @transform_9, window_bounds = array<i64: 32, 128>}, {pipeline_mode = #tpu.pipeline_mode<synchronous>, transform_indices = @transform_10, window_bounds = array<i64: 1, 128>}, {pipeline_mode = #tpu.pipeline_mode<synchronous>, transform_indices = @transform_11, window_bounds = array<i64: 128, 32>}, {pipeline_mode = #tpu.pipeline_mode<synchronous>, transform_indices = @transform_12, window_bounds = array<i64: 1, 32>}, {pipeline_mode = #tpu.pipeline_mode<synchronous>, transform_indices = @transform_13, window_bounds = array<i64: 1, 32>}, {pipeline_mode = #tpu.pipeline_mode<synchronous>, transform_indices = @transform_14, window_bounds = array<i64: 1, 32>}, {pipeline_mode = #tpu.pipeline_mode<synchronous>, transform_indices = @transform_15, window_bounds = array<i64: 64, 128>}, {pipeline_mode = #tpu.pipeline_mode<synchronous>, transform_indices = @transform_16, window_bounds = array<i64: 1, 128>}, {transform_indices = @transform_17, window_bounds = array<i64: 8, 128>}]} {
    %c0 = arith.constant 0 : index
    %c0_0 = arith.constant 0 : index
    %c0_1 = arith.constant 0 : index
    %0 = vector.load %arg1[%c0, %c0_0, %c0_1] : memref<8x2x8xbf16, #tpu.memory_space<vmem>>, vector<8x2x8xbf16>
    %1 = vector.shape_cast %0 : vector<8x2x8xbf16> to vector<16x8xbf16>
    %c0_2 = arith.constant 0 : index
    %c0_3 = arith.constant 0 : index
    %2 = vector.load %arg2[%c0_2, %c0_3] : memref<8x32xbf16, #tpu.memory_space<vmem>>, vector<8x32xbf16>
    %cst = arith.constant dense<0.000000e+00> : vector<16x32xf32>
    %3 = tpu.matmul %1, %2, %cst {dimension_numbers = #tpu.dot_dimension_numbers<[1], [0], [0], [1], [0, 0, 1, 1], [], []>} : vector<16x8xbf16>, vector<8x32xbf16>, vector<16x32xf32> -> vector<16x32xf32>
    %4 = vector.shape_cast %3 : vector<16x32xf32> to vector<8x2x32xf32>
    %c0_4 = arith.constant 0 : index
    %c0_5 = arith.constant 0 : index
    %5 = vector.load %arg3[%c0_4, %c0_5] : memref<2x32xf32, #tpu.memory_space<vmem>>, vector<2x32xf32>
    %6 = vector.shape_cast %5 : vector<2x32xf32> to vector<1x2x32xf32>
    %7 = vector.broadcast %6 : vector<1x2x32xf32> to vector<8x2x32xf32>
    %8 = arith.addf %4, %7 : vector<8x2x32xf32>
    %9 = vector.shape_cast %8 : vector<8x2x32xf32> to vector<16x32xf32>
    %c0_6 = arith.constant 0 : index
    %c0_7 = arith.constant 0 : index
    %10 = vector.load %arg4[%c0_6, %c0_7] : memref<32x96xbf16, #tpu.memory_space<vmem>>, vector<32x96xbf16>
    %11 = arith.truncf %9 : vector<16x32xf32> to vector<16x32xbf16>
    %cst_8 = arith.constant dense<0.000000e+00> : vector<16x96xf32>
    %12 = tpu.matmul %11, %10, %cst_8 {dimension_numbers = #tpu.dot_dimension_numbers<[1], [0], [0], [1], [0, 0, 1, 1], [], []>} : vector<16x32xbf16>, vector<32x96xbf16>, vector<16x96xf32> -> vector<16x96xf32>
    %c0_9 = arith.constant 0 : index
    %c0_10 = arith.constant 0 : index
    %13 = vector.load %arg5[%c0_9, %c0_10] : memref<1x96xf32, #tpu.memory_space<vmem>>, vector<1x96xf32>
    %14 = vector.broadcast %13 : vector<1x96xf32> to vector<16x96xf32>
    %15 = arith.addf %12, %14 : vector<16x96xf32>
    %16 = vector.extract_strided_slice %15 {offsets = [0, 0], sizes = [16, 8], strides = [1, 1]} : vector<16x96xf32> to vector<16x8xf32>
    %17 = vector.shape_cast %16 : vector<16x8xf32> to vector<8x2x8xf32>
    %18 = vector.extract_strided_slice %15 {offsets = [0, 8], sizes = [16, 8], strides = [1, 1]} : vector<16x96xf32> to vector<16x8xf32>
    %19 = vector.shape_cast %18 : vector<16x8xf32> to vector<8x2x8xf32>
    %20 = vector.extract_strided_slice %15 {offsets = [0, 16], sizes = [16, 8], strides = [1, 1]} : vector<16x96xf32> to vector<16x8xf32>
    %21 = vector.shape_cast %20 : vector<16x8xf32> to vector<8x2x8xf32>
    %22 = vector.extract_strided_slice %15 {offsets = [0, 24], sizes = [16, 8], strides = [1, 1]} : vector<16x96xf32> to vector<16x8xf32>
    %23 = vector.shape_cast %22 : vector<16x8xf32> to vector<8x2x8xf32>
    %24 = tpu.concatenate %17, %19, %21, %23 in 0 : vector<8x2x8xf32>, vector<8x2x8xf32>, vector<8x2x8xf32>, vector<8x2x8xf32> -> vector<32x2x8xf32>
    %25 = arith.truncf %24 : vector<32x2x8xf32> to vector<32x2x8xbf16>
    %26 = vector.extract_strided_slice %15 {offsets = [0, 32], sizes = [16, 8], strides = [1, 1]} : vector<16x96xf32> to vector<16x8xf32>
    %27 = vector.shape_cast %26 : vector<16x8xf32> to vector<8x2x8xf32>
    %28 = vector.extract_strided_slice %15 {offsets = [0, 40], sizes = [16, 8], strides = [1, 1]} : vector<16x96xf32> to vector<16x8xf32>
    %29 = vector.shape_cast %28 : vector<16x8xf32> to vector<8x2x8xf32>
    %30 = vector.extract_strided_slice %15 {offsets = [0, 48], sizes = [16, 8], strides = [1, 1]} : vector<16x96xf32> to vector<16x8xf32>
    %31 = vector.shape_cast %30 : vector<16x8xf32> to vector<8x2x8xf32>
    %32 = vector.extract_strided_slice %15 {offsets = [0, 56], sizes = [16, 8], strides = [1, 1]} : vector<16x96xf32> to vector<16x8xf32>
    %33 = vector.shape_cast %32 : vector<16x8xf32> to vector<8x2x8xf32>
    %34 = tpu.concatenate %27, %29, %31, %33 in 0 : vector<8x2x8xf32>, vector<8x2x8xf32>, vector<8x2x8xf32>, vector<8x2x8xf32> -> vector<32x2x8xf32>
    %35 = arith.truncf %34 : vector<32x2x8xf32> to vector<32x2x8xbf16>
    %36 = vector.extract_strided_slice %15 {offsets = [0, 64], sizes = [16, 8], strides = [1, 1]} : vector<16x96xf32> to vector<16x8xf32>
    %37 = vector.shape_cast %36 : vector<16x8xf32> to vector<8x2x8xf32>
    %38 = vector.extract_strided_slice %15 {offsets = [0, 72], sizes = [16, 8], strides = [1, 1]} : vector<16x96xf32> to vector<16x8xf32>
    %39 = vector.shape_cast %38 : vector<16x8xf32> to vector<8x2x8xf32>
    %40 = vector.extract_strided_slice %15 {offsets = [0, 80], sizes = [16, 8], strides = [1, 1]} : vector<16x96xf32> to vector<16x8xf32>
    %41 = vector.shape_cast %40 : vector<16x8xf32> to vector<8x2x8xf32>
    %42 = vector.extract_strided_slice %15 {offsets = [0, 88], sizes = [16, 8], strides = [1, 1]} : vector<16x96xf32> to vector<16x8xf32>
    %43 = vector.shape_cast %42 : vector<16x8xf32> to vector<8x2x8xf32>
    %44 = tpu.concatenate %37, %39, %41, %43 in 0 : vector<8x2x8xf32>, vector<8x2x8xf32>, vector<8x2x8xf32>, vector<8x2x8xf32> -> vector<32x2x8xf32>
    %45 = arith.truncf %44 : vector<32x2x8xf32> to vector<32x2x8xbf16>
    "tpu.trace_start"() <{level = 10 : i32, message = "bqd,bkd->bqk"}> : () -> ()
    %cst_11 = arith.constant dense<0.000000e+00> : vector<32x2x2xf32>
    %46 = tpu.matmul %25, %35, %cst_11 {dimension_numbers = #tpu.dot_dimension_numbers<[2], [2], [1], [1], [0, 0, 0, 1, 1, 1], [0], [0]>} : vector<32x2x8xbf16>, vector<32x2x8xbf16>, vector<32x2x2xf32> -> vector<32x2x2xf32>
    "tpu.trace_stop"() : () -> ()
    %cst_12 = arith.constant dense<0xFF800000> : vector<32x2xf32>
    %47 = vector.multi_reduction <maximumf>, %46, %cst_12 [2] : vector<32x2x2xf32> to vector<32x2xf32>
    %48 = vector.shape_cast %47 : vector<32x2xf32> to vector<32x2x1xf32>
    %49 = vector.broadcast %48 : vector<32x2x1xf32> to vector<32x2x2xf32>
    %50 = arith.subf %46, %49 : vector<32x2x2xf32>
    %51 = math.exp %50 : vector<32x2x2xf32>
    %cst_13 = arith.constant dense<0.000000e+00> : vector<32x2xf32>
    %52 = vector.multi_reduction <add>, %51, %cst_13 [2] : vector<32x2x2xf32> to vector<32x2xf32>
    %53 = vector.shape_cast %52 : vector<32x2xf32> to vector<32x2x1xf32>
    %54 = tpu.reciprocal %53 {approx = true} : vector<32x2x1xf32> -> vector<32x2x1xf32>
    %55 = vector.broadcast %54 : vector<32x2x1xf32> to vector<32x2x2xf32>
    %56 = arith.mulf %51, %55 : vector<32x2x2xf32>
    %57 = arith.truncf %56 : vector<32x2x2xf32> to vector<32x2x2xbf16>
    "tpu.trace_start"() <{level = 10 : i32, message = "bqk,bkd->bqd"}> : () -> ()
    %cst_14 = arith.constant dense<0.000000e+00> : vector<32x2x8xf32>
    %58 = tpu.matmul %57, %45, %cst_14 {dimension_numbers = #tpu.dot_dimension_numbers<[2], [1], [1], [2], [0, 0, 0, 1, 1, 2], [0], [0]>} : vector<32x2x2xbf16>, vector<32x2x8xbf16>, vector<32x2x8xf32> -> vector<32x2x8xf32>
    "tpu.trace_stop"() : () -> ()
    %59 = vector.shape_cast %58 : vector<32x2x8xf32> to vector<4x8x2x8xf32>
    %60 = vector.extract_strided_slice %59 {offsets = [0, 0, 0, 0], sizes = [1, 8, 2, 8], strides = [1, 1, 1, 1]} : vector<4x8x2x8xf32> to vector<1x8x2x8xf32>
    %61 = vector.shape_cast %60 : vector<1x8x2x8xf32> to vector<8x2x8xf32>
    %62 = vector.shape_cast %61 : vector<8x2x8xf32> to vector<16x8xf32>
    %63 = vector.extract_strided_slice %59 {offsets = [1, 0, 0, 0], sizes = [1, 8, 2, 8], strides = [1, 1, 1, 1]} : vector<4x8x2x8xf32> to vector<1x8x2x8xf32>
    %64 = vector.shape_cast %63 : vector<1x8x2x8xf32> to vector<8x2x8xf32>
    %65 = vector.shape_cast %64 : vector<8x2x8xf32> to vector<16x8xf32>
    %66 = vector.extract_strided_slice %59 {offsets = [2, 0, 0, 0], sizes = [1, 8, 2, 8], strides = [1, 1, 1, 1]} : vector<4x8x2x8xf32> to vector<1x8x2x8xf32>
    %67 = vector.shape_cast %66 : vector<1x8x2x8xf32> to vector<8x2x8xf32>
    %68 = vector.shape_cast %67 : vector<8x2x8xf32> to vector<16x8xf32>
    %69 = vector.extract_strided_slice %59 {offsets = [3, 0, 0, 0], sizes = [1, 8, 2, 8], strides = [1, 1, 1, 1]} : vector<4x8x2x8xf32> to vector<1x8x2x8xf32>
    %70 = vector.shape_cast %69 : vector<1x8x2x8xf32> to vector<8x2x8xf32>
    %71 = vector.shape_cast %70 : vector<8x2x8xf32> to vector<16x8xf32>
    %72 = tpu.concatenate %62, %65, %68, %71 in 1 : vector<16x8xf32>, vector<16x8xf32>, vector<16x8xf32>, vector<16x8xf32> -> vector<16x32xf32>
    %c0_15 = arith.constant 0 : index
    %c0_16 = arith.constant 0 : index
    %73 = vector.load %arg6[%c0_15, %c0_16] : memref<32x32xbf16, #tpu.memory_space<vmem>>, vector<32x32xbf16>
    %74 = arith.truncf %72 : vector<16x32xf32> to vector<16x32xbf16>
    %cst_17 = arith.constant dense<0.000000e+00> : vector<16x32xf32>
    %75 = tpu.matmul %74, %73, %cst_17 {dimension_numbers = #tpu.dot_dimension_numbers<[1], [0], [0], [1], [0, 0, 1, 1], [], []>} : vector<16x32xbf16>, vector<32x32xbf16>, vector<16x32xf32> -> vector<16x32xf32>
    %c0_18 = arith.constant 0 : index
    %c0_19 = arith.constant 0 : index
    %76 = vector.load %arg7[%c0_18, %c0_19] : memref<1x32xf32, #tpu.memory_space<vmem>>, vector<1x32xf32>
    %77 = vector.broadcast %76 : vector<1x32xf32> to vector<16x32xf32>
    %78 = arith.addf %75, %77 : vector<16x32xf32>
    %79 = arith.addf %9, %78 : vector<16x32xf32>
    %c0_20 = arith.constant 0 : index
    %c0_21 = arith.constant 0 : index
    %80 = vector.load %arg8[%c0_20, %c0_21] : memref<1x32xf32, #tpu.memory_space<vmem>>, vector<1x32xf32>
    %c0_22 = arith.constant 0 : index
    %c0_23 = arith.constant 0 : index
    %81 = vector.load %arg9[%c0_22, %c0_23] : memref<1x32xf32, #tpu.memory_space<vmem>>, vector<1x32xf32>
    %cst_24 = arith.constant dense<0.000000e+00> : vector<16xf32>
    %82 = vector.multi_reduction <add>, %79, %cst_24 [1] : vector<16x32xf32> to vector<16xf32>
    %83 = vector.shape_cast %82 : vector<16xf32> to vector<16x1xf32>
    %cst_25 = arith.constant 3.200000e+01 : f32
    %84 = vector.broadcast %cst_25 : f32 to vector<16x1xf32>
    %85 = arith.divf %83, %84 : vector<16x1xf32>
    %86 = vector.broadcast %85 : vector<16x1xf32> to vector<16x32xf32>
    %87 = arith.subf %79, %86 : vector<16x32xf32>
    %88 = arith.mulf %87, %87 : vector<16x32xf32>
    %cst_26 = arith.constant dense<0.000000e+00> : vector<16xf32>
    %89 = vector.multi_reduction <add>, %88, %cst_26 [1] : vector<16x32xf32> to vector<16xf32>
    %90 = vector.shape_cast %89 : vector<16xf32> to vector<16x1xf32>
    %cst_27 = arith.constant 3.200000e+01 : f32
    %91 = vector.broadcast %cst_27 : f32 to vector<16x1xf32>
    %92 = arith.divf %90, %91 : vector<16x1xf32>
    %93 = vector.broadcast %85 : vector<16x1xf32> to vector<16x32xf32>
    %94 = arith.subf %79, %93 : vector<16x32xf32>
    %cst_28 = arith.constant 9.99999974E-6 : f32
    %95 = vector.broadcast %cst_28 : f32 to vector<16x1xf32>
    %96 = arith.addf %92, %95 : vector<16x1xf32>
    %97 = math.rsqrt %96 : vector<16x1xf32>
    %98 = vector.broadcast %97 : vector<16x1xf32> to vector<16x32xf32>
    %99 = arith.mulf %94, %98 : vector<16x32xf32>
    %100 = vector.broadcast %80 : vector<1x32xf32> to vector<16x32xf32>
    %101 = arith.mulf %99, %100 : vector<16x32xf32>
    %102 = vector.broadcast %81 : vector<1x32xf32> to vector<16x32xf32>
    %103 = arith.addf %101, %102 : vector<16x32xf32>
    %c0_29 = arith.constant 0 : index
    %c0_30 = arith.constant 0 : index
    %104 = vector.load %arg10[%c0_29, %c0_30] : memref<32x128xbf16, #tpu.memory_space<vmem>>, vector<32x128xbf16>
    %105 = arith.truncf %103 : vector<16x32xf32> to vector<16x32xbf16>
    %cst_31 = arith.constant dense<0.000000e+00> : vector<16x128xf32>
    %106 = tpu.matmul %105, %104, %cst_31 {dimension_numbers = #tpu.dot_dimension_numbers<[1], [0], [0], [1], [0, 0, 1, 1], [], []>} : vector<16x32xbf16>, vector<32x128xbf16>, vector<16x128xf32> -> vector<16x128xf32>
    %c0_32 = arith.constant 0 : index
    %c0_33 = arith.constant 0 : index
    %107 = vector.load %arg11[%c0_32, %c0_33] : memref<1x128xf32, #tpu.memory_space<vmem>>, vector<1x128xf32>
    %108 = vector.broadcast %107 : vector<1x128xf32> to vector<16x128xf32>
    %109 = arith.addf %106, %108 : vector<16x128xf32>
    %110 = arith.mulf %109, %109 : vector<16x128xf32>
    %111 = arith.mulf %109, %110 : vector<16x128xf32>
    %cst_34 = arith.constant 4.471500e-02 : f32
    %112 = vector.broadcast %cst_34 : f32 to vector<16x128xf32>
    %113 = arith.mulf %112, %111 : vector<16x128xf32>
    %114 = arith.addf %109, %113 : vector<16x128xf32>
    %cst_35 = arith.constant 0.797884583 : f32
    %115 = vector.broadcast %cst_35 : f32 to vector<16x128xf32>
    %116 = arith.mulf %115, %114 : vector<16x128xf32>
    %117 = math.tanh %116 : vector<16x128xf32>
    %cst_36 = arith.constant 1.000000e+00 : f32
    %118 = vector.broadcast %cst_36 : f32 to vector<16x128xf32>
    %119 = arith.addf %118, %117 : vector<16x128xf32>
    %cst_37 = arith.constant 5.000000e-01 : f32
    %120 = vector.broadcast %cst_37 : f32 to vector<16x128xf32>
    %121 = arith.mulf %120, %119 : vector<16x128xf32>
    %122 = arith.mulf %109, %121 : vector<16x128xf32>
    %c0_38 = arith.constant 0 : index
    %c0_39 = arith.constant 0 : index
    %123 = vector.load %arg12[%c0_38, %c0_39] : memref<128x32xbf16, #tpu.memory_space<vmem>>, vector<128x32xbf16>
    %124 = arith.truncf %122 : vector<16x128xf32> to vector<16x128xbf16>
    %cst_40 = arith.constant dense<0.000000e+00> : vector<16x32xf32>
    %125 = tpu.matmul %124, %123, %cst_40 {dimension_numbers = #tpu.dot_dimension_numbers<[1], [0], [0], [1], [0, 0, 1, 1], [], []>} : vector<16x128xbf16>, vector<128x32xbf16>, vector<16x32xf32> -> vector<16x32xf32>
    %c0_41 = arith.constant 0 : index
    %c0_42 = arith.constant 0 : index
    %126 = vector.load %arg13[%c0_41, %c0_42] : memref<1x32xf32, #tpu.memory_space<vmem>>, vector<1x32xf32>
    %127 = vector.broadcast %126 : vector<1x32xf32> to vector<16x32xf32>
    %128 = arith.addf %125, %127 : vector<16x32xf32>
    %129 = arith.addf %103, %128 : vector<16x32xf32>
    %c0_43 = arith.constant 0 : index
    %c0_44 = arith.constant 0 : index
    %130 = vector.load %arg14[%c0_43, %c0_44] : memref<1x32xf32, #tpu.memory_space<vmem>>, vector<1x32xf32>
    %c0_45 = arith.constant 0 : index
    %c0_46 = arith.constant 0 : index
    %131 = vector.load %arg15[%c0_45, %c0_46] : memref<1x32xf32, #tpu.memory_space<vmem>>, vector<1x32xf32>
    %cst_47 = arith.constant dense<0.000000e+00> : vector<16xf32>
    %132 = vector.multi_reduction <add>, %129, %cst_47 [1] : vector<16x32xf32> to vector<16xf32>
    %133 = vector.shape_cast %132 : vector<16xf32> to vector<16x1xf32>
    %cst_48 = arith.constant 3.200000e+01 : f32
    %134 = vector.broadcast %cst_48 : f32 to vector<16x1xf32>
    %135 = arith.divf %133, %134 : vector<16x1xf32>
    %136 = vector.broadcast %135 : vector<16x1xf32> to vector<16x32xf32>
    %137 = arith.subf %129, %136 : vector<16x32xf32>
    %138 = arith.mulf %137, %137 : vector<16x32xf32>
    %cst_49 = arith.constant dense<0.000000e+00> : vector<16xf32>
    %139 = vector.multi_reduction <add>, %138, %cst_49 [1] : vector<16x32xf32> to vector<16xf32>
    %140 = vector.shape_cast %139 : vector<16xf32> to vector<16x1xf32>
    %cst_50 = arith.constant 3.200000e+01 : f32
    %141 = vector.broadcast %cst_50 : f32 to vector<16x1xf32>
    %142 = arith.divf %140, %141 : vector<16x1xf32>
    %143 = vector.broadcast %135 : vector<16x1xf32> to vector<16x32xf32>
    %144 = arith.subf %129, %143 : vector<16x32xf32>
    %cst_51 = arith.constant 9.99999974E-6 : f32
    %145 = vector.broadcast %cst_51 : f32 to vector<16x1xf32>
    %146 = arith.addf %142, %145 : vector<16x1xf32>
    %147 = math.rsqrt %146 : vector<16x1xf32>
    %148 = vector.broadcast %147 : vector<16x1xf32> to vector<16x32xf32>
    %149 = arith.mulf %144, %148 : vector<16x32xf32>
    %150 = vector.broadcast %130 : vector<1x32xf32> to vector<16x32xf32>
    %151 = arith.mulf %149, %150 : vector<16x32xf32>
    %152 = vector.broadcast %131 : vector<1x32xf32> to vector<16x32xf32>
    %153 = arith.addf %151, %152 : vector<16x32xf32>
    %154 = vector.shape_cast %153 : vector<16x32xf32> to vector<8x2x32xf32>
    %155 = vector.extract_strided_slice %154 {offsets = [0, 0, 0], sizes = [8, 1, 32], strides = [1, 1, 1]} : vector<8x2x32xf32> to vector<8x1x32xf32>
    %156 = vector.shape_cast %155 : vector<8x1x32xf32> to vector<8x32xf32>
    %157 = arith.truncf %156 : vector<8x32xf32> to vector<8x32xbf16>
    %c0_52 = arith.constant 0 : index
    %c0_53 = arith.constant 0 : index
    %158 = vector.load %arg19[%c0_52, %c0_53] : memref<8x64xbf16, #tpu.memory_space<vmem>>, vector<8x32xbf16>
    tpu.vector_store %arg19[%c0_52, %c0_53], %157 {strides = array<i32>} : memref<8x64xbf16, #tpu.memory_space<vmem>>, vector<8x32xbf16>,
    %159 = vector.extract_strided_slice %154 {offsets = [0, 1, 0], sizes = [8, 1, 32], strides = [1, 1, 1]} : vector<8x2x32xf32> to vector<8x1x32xf32>
    %160 = vector.shape_cast %159 : vector<8x1x32xf32> to vector<8x32xf32>
    %161 = arith.truncf %160 : vector<8x32xf32> to vector<8x32xbf16>
    %c0_54 = arith.constant 0 : index
    %c32 = arith.constant 32 : index
    %162 = vector.load %arg19[%c0_54, %c32] : memref<8x64xbf16, #tpu.memory_space<vmem>>, vector<8x32xbf16>
    tpu.vector_store %arg19[%c0_54, %c32], %161 {strides = array<i32>} : memref<8x64xbf16, #tpu.memory_space<vmem>>, vector<8x32xbf16>,
    %c0_55 = arith.constant 0 : index
    %c0_56 = arith.constant 0 : index
    %163 = vector.load %arg19[%c0_55, %c0_56] : memref<8x64xbf16, #tpu.memory_space<vmem>>, vector<8x64xbf16>
    %c0_57 = arith.constant 0 : index
    %c0_58 = arith.constant 0 : index
    %164 = vector.load %arg16[%c0_57, %c0_58] : memref<64x128xbf16, #tpu.memory_space<vmem>>, vector<64x128xbf16>
    %cst_59 = arith.constant dense<0.000000e+00> : vector<8x128xf32>
    %165 = tpu.matmul %163, %164, %cst_59 {dimension_numbers = #tpu.dot_dimension_numbers<[1], [0], [0], [1], [0, 0, 1, 1], [], []>} : vector<8x64xbf16>, vector<64x128xbf16>, vector<8x128xf32> -> vector<8x128xf32>
    %c0_60 = arith.constant 0 : index
    %c0_61 = arith.constant 0 : index
    %166 = vector.load %arg17[%c0_60, %c0_61] : memref<1x128xf32, #tpu.memory_space<vmem>>, vector<1x128xf32>
    %167 = vector.broadcast %166 : vector<1x128xf32> to vector<8x128xf32>
    %168 = arith.addf %165, %167 : vector<8x128xf32>
    %c0_62 = arith.constant 0 : index
    %c0_63 = arith.constant 0 : index
    %169 = vector.load %arg18[%c0_62, %c0_63] : memref<8x128xf32, #tpu.memory_space<vmem>>, vector<8x128xf32>
    tpu.vector_store %arg18[%c0_62, %c0_63], %168 {strides = array<i32>} : memref<8x128xf32, #tpu.memory_space<vmem>>, vector<8x128xf32>,
    return
  }
  func.func @transform_0(%arg0: i32) -> (i32, i32, i32) {
    %c0_i32 = arith.constant 0 : i32
    %c0_i32_0 = arith.constant 0 : i32
    %c0_i32_1 = arith.constant 0 : i32
    return %arg0, %c0_i32, %c0_i32_0 : i32, i32, i32
  }
  func.func @transform_1(%arg0: i32) -> (i32, i32) {
    %c0_i32 = arith.constant 0 : i32
    %c0_i32_0 = arith.constant 0 : i32
    %c0_i32_1 = arith.constant 0 : i32
    return %c0_i32, %c0_i32_0 : i32, i32
  }
  func.func @transform_2(%arg0: i32) -> (i32, i32) {
    %c0_i32 = arith.constant 0 : i32
    %c0_i32_0 = arith.constant 0 : i32
    %c0_i32_1 = arith.constant 0 : i32
    return %c0_i32, %c0_i32_0 : i32, i32
  }
  func.func @transform_3(%arg0: i32) -> (i32, i32) {
    %c0_i32 = arith.constant 0 : i32
    %c0_i32_0 = arith.constant 0 : i32
    %c0_i32_1 = arith.constant 0 : i32
    return %c0_i32, %c0_i32_0 : i32, i32
  }
  func.func @transform_4(%arg0: i32) -> (i32, i32) {
    %c0_i32 = arith.constant 0 : i32
    %c0_i32_0 = arith.constant 0 : i32
    %c0_i32_1 = arith.constant 0 : i32
    return %c0_i32, %c0_i32_0 : i32, i32
  }
  func.func @transform_5(%arg0: i32) -> (i32, i32) {
    %c0_i32 = arith.constant 0 : i32
    %c0_i32_0 = arith.constant 0 : i32
    %c0_i32_1 = arith.constant 0 : i32
    return %c0_i32, %c0_i32_0 : i32, i32
  }
  func.func @transform_6(%arg0: i32) -> (i32, i32) {
    %c0_i32 = arith.constant 0 : i32
    %c0_i32_0 = arith.constant 0 : i32
    %c0_i32_1 = arith.constant 0 : i32
    return %c0_i32, %c0_i32_0 : i32, i32
  }
  func.func @transform_7(%arg0: i32) -> (i32, i32) {
    %c0_i32 = arith.constant 0 : i32
    %c0_i32_0 = arith.constant 0 : i32
    %c0_i32_1 = arith.constant 0 : i32
    return %c0_i32, %c0_i32_0 : i32, i32
  }
  func.func @transform_8(%arg0: i32) -> (i32, i32) {
    %c0_i32 = arith.constant 0 : i32
    %c0_i32_0 = arith.constant 0 : i32
    %c0_i32_1 = arith.constant 0 : i32
    return %c0_i32, %c0_i32_0 : i32, i32
  }
  func.func @transform_9(%arg0: i32) -> (i32, i32) {
    %c0_i32 = arith.constant 0 : i32
    %c0_i32_0 = arith.constant 0 : i32
    %c0_i32_1 = arith.constant 0 : i32
    return %c0_i32, %c0_i32_0 : i32, i32
  }
  func.func @transform_10(%arg0: i32) -> (i32, i32) {
    %c0_i32 = arith.constant 0 : i32
    %c0_i32_0 = arith.constant 0 : i32
    %c0_i32_1 = arith.constant 0 : i32
    return %c0_i32, %c0_i32_0 : i32, i32
  }
  func.func @transform_11(%arg0: i32) -> (i32, i32) {
    %c0_i32 = arith.constant 0 : i32
    %c0_i32_0 = arith.constant 0 : i32
    %c0_i32_1 = arith.constant 0 : i32
    return %c0_i32, %c0_i32_0 : i32, i32
  }
  func.func @transform_12(%arg0: i32) -> (i32, i32) {
    %c0_i32 = arith.constant 0 : i32
    %c0_i32_0 = arith.constant 0 : i32
    %c0_i32_1 = arith.constant 0 : i32
    return %c0_i32, %c0_i32_0 : i32, i32
  }
  func.func @transform_13(%arg0: i32) -> (i32, i32) {
    %c0_i32 = arith.constant 0 : i32
    %c0_i32_0 = arith.constant 0 : i32
    %c0_i32_1 = arith.constant 0 : i32
    return %c0_i32, %c0_i32_0 : i32, i32
  }
  func.func @transform_14(%arg0: i32) -> (i32, i32) {
    %c0_i32 = arith.constant 0 : i32
    %c0_i32_0 = arith.constant 0 : i32
    %c0_i32_1 = arith.constant 0 : i32
    return %c0_i32, %c0_i32_0 : i32, i32
  }
  func.func @transform_15(%arg0: i32) -> (i32, i32) {
    %c0_i32 = arith.constant 0 : i32
    %c0_i32_0 = arith.constant 0 : i32
    %c0_i32_1 = arith.constant 0 : i32
    return %c0_i32, %c0_i32_0 : i32, i32
  }
  func.func @transform_16(%arg0: i32) -> (i32, i32) {
    %c0_i32 = arith.constant 0 : i32
    %c0_i32_0 = arith.constant 0 : i32
    %c0_i32_1 = arith.constant 0 : i32
    return %c0_i32, %c0_i32_0 : i32, i32
  }
  func.func @transform_17(%arg0: i32) -> (i32, i32) {
    %c0_i32 = arith.constant 0 : i32
    %c0_i32_0 = arith.constant 0 : i32
    return %arg0, %c0_i32 : i32, i32
  }
}

</mosaic_0001>

<llo_original>
// kernel: patchtstc_forward.1
$region0: #{patchtstc_forward.1}
  #allocation0 [shape = 'u32[]', space=smem, size = 0x4, offset = 0x4, fixed_abs, tag = 'smem constant byte address 0x4 - core index']
  #allocation1 [shape = 'u32[144,128]{1,0:T(1,128)}', space=vmem, size = 0x12000, scoped, tag = 'internal scratch']
  #allocation2 [shape = 'bf16[8,64]{1,0:T(8,128)(2,1)}', space=vmem, size = 0x800, scoped, tag = 'scratch operand']
  %s0 = inlined_call_operand.vmem [shape: bf16[16,2,8], index: 0, kind: input, shape index: {}]
  %s1 = inlined_call_operand.vmem [shape: bf16[8,32], index: 1, kind: input, shape index: {}]
  %s2 = inlined_call_operand.vmem [shape: f32[2,32], index: 2, kind: input, shape index: {}]
  %s3 = inlined_call_operand.vmem [shape: bf16[32,96], index: 3, kind: input, shape index: {}]
  %s4 = inlined_call_operand.vmem [shape: f32[1,96], index: 4, kind: input, shape index: {}]
  %s5 = inlined_call_operand.vmem [shape: bf16[32,32], index: 5, kind: input, shape index: {}]
  %s6 = inlined_call_operand.vmem [shape: f32[1,32], index: 6, kind: input, shape index: {}]
  %s7 = inlined_call_operand.vmem [shape: f32[1,32], index: 7, kind: input, shape index: {}]
  %s8 = inlined_call_operand.vmem [shape: f32[1,32], index: 8, kind: input, shape index: {}]
  %s9 = inlined_call_operand.vmem [shape: bf16[32,128], index: 9, kind: input, shape index: {}]
  %s10 = inlined_call_operand.vmem [shape: f32[1,128], index: 10, kind: input, shape index: {}]
  %s11 = inlined_call_operand.vmem [shape: bf16[128,32], index: 11, kind: input, shape index: {}]
  %s12 = inlined_call_operand.vmem [shape: f32[1,32], index: 12, kind: input, shape index: {}]
  %s13 = inlined_call_operand.vmem [shape: f32[1,32], index: 13, kind: input, shape index: {}]
  %s14 = inlined_call_operand.vmem [shape: f32[1,32], index: 14, kind: input, shape index: {}]
  %s15 = inlined_call_operand.vmem [shape: bf16[64,128], index: 15, kind: input, shape index: {}]
  %s16 = inlined_call_operand.vmem [shape: f32[1,128], index: 16, kind: input, shape index: {}]
  %s17 = inlined_call_operand.vmem [shape: f32[16,128], index: 17, kind: output, shape index: {}]
  %s18 = sld [smem:[#allocation0]]
  $region101: #{patchtstc_forward.1} parent=0
    _
  %s20 = ssub.s32 1, %s18
  %s21 = scalar_select 0, %s20, %s18
  loop: start=0, step=1, limit=4
  $region2: #{patchtstc_forward.1} parent=0 // loop_pre_header
    _
  $region3: #{patchtstc_forward.1} parent=0 // loop_header
    %s23 = sphi 0, %s27
    %p24 = scmp.ge.s32.totalorder %s23, 4
    %s33 = sphi 0, %s35
    %s36 = sphi 0, %s33
    %s37 = sphi 0, %s36
    %s53 = sphi 0, %s37
    %s57 = sphi 0, %s57
    %s59 = sphi 0, %s57
    %s60 = sphi 0, %s59
    %s74 = sphi 0, %s60
    %s78 = sphi 0, %s78
    %s80 = sphi 0, %s78
    %s81 = sphi 0, %s80
    %s95 = sphi 0, %s81
    %s99 = sphi 0, %s99
    %s101 = sphi 0, %s99
    %s102 = sphi 0, %s101
    %s116 = sphi 0, %s102
    %s120 = sphi 0, %s120
    %s122 = sphi 0, %s120
    %s123 = sphi 0, %s122
    %s137 = sphi 0, %s123
    %s141 = sphi 0, %s141
    %s143 = sphi 0, %s141
    %s144 = sphi 0, %s143
    %s158 = sphi 0, %s144
    %s162 = sphi 0, %s162
    %s164 = sphi 0, %s162
    %s165 = sphi 0, %s164
    %s179 = sphi 0, %s165
    %s183 = sphi 0, %s183
    %s185 = sphi 0, %s183
    %s186 = sphi 0, %s185
    %s200 = sphi 0, %s186
    %s204 = sphi 0, %s204
    %s206 = sphi 0, %s204
    %s207 = sphi 0, %s206
    %s221 = sphi 0, %s207
    %s225 = sphi 0, %s225
    %s227 = sphi 0, %s225
    %s228 = sphi 0, %s227
    %s242 = sphi 0, %s228
    %s246 = sphi 0, %s246
    %s248 = sphi 0, %s246
    %s249 = sphi 0, %s248
    %s263 = sphi 0, %s249
    %s267 = sphi 0, %s267
    %s269 = sphi 0, %s267
    %s270 = sphi 0, %s269
    %s284 = sphi 0, %s270
    %s288 = sphi 0, %s288
    %s290 = sphi 0, %s288
    %s291 = sphi 0, %s290
    %s305 = sphi 0, %s291
    %s309 = sphi 0, %s309
    %s311 = sphi 0, %s309
    %s312 = sphi 0, %s311
    %s326 = sphi 0, %s312
    %s330 = sphi 0, %s330
    %s332 = sphi 0, %s330
    %s333 = sphi 0, %s332
    %s347 = sphi 0, %s333
    %s351 = sphi 0, %s351
    %s353 = sphi 0, %s351
    %s354 = sphi 0, %s353
    %s368 = sphi 0, %s354
    %s372 = sphi 0, %s372
    %s374 = sphi 0, %s372
    %s375 = sphi 0, %s374
    %s389 = sphi 0, %s375
    %s395 = sphi 0, %s397
    %s398 = sphi 0, %s395
    %s399 = sphi 0, %s398
    %s415 = sphi 0, %s399
  $region4: #{patchtstc_forward.1} parent=0 // loop_header_branch
    %26 = sbr.rel (%p24) target = $region8
  $region5: #{patchtstc_forward.1} parent=0 // loop_body
    %s28 = ssub.s32 %s23, 1
    %s29 = ssub.s32 %s23, 2
    %s30 = sadd.s32 %s23, 1
    %s31 = ssub.s32 %s23, %s30
    %p32 = scmp.eq.s32.totalorder %s31, 0
    %s34 = sadd.s32 %s33, 1
    %s35 = scalar_select %p32, %s33, %s34
    %p38 = pneg %p32
    %p39 = scmp.eq.s32.totalorder %s23, 1
    %p40 = por %p38, %p39
    %p41 = scmp.ne.s32.totalorder %s33, %s36
    %p42 = scmp.eq.s32.totalorder %s23, 0
    %p43 = por %p41, %p42
    %p44 = scmp.ne.s32.totalorder %s33, %s36
    %p45 = scmp.eq.s32.totalorder %s28, 1
    %p46 = por %p44, %p45
    %p47 = scmp.ne.s32.totalorder %s36, %s37
    %p48 = scmp.eq.s32.totalorder %s28, 0
    %p49 = por %p47, %p48
    %p50 = scmp.ne.s32.totalorder %s36, %s37
    %p51 = scmp.eq.s32.totalorder %s29, 1
    %p52 = por %p50, %p51
    %p54 = scmp.ne.s32.totalorder %s37, %s53
    %p55 = scmp.eq.s32.totalorder %s29, 0
    %p56 = por %p54, %p55
    %s58 = sadd.s32 %s57, 1
    %p61 = scmp.eq.s32.totalorder %s23, 1
    %p62 = scmp.ne.s32.totalorder %s57, %s59
    %p63 = scmp.eq.s32.totalorder %s23, 0
    %p64 = por %p62, %p63
    %p65 = scmp.ne.s32.totalorder %s57, %s59
    %p66 = scmp.eq.s32.totalorder %s28, 1
    %p67 = por %p65, %p66
    %p68 = scmp.ne.s32.totalorder %s59, %s60
    %p69 = scmp.eq.s32.totalorder %s28, 0
    %p70 = por %p68, %p69
    %p71 = scmp.ne.s32.totalorder %s59, %s60
    %p72 = scmp.eq.s32.totalorder %s29, 1
    %p73 = por %p71, %p72
    %p75 = scmp.ne.s32.totalorder %s60, %s74
    %p76 = scmp.eq.s32.totalorder %s29, 0
    %p77 = por %p75, %p76
    %s79 = sadd.s32 %s78, 1
    %p82 = scmp.eq.s32.totalorder %s23, 1
    %p83 = scmp.ne.s32.totalorder %s78, %s80
    %p84 = scmp.eq.s32.totalorder %s23, 0
    %p85 = por %p83, %p84
    %p86 = scmp.ne.s32.totalorder %s78, %s80
    %p87 = scmp.eq.s32.totalorder %s28, 1
    %p88 = por %p86, %p87
    %p89 = scmp.ne.s32.totalorder %s80, %s81
    %p90 = scmp.eq.s32.totalorder %s28, 0
    %p91 = por %p89, %p90
    %p92 = scmp.ne.s32.totalorder %s80, %s81
    %p93 = scmp.eq.s32.totalorder %s29, 1
    %p94 = por %p92, %p93
    %p96 = scmp.ne.s32.totalorder %s81, %s95
    %p97 = scmp.eq.s32.totalorder %s29, 0
    %p98 = por %p96, %p97
    %s100 = sadd.s32 %s99, 1
    %p103 = scmp.eq.s32.totalorder %s23, 1
    %p104 = scmp.ne.s32.totalorder %s99, %s101
    %p105 = scmp.eq.s32.totalorder %s23, 0
    %p106 = por %p104, %p105
    %p107 = scmp.ne.s32.totalorder %s99, %s101
    %p108 = scmp.eq.s32.totalorder %s28, 1
    %p109 = por %p107, %p108
    %p110 = scmp.ne.s32.totalorder %s101, %s102
    %p111 = scmp.eq.s32.totalorder %s28, 0
    %p112 = por %p110, %p111
    %p113 = scmp.ne.s32.totalorder %s101, %s102
    %p114 = scmp.eq.s32.totalorder %s29, 1
    %p115 = por %p113, %p114
    %p117 = scmp.ne.s32.totalorder %s102, %s116
    %p118 = scmp.eq.s32.totalorder %s29, 0
    %p119 = por %p117, %p118
    %s121 = sadd.s32 %s120, 1
    %p124 = scmp.eq.s32.totalorder %s23, 1
    %p125 = scmp.ne.s32.totalorder %s120, %s122
    %p126 = scmp.eq.s32.totalorder %s23, 0
    %p127 = por %p125, %p126
    %p128 = scmp.ne.s32.totalorder %s120, %s122
    %p129 = scmp.eq.s32.totalorder %s28, 1
    %p130 = por %p128, %p129
    %p131 = scmp.ne.s32.totalorder %s122, %s123
    %p132 = scmp.eq.s32.totalorder %s28, 0
    %p133 = por %p131, %p132
    %p134 = scmp.ne.s32.totalorder %s122, %s123
    %p135 = scmp.eq.s32.totalorder %s29, 1
    %p136 = por %p134, %p135
    %p138 = scmp.ne.s32.totalorder %s123, %s137
    %p139 = scmp.eq.s32.totalorder %s29, 0
    %p140 = por %p138, %p139
    %s142 = sadd.s32 %s141, 1
    %p145 = scmp.eq.s32.totalorder %s23, 1
    %p146 = scmp.ne.s32.totalorder %s141, %s143
    %p147 = scmp.eq.s32.totalorder %s23, 0
    %p148 = por %p146, %p147
    %p149 = scmp.ne.s32.totalorder %s141, %s143
    %p150 = scmp.eq.s32.totalorder %s28, 1
    %p151 = por %p149, %p150
    %p152 = scmp.ne.s32.totalorder %s143, %s144
    %p153 = scmp.eq.s32.totalorder %s28, 0
    %p154 = por %p152, %p153
    %p155 = scmp.ne.s32.totalorder %s143, %s144
    %p156 = scmp.eq.s32.totalorder %s29, 1
    %p157 = por %p155, %p156
    %p159 = scmp.ne.s32.totalorder %s144, %s158
    %p160 = scmp.eq.s32.totalorder %s29, 0
    %p161 = por %p159, %p160
    %s163 = sadd.s32 %s162, 1
    %p166 = scmp.eq.s32.totalorder %s23, 1
    %p167 = scmp.ne.s32.totalorder %s162, %s164
    %p168 = scmp.eq.s32.totalorder %s23, 0
    %p169 = por %p167, %p168
    %p170 = scmp.ne.s32.totalorder %s162, %s164
    %p171 = scmp.eq.s32.totalorder %s28, 1
    %p172 = por %p170, %p171
    %p173 = scmp.ne.s32.totalorder %s164, %s165
    %p174 = scmp.eq.s32.totalorder %s28, 0
    %p175 = por %p173, %p174
    %p176 = scmp.ne.s32.totalorder %s164, %s165
    %p177 = scmp.eq.s32.totalorder %s29, 1
    %p178 = por %p176, %p177
    %p180 = scmp.ne.s32.totalorder %s165, %s179
    %p181 = scmp.eq.s32.totalorder %s29, 0
    %p182 = por %p180, %p181
    %s184 = sadd.s32 %s183, 1
    %p187 = scmp.eq.s32.totalorder %s23, 1
    %p188 = scmp.ne.s32.totalorder %s183, %s185
    %p189 = scmp.eq.s32.totalorder %s23, 0
    %p190 = por %p188, %p189
    %p191 = scmp.ne.s32.totalorder %s183, %s185
    %p192 = scmp.eq.s32.totalorder %s28, 1
    %p193 = por %p191, %p192
    %p194 = scmp.ne.s32.totalorder %s185, %s186
    %p195 = scmp.eq.s32.totalorder %s28, 0
    %p196 = por %p194, %p195
    %p197 = scmp.ne.s32.totalorder %s185, %s186
    %p198 = scmp.eq.s32.totalorder %s29, 1
    %p199 = por %p197, %p198
    %p201 = scmp.ne.s32.totalorder %s186, %s200
    %p202 = scmp.eq.s32.totalorder %s29, 0
    %p203 = por %p201, %p202
    %s205 = sadd.s32 %s204, 1
    %p208 = scmp.eq.s32.totalorder %s23, 1
    %p209 = scmp.ne.s32.totalorder %s204, %s206
    %p210 = scmp.eq.s32.totalorder %s23, 0
    %p211 = por %p209, %p210
    %p212 = scmp.ne.s32.totalorder %s204, %s206
    %p213 = scmp.eq.s32.totalorder %s28, 1
    %p214 = por %p212, %p213
    %p215 = scmp.ne.s32.totalorder %s206, %s207
    %p216 = scmp.eq.s32.totalorder %s28, 0
    %p217 = por %p215, %p216
    %p218 = scmp.ne.s32.totalorder %s206, %s207
    %p219 = scmp.eq.s32.totalorder %s29, 1
    %p220 = por %p218, %p219
    %p222 = scmp.ne.s32.totalorder %s207, %s221
    %p223 = scmp.eq.s32.totalorder %s29, 0
    %p224 = por %p222, %p223
    %s226 = sadd.s32 %s225, 1
    %p229 = scmp.eq.s32.totalorder %s23, 1
    %p230 = scmp.ne.s32.totalorder %s225, %s227
    %p231 = scmp.eq.s32.totalorder %s23, 0
    %p232 = por %p230, %p231
    %p233 = scmp.ne.s32.totalorder %s225, %s227
    %p234 = scmp.eq.s32.totalorder %s28, 1
    %p235 = por %p233, %p234
    %p236 = scmp.ne.s32.totalorder %s227, %s228
    %p237 = scmp.eq.s32.totalorder %s28, 0
    %p238 = por %p236, %p237
    %p239 = scmp.ne.s32.totalorder %s227, %s228
    %p240 = scmp.eq.s32.totalorder %s29, 1
    %p241 = por %p239, %p240
    %p243 = scmp.ne.s32.totalorder %s228, %s242
    %p244 = scmp.eq.s32.totalorder %s29, 0
    %p245 = por %p243, %p244
    %s247 = sadd.s32 %s246, 1
    %p250 = scmp.eq.s32.totalorder %s23, 1
    %p251 = scmp.ne.s32.totalorder %s246, %s248
    %p252 = scmp.eq.s32.totalorder %s23, 0
    %p253 = por %p251, %p252
    %p254 = scmp.ne.s32.totalorder %s246, %s248
    %p255 = scmp.eq.s32.totalorder %s28, 1
    %p256 = por %p254, %p255
    %p257 = scmp.ne.s32.totalorder %s248, %s249
    %p258 = scmp.eq.s32.totalorder %s28, 0
    %p259 = por %p257, %p258
    %p260 = scmp.ne.s32.totalorder %s248, %s249
    %p261 = scmp.eq.s32.totalorder %s29, 1
    %p262 = por %p260, %p261
    %p264 = scmp.ne.s32.totalorder %s249, %s263
    %p265 = scmp.eq.s32.totalorder %s29, 0
    %p266 = por %p264, %p265
    %s268 = sadd.s32 %s267, 1
    %p271 = scmp.eq.s32.totalorder %s23, 1
    %p272 = scmp.ne.s32.totalorder %s267, %s269
    %p273 = scmp.eq.s32.totalorder %s23, 0
    %p274 = por %p272, %p273
    %p275 = scmp.ne.s32.totalorder %s267, %s269
    %p276 = scmp.eq.s32.totalorder %s28, 1
    %p277 = por %p275, %p276
    %p278 = scmp.ne.s32.totalorder %s269, %s270
    %p279 = scmp.eq.s32.totalorder %s28, 0
    %p280 = por %p278, %p279
    %p281 = scmp.ne.s32.totalorder %s269, %s270
    %p282 = scmp.eq.s32.totalorder %s29, 1
    %p283 = por %p281, %p282
    %p285 = scmp.ne.s32.totalorder %s270, %s284
    %p286 = scmp.eq.s32.totalorder %s29, 0
    %p287 = por %p285, %p286
    %s289 = sadd.s32 %s288, 1
    %p292 = scmp.eq.s32.totalorder %s23, 1
    %p293 = scmp.ne.s32.totalorder %s288, %s290
    %p294 = scmp.eq.s32.totalorder %s23, 0
    %p295 = por %p293, %p294
    %p296 = scmp.ne.s32.totalorder %s288, %s290
    %p297 = scmp.eq.s32.totalorder %s28, 1
    %p298 = por %p296, %p297
    %p299 = scmp.ne.s32.totalorder %s290, %s291
    %p300 = scmp.eq.s32.totalorder %s28, 0
    %p301 = por %p299, %p300
    %p302 = scmp.ne.s32.totalorder %s290, %s291
    %p303 = scmp.eq.s32.totalorder %s29, 1
    %p304 = por %p302, %p303
    %p306 = scmp.ne.s32.totalorder %s291, %s305
    %p307 = scmp.eq.s32.totalorder %s29, 0
    %p308 = por %p306, %p307
    %s310 = sadd.s32 %s309, 1
    %p313 = scmp.eq.s32.totalorder %s23, 1
    %p314 = scmp.ne.s32.totalorder %s309, %s311
    %p315 = scmp.eq.s32.totalorder %s23, 0
    %p316 = por %p314, %p315
    %p317 = scmp.ne.s32.totalorder %s309, %s311
    %p318 = scmp.eq.s32.totalorder %s28, 1
    %p319 = por %p317, %p318
    %p320 = scmp.ne.s32.totalorder %s311, %s312
    %p321 = scmp.eq.s32.totalorder %s28, 0
    %p322 = por %p320, %p321
    %p323 = scmp.ne.s32.totalorder %s311, %s312
    %p324 = scmp.eq.s32.totalorder %s29, 1
    %p325 = por %p323, %p324
    %p327 = scmp.ne.s32.totalorder %s312, %s326
    %p328 = scmp.eq.s32.totalorder %s29, 0
    %p329 = por %p327, %p328
    %s331 = sadd.s32 %s330, 1
    %p334 = scmp.eq.s32.totalorder %s23, 1
    %p335 = scmp.ne.s32.totalorder %s330, %s332
    %p336 = scmp.eq.s32.totalorder %s23, 0
    %p337 = por %p335, %p336
    %p338 = scmp.ne.s32.totalorder %s330, %s332
    %p339 = scmp.eq.s32.totalorder %s28, 1
    %p340 = por %p338, %p339
    %p341 = scmp.ne.s32.totalorder %s332, %s333
    %p342 = scmp.eq.s32.totalorder %s28, 0
    %p343 = por %p341, %p342
    %p344 = scmp.ne.s32.totalorder %s332, %s333
    %p345 = scmp.eq.s32.totalorder %s29, 1
    %p346 = por %p344, %p345
    %p348 = scmp.ne.s32.totalorder %s333, %s347
    %p349 = scmp.eq.s32.totalorder %s29, 0
    %p350 = por %p348, %p349
    %s352 = sadd.s32 %s351, 1
    %p355 = scmp.eq.s32.totalorder %s23, 1
    %p356 = scmp.ne.s32.totalorder %s351, %s353
    %p357 = scmp.eq.s32.totalorder %s23, 0
    %p358 = por %p356, %p357
    %p359 = scmp.ne.s32.totalorder %s351, %s353
    %p360 = scmp.eq.s32.totalorder %s28, 1
    %p361 = por %p359, %p360
    %p362 = scmp.ne.s32.totalorder %s353, %s354
    %p363 = scmp.eq.s32.totalorder %s28, 0
    %p364 = por %p362, %p363
    %p365 = scmp.ne.s32.totalorder %s353, %s354
    %p366 = scmp.eq.s32.totalorder %s29, 1
    %p367 = por %p365, %p366
    %p369 = scmp.ne.s32.totalorder %s354, %s368
    %p370 = scmp.eq.s32.totalorder %s29, 0
    %p371 = por %p369, %p370
    %s373 = sadd.s32 %s372, 1
    %p376 = scmp.eq.s32.totalorder %s23, 1
    %p377 = scmp.ne.s32.totalorder %s372, %s374
    %p378 = scmp.eq.s32.totalorder %s23, 0
    %p379 = por %p377, %p378
    %p380 = scmp.ne.s32.totalorder %s372, %s374
    %p381 = scmp.eq.s32.totalorder %s28, 1
    %p382 = por %p380, %p381
    %p383 = scmp.ne.s32.totalorder %s374, %s375
    %p384 = scmp.eq.s32.totalorder %s28, 0
    %p385 = por %p383, %p384
    %p386 = scmp.ne.s32.totalorder %s374, %s375
    %p387 = scmp.eq.s32.totalorder %s29, 1
    %p388 = por %p386, %p387
    %p390 = scmp.ne.s32.totalorder %s375, %s389
    %p391 = scmp.eq.s32.totalorder %s29, 0
    %p392 = por %p390, %p391
    %s393 = ssub.s32 %s23, %s30
    %p394 = scmp.eq.s32.totalorder %s393, 0
    %s396 = sadd.s32 %s395, 1
    %s397 = scalar_select %p394, %s395, %s396
    %p400 = pneg %p394
    %p401 = scmp.eq.s32.totalorder %s23, 1
    %p402 = por %p400, %p401
    %p403 = scmp.ne.s32.totalorder %s395, %s398
    %p404 = scmp.eq.s32.totalorder %s23, 0
    %p405 = por %p403, %p404
    %p406 = scmp.ne.s32.totalorder %s395, %s398
    %p407 = scmp.eq.s32.totalorder %s28, 1
    %p408 = por %p406, %p407
    %p409 = scmp.ne.s32.totalorder %s398, %s399
    %p410 = scmp.eq.s32.totalorder %s28, 0
    %p411 = por %p409, %p410
    %p412 = scmp.ne.s32.totalorder %s398, %s399
    %p413 = scmp.eq.s32.totalorder %s29, 1
    %p414 = por %p412, %p413
    %p416 = scmp.ne.s32.totalorder %s399, %s415
    %p417 = scmp.eq.s32.totalorder %s29, 0
    %p418 = por %p416, %p417
    %p419 = scmp.le.s32.totalorder 1, %s23
    %p420 = scmp.lt.s32.totalorder %s23, 3
    %p421 = pnand %p419, %p420
    %p422 = pneg %p421
    // Predicated region
    $region9: #{patchtstc_forward.1} parent=5 // pred_check
      _
    $region10: #{patchtstc_forward.1} parent=5 // pred_check_branch
      %424 = sbr.rel (%p421) target = $region12
    $region11: #{patchtstc_forward.1} parent=5 // pred_region
      %s425 = ssub.s32 %s23, 1
      // Predicated region
      $region13: #{patchtstc_forward.1} parent=11 // pred_check
        %p426 = pneg %p70
      $region14: #{patchtstc_forward.1} parent=11 // pred_check_branch
        %428 = sbr.rel (%p426) target = $region16
      $region15: #{patchtstc_forward.1} parent=11 // pred_region
        _
      $region16: #{patchtstc_forward.1} parent=11 // pred_fallthru
        _
      // Predicated region
      $region17: #{patchtstc_forward.1} parent=11 // pred_check
        %p429 = pneg %p91
      $region18: #{patchtstc_forward.1} parent=11 // pred_check_branch
        %431 = sbr.rel (%p429) target = $region20
      $region19: #{patchtstc_forward.1} parent=11 // pred_region
        _
      $region20: #{patchtstc_forward.1} parent=11 // pred_fallthru
        _
      // Predicated region
      $region21: #{patchtstc_forward.1} parent=11 // pred_check
        %p432 = pneg %p112
      $region22: #{patchtstc_forward.1} parent=11 // pred_check_branch
        %434 = sbr.rel (%p432) target = $region24
      $region23: #{patchtstc_forward.1} parent=11 // pred_region
        _
      $region24: #{patchtstc_forward.1} parent=11 // pred_fallthru
        _
      // Predicated region
      $region25: #{patchtstc_forward.1} parent=11 // pred_check
        %p435 = pneg %p133
      $region26: #{patchtstc_forward.1} parent=11 // pred_check_branch
        %437 = sbr.rel (%p435) target = $region28
      $region27: #{patchtstc_forward.1} parent=11 // pred_region
        _
      $region28: #{patchtstc_forward.1} parent=11 // pred_fallthru
        _
      // Predicated region
      $region29: #{patchtstc_forward.1} parent=11 // pred_check
        %p438 = pneg %p154
      $region30: #{patchtstc_forward.1} parent=11 // pred_check_branch
        %440 = sbr.rel (%p438) target = $region32
      $region31: #{patchtstc_forward.1} parent=11 // pred_region
        _
      $region32: #{patchtstc_forward.1} parent=11 // pred_fallthru
        _
      // Predicated region
      $region33: #{patchtstc_forward.1} parent=11 // pred_check
        %p441 = pneg %p175
      $region34: #{patchtstc_forward.1} parent=11 // pred_check_branch
        %443 = sbr.rel (%p441) target = $region36
      $region35: #{patchtstc_forward.1} parent=11 // pred_region
        _
      $region36: #{patchtstc_forward.1} parent=11 // pred_fallthru
        _
      // Predicated region
      $region37: #{patchtstc_forward.1} parent=11 // pred_check
        %p444 = pneg %p196
      $region38: #{patchtstc_forward.1} parent=11 // pred_check_branch
        %446 = sbr.rel (%p444) target = $region40
      $region39: #{patchtstc_forward.1} parent=11 // pred_region
        _
      $region40: #{patchtstc_forward.1} parent=11 // pred_fallthru
        _
      // Predicated region
      $region41: #{patchtstc_forward.1} parent=11 // pred_check
        %p447 = pneg %p217
      $region42: #{patchtstc_forward.1} parent=11 // pred_check_branch
        %449 = sbr.rel (%p447) target = $region44
      $region43: #{patchtstc_forward.1} parent=11 // pred_region
        _
      $region44: #{patchtstc_forward.1} parent=11 // pred_fallthru
        _
      // Predicated region
      $region45: #{patchtstc_forward.1} parent=11 // pred_check
        %p450 = pneg %p238
      $region46: #{patchtstc_forward.1} parent=11 // pred_check_branch
        %452 = sbr.rel (%p450) target = $region48
      $region47: #{patchtstc_forward.1} parent=11 // pred_region
        _
      $region48: #{patchtstc_forward.1} parent=11 // pred_fallthru
        _
      // Predicated region
      $region49: #{patchtstc_forward.1} parent=11 // pred_check
        %p453 = pneg %p259
      $region50: #{patchtstc_forward.1} parent=11 // pred_check_branch
        %455 = sbr.rel (%p453) target = $region52
      $region51: #{patchtstc_forward.1} parent=11 // pred_region
        _
      $region52: #{patchtstc_forward.1} parent=11 // pred_fallthru
        _
      // Predicated region
      $region53: #{patchtstc_forward.1} parent=11 // pred_check
        %p456 = pneg %p280
      $region54: #{patchtstc_forward.1} parent=11 // pred_check_branch
        %458 = sbr.rel (%p456) target = $region56
      $region55: #{patchtstc_forward.1} parent=11 // pred_region
        _
      $region56: #{patchtstc_forward.1} parent=11 // pred_fallthru
        _
      // Predicated region
      $region57: #{patchtstc_forward.1} parent=11 // pred_check
        %p459 = pneg %p301
      $region58: #{patchtstc_forward.1} parent=11 // pred_check_branch
        %461 = sbr.rel (%p459) target = $region60
      $region59: #{patchtstc_forward.1} parent=11 // pred_region
        _
      $region60: #{patchtstc_forward.1} parent=11 // pred_fallthru
        _
      // Predicated region
      $region61: #{patchtstc_forward.1} parent=11 // pred_check
        %p462 = pneg %p322
      $region62: #{patchtstc_forward.1} parent=11 // pred_check_branch
        %464 = sbr.rel (%p462) target = $region64
      $region63: #{patchtstc_forward.1} parent=11 // pred_region
        _
      $region64: #{patchtstc_forward.1} parent=11 // pred_fallthru
        _
      // Predicated region
      $region65: #{patchtstc_forward.1} parent=11 // pred_check
        %p465 = pneg %p343
      $region66: #{patchtstc_forward.1} parent=11 // pred_check_branch
        %467 = sbr.rel (%p465) target = $region68
      $region67: #{patchtstc_forward.1} parent=11 // pred_region
        _
      $region68: #{patchtstc_forward.1} parent=11 // pred_fallthru
        _
      // Predicated region
      $region69: #{patchtstc_forward.1} parent=11 // pred_check
        %p468 = pneg %p364
      $region70: #{patchtstc_forward.1} parent=11 // pred_check_branch
        %470 = sbr.rel (%p468) target = $region72
      $region71: #{patchtstc_forward.1} parent=11 // pred_region
        _
      $region72: #{patchtstc_forward.1} parent=11 // pred_fallthru
        _
      // Predicated region
      $region73: #{patchtstc_forward.1} parent=11 // pred_check
        %p471 = pneg %p385
      $region74: #{patchtstc_forward.1} parent=11 // pred_check_branch
        %473 = sbr.rel (%p471) target = $region76
      $region75: #{patchtstc_forward.1} parent=11 // pred_region
        _
      $region76: #{patchtstc_forward.1} parent=11 // pred_fallthru
        _
    $region12: #{patchtstc_forward.1} parent=5 // pred_fallthru
      _
    %p474 = scmp.lt.s32.totalorder %s23, 2
    // Predicated region
    $region77: #{patchtstc_forward.1} parent=5 // pred_check
      %p475 = pneg %p474
    $region78: #{patchtstc_forward.1} parent=5 // pred_check_branch
      %477 = sbr.rel (%p475) target = $region80
    $region79: #{patchtstc_forward.1} parent=5 // pred_region
      // Predicated region
      $region81: #{patchtstc_forward.1} parent=79 // pred_check
        %p478 = pneg %p43
      $region82: #{patchtstc_forward.1} parent=79 // pred_check_branch
        %480 = sbr.rel (%p478) target = $region84
      $region83: #{patchtstc_forward.1} parent=79 // pred_region
        %s481 = smul.u32 8, %s23
        %p482 = scmp.lt.s32.totalorder %s481, 15
        %s483 = scalar_select %p482, %s481, 15
        %s484 = scalar_lea.vmem %s0, %s483
        %s485 = smul.u32 8, %s23
      $region84: #{patchtstc_forward.1} parent=79 // pred_fallthru
        _
    $region80: #{patchtstc_forward.1} parent=5 // pred_fallthru
      _
    %p486 = scmp.le.s32.totalorder 1, %s23
    %p487 = scmp.lt.s32.totalorder %s23, 3
    %p488 = pnand %p486, %p487
    %p489 = pneg %p488
    // Predicated region
    $region85: #{patchtstc_forward.1} parent=5 // pred_check
      _
    $region86: #{patchtstc_forward.1} parent=5 // pred_check_branch
      %491 = sbr.rel (%p488) target = $region88
    $region87: #{patchtstc_forward.1} parent=5 // pred_region
      %s492 = ssub.s32 %s23, 1
      %s493 = smul.u32 8, %s28
      %p494 = scmp.lt.s32.totalorder %s493, 15
      %s495 = scalar_select %p494, %s493, 15
      %s496 = scalar_lea.vmem %s0, %s495
      %p497 = pneg %p49
      %p498 = pneg %p46
      %p499 = pneg %p70
      %p500 = pneg %p67
      %p501 = pneg %p91
      %p502 = pneg %p88
      %p503 = pneg %p112
      %p504 = pneg %p109
      %p505 = pneg %p133
      %p506 = pneg %p130
      %p507 = pneg %p154
      %p508 = pneg %p151
      %p509 = pneg %p175
      %p510 = pneg %p172
      %p511 = pneg %p196
      %p512 = pneg %p193
      %p513 = pneg %p217
      %p514 = pneg %p214
      %p515 = pneg %p238
      %p516 = pneg %p235
      %p517 = pneg %p259
      %p518 = pneg %p256
      %p519 = pneg %p280
      %p520 = pneg %p277
      %p521 = pneg %p301
      %p522 = pneg %p298
      %p523 = pneg %p322
      %p524 = pneg %p319
      %p525 = pneg %p343
      %p526 = pneg %p340
      %p527 = pneg %p364
      %p528 = pneg %p361
      %p529 = pneg %p385
      %p530 = pneg %p382
      %p531 = pneg %p411
      %p532 = pneg %p408
      %p533 = scmp.lt.s32.totalorder %s28, 1
      %s534 = scalar_select %p533, %s28, 1
      %s535 = smul.addr %s534, 8
      %s536 = scalar_lea.vmem %s17, %s535
      %s537 = smul.u32 8, %s28
      %p538 = scmp.lt.s32.totalorder %s537, 15
      %s539 = scalar_select %p538, %s537, 15
      %s540 = scalar_lea.vmem %s0, %s539
      %s541 = smul.u32 8, %s28
      %p542 = scmp.lt.s32.totalorder %s28, 1
      %s543 = scalar_select %p542, %s28, 1
      %s544 = smul.addr %s543, 8
      %s545 = scalar_lea.vmem %s17, %s544
      %v547 = vld [vmem:[%s540] sm:$0x1]
      %v548 = vld [vmem:[%s540 + $0x1] sm:$0x1]
      %v549 = vld [vmem:[%s540 + $0x2] sm:$0x1]
      %v550 = vld [vmem:[%s540 + $0x3] sm:$0x1]
      %v551 = vld [vmem:[%s540 + $0x4] sm:$0x1]
      %v552 = vld [vmem:[%s540 + $0x5] sm:$0x1]
      %v553 = vld [vmem:[%s540 + $0x6] sm:$0x1]
      %v554 = vld [vmem:[%s540 + $0x7] sm:$0x1]
      %v555 = vld [vmem:[%s1] sm:$0xf]
      %v564 = vcombine.low %v547, %v548
      %v565 = vcombine.low %v549, %v550
      %v566 = vcombine.low %v551, %v552
      %v567 = vcombine.low %v553, %v554
      %v569 = vunpack.c.l.s4 1966171168
      %v570 = vunpack.c.0.s8 %v569
      %v571 = vlaneseq
      %v572 = vshrl.u32 %v571, 7
      %v573 = vsub.s32 %v570, %v572
      %v574 = vrot.slane %v564, %v573
      %v576 = vunpack.c.l.s4 1966171168
      %v577 = vunpack.c.0.s8 %v576
      %v578 = vlaneseq
      %v579 = vshrl.u32 %v578, 7
      %v580 = vsub.s32 %v577, %v579
      %v581 = vrot.slane %v565, %v580
      %v583 = vunpack.c.l.s4 1966171168
      %v584 = vunpack.c.0.s8 %v583
      %v585 = vlaneseq
      %v586 = vshrl.u32 %v585, 7
      %v587 = vsub.s32 %v584, %v586
      %v588 = vrot.slane %v566, %v587
      %v590 = vunpack.c.l.s4 1966171168
      %v591 = vunpack.c.0.s8 %v590
      %v592 = vlaneseq
      %v593 = vshrl.u32 %v592, 7
      %v594 = vsub.s32 %v591, %v593
      %v595 = vrot.slane %v567, %v594
      %v596 = vcombine.low %v574, %v581
      %v597 = vcombine.low %v588, %v595
      %v599 = vunpack.c.l.s4 1966171168
      %v600 = vunpack.c.0.s8 %v599
      %v601 = vlaneseq
      %v602 = vshrl.u32 %v601, 7
      %v603 = vsub.s32 %v600, %v602
      %v604 = vrot.slane %v596, %v603
      %v606 = vunpack.c.l.s4 1966171168
      %v607 = vunpack.c.0.s8 %v606
      %v608 = vlaneseq
      %v609 = vshrl.u32 %v608, 7
      %v610 = vsub.s32 %v607, %v609
      %v611 = vrot.slane %v597, %v610
      %v612 = vcombine.low %v604, %v611
      %vm613 = vcmask 64512
      %v615 = vsel %vm613, %v612, 0
      %vm617 = vcmask 1043456
      %v619 = vsel %vm617, %v555, 0
      %621 = vmatprep.subr.bf16.mxu0 0
      %622 = vmatpush1.bf16.msra.mxu0 %v619
      %623 = vmatprep.subr.bf16.mxu0 0
      %624 = vmatpush1.bf16.msra.mxu0 0
      %625 = vmatprep.subr.bf16.mxu0 0
      %626 = vmatpush1.bf16.msra.mxu0 0
      %627 = vmatprep.subr.bf16.mxu0 0
      %628 = vmatpush1.bf16.msra.mxu0 0
      %629 = vmatprep.subr.bf16.mxu0 0
      %630 = vmatpush1.bf16.msra.mxu0 0
      %631 = vmatprep.subr.bf16.mxu0 0
      %632 = vmatpush1.bf16.msra.mxu0 0
      %633 = vmatprep.subr.bf16.mxu0 0
      %634 = vmatpush1.bf16.msra.mxu0 0
      %635 = vmatprep.subr.bf16.mxu0 0
      %636 = vmatpush1.bf16.msra.mxu0 0
      %637 = vmatprep.subr.bf16.mxu0 0
      %638 = vmatpush1.bf16.msra.mxu0 0
      %639 = vmatprep.subr.bf16.mxu0 0
      %640 = vmatpush1.bf16.msra.mxu0 0
      %641 = vmatprep.subr.bf16.mxu0 0
      %642 = vmatpush1.bf16.msra.mxu0 0
      %643 = vmatprep.subr.bf16.mxu0 0
      %644 = vmatpush1.bf16.msra.mxu0 0
      %645 = vmatprep.subr.bf16.mxu0 0
      %646 = vmatpush1.bf16.msra.mxu0 0
      %647 = vmatprep.subr.bf16.mxu0 0
      %648 = vmatpush1.bf16.msra.mxu0 0
      %649 = vmatprep.subr.bf16.mxu0 0
      %650 = vmatpush1.bf16.msra.mxu0 0
      %651 = vmatprep.subr.bf16.mxu0 0
      %652 = vmatpush1.bf16.msra.mxu0 0
      %653 = vmatprep.mubr.bf16.mxu0 0
      %654 = vmatmul.mubr.bf16.gmra.mrb[0].mxu0 %v615
      %v655 = vpop.f32.mrb[0].mxu0
      %v656 = vadd.f32 0.0, %v655
      %v657 = vpop.f32.mrb[0].mxu0
      %v658 = vpop.f32.mrb[0].mxu0
      %v659 = vadd.f32 0.0, %v658
      %v660 = vpop.f32.mrb[0].mxu0
      %661 = vdwg.mxu0
      %v664 = vcombine.high %v656, %v656
      %v666 = vunpack.c.l.s4 1983009808
      %v667 = vunpack.c.0.s8 %v666
      %v668 = vlaneseq
      %v669 = vshrl.u32 %v668, 7
      %v670 = vsub.s32 %v667, %v669
      %v671 = vrot.slane %v656, %v670
      %v673 = vunpack.c.l.s4 1983009808
      %v674 = vunpack.c.0.s8 %v673
      %v675 = vlaneseq
      %v676 = vshrl.u32 %v675, 7
      %v677 = vsub.s32 %v674, %v676
      %v678 = vrot.slane %v664, %v677
      %v679 = vcombine.high %v671, %v671
      %v680 = vcombine.high %v678, %v678
      %v681 = vcombine.high %v659, %v659
      %v683 = vunpack.c.l.s4 1983009808
      %v684 = vunpack.c.0.s8 %v683
      %v685 = vlaneseq
      %v686 = vshrl.u32 %v685, 7
      %v687 = vsub.s32 %v684, %v686
      %v688 = vrot.slane %v659, %v687
      %v690 = vunpack.c.l.s4 1983009808
      %v691 = vunpack.c.0.s8 %v690
      %v692 = vlaneseq
      %v693 = vshrl.u32 %v692, 7
      %v694 = vsub.s32 %v691, %v693
      %v695 = vrot.slane %v681, %v694
      %v696 = vcombine.high %v688, %v688
      %v697 = vcombine.high %v695, %v695
      %v706 = vld [vmem:[%s2] sm:$0x3]
      %v707 = vadd.f32 %v671, %v706
      %v708 = vadd.f32 %v679, %v706
      %v709 = vadd.f32 %v678, %v706
      %v710 = vadd.f32 %v680, %v706
      %v711 = vadd.f32 %v688, %v706
      %v712 = vadd.f32 %v696, %v706
      %v713 = vadd.f32 %v695, %v706
      %v714 = vadd.f32 %v697, %v706
      %v715 = vld [vmem:[%s3] sm:$0xf]
      %v716 = vld [vmem:[%s3 + $0x4] sm:$0xf]
      %v717 = vld [vmem:[%s3 + $0x8] sm:$0xf]
      %v718 = vld [vmem:[%s3 + $0xc] sm:$0xf]
      %v727 = vcombine.low %v707, %v708
      %v728 = vcombine.low %v709, %v710
      %v730 = vunpack.c.l.s4 1983009808
      %v731 = vunpack.c.0.s8 %v730
      %v732 = vlaneseq
      %v733 = vshrl.u32 %v732, 7
      %v734 = vsub.s32 %v731, %v733
      %v735 = vrot.slane %v727, %v734
      %v737 = vunpack.c.l.s4 1983009808
      %v738 = vunpack.c.0.s8 %v737
      %v739 = vlaneseq
      %v740 = vshrl.u32 %v739, 7
      %v741 = vsub.s32 %v738, %v740
      %v742 = vrot.slane %v728, %v741
      %v743 = vcombine.low %v735, %v742
      %v744 = vcombine.low %v711, %v712
      %v745 = vcombine.low %v713, %v714
      %v747 = vunpack.c.l.s4 1983009808
      %v748 = vunpack.c.0.s8 %v747
      %v749 = vlaneseq
      %v750 = vshrl.u32 %v749, 7
      %v751 = vsub.s32 %v748, %v750
      %v752 = vrot.slane %v744, %v751
      %v754 = vunpack.c.l.s4 1983009808
      %v755 = vunpack.c.0.s8 %v754
      %v756 = vlaneseq
      %v757 = vshrl.u32 %v756, 7
      %v758 = vsub.s32 %v755, %v757
      %v759 = vrot.slane %v745, %v758
      %v760 = vcombine.low %v752, %v759
      %v763 = vpack.c.bf16 %v760, %v743
      %v764 = vld [vmem:[%s4] sm:$0x1]
      %v766 = vlaneseq
      %v767 = vshrl.u32 %v766, 7
      %v768 = vsub.s32 0, %v767
      %v769 = vrot.slane %v764, %v768
      %v775 = vunpack.c.l.b16 %v715
      %v776 = vunpack.c.l.b16 %v716
      %v777 = vunpack.c.l.b16 %v717
      %v778 = vunpack.c.l.b16 %v718
      %v779 = vpack.c.b16 %v776, %v775
      %v780 = vpack.c.b16 %v778, %v777
      %vm783 = vcmask 261120
      %v785 = vsel %vm783, %v763, 0
      %787 = vmatprep.subr.bf16.mxu0 0
      %788 = vmatpush1.bf16.msra.mxu0 %v779
      %789 = vmatprep.subr.bf16.mxu0 0
      %790 = vmatpush1.bf16.msra.mxu0 %v780
      %791 = vmatprep.subr.bf16.mxu0 0
      %792 = vmatpush1.bf16.msra.mxu0 0
      %793 = vmatprep.subr.bf16.mxu0 0
      %794 = vmatpush1.bf16.msra.mxu0 0
      %795 = vmatprep.subr.bf16.mxu0 0
      %796 = vmatpush1.bf16.msra.mxu0 0
      %797 = vmatprep.subr.bf16.mxu0 0
      %798 = vmatpush1.bf16.msra.mxu0 0
      %799 = vmatprep.subr.bf16.mxu0 0
      %800 = vmatpush1.bf16.msra.mxu0 0
      %801 = vmatprep.subr.bf16.mxu0 0
      %802 = vmatpush1.bf16.msra.mxu0 0
      %803 = vmatprep.subr.bf16.mxu0 0
      %804 = vmatpush1.bf16.msra.mxu0 0
      %805 = vmatprep.subr.bf16.mxu0 0
      %806 = vmatpush1.bf16.msra.mxu0 0
      %807 = vmatprep.subr.bf16.mxu0 0
      %808 = vmatpush1.bf16.msra.mxu0 0
      %809 = vmatprep.subr.bf16.mxu0 0
      %810 = vmatpush1.bf16.msra.mxu0 0
      %811 = vmatprep.subr.bf16.mxu0 0
      %812 = vmatpush1.bf16.msra.mxu0 0
      %813 = vmatprep.subr.bf16.mxu0 0
      %814 = vmatpush1.bf16.msra.mxu0 0
      %815 = vmatprep.subr.bf16.mxu0 0
      %816 = vmatpush1.bf16.msra.mxu0 0
      %817 = vmatprep.subr.bf16.mxu0 0
      %818 = vmatpush1.bf16.msra.mxu0 0
      %819 = vmatprep.mubr.bf16.mxu0 0
      %820 = vmatmul.mubr.bf16.gmra.mrb[0].mxu0 %v785
      %v821 = vpop.f32.mrb[0].mxu0
      %v822 = vadd.f32 %v769, %v821
      %v823 = vpop.f32.mrb[0].mxu0
      %v824 = vpop.f32.mrb[0].mxu0
      %v825 = vadd.f32 %v769, %v824
      %v826 = vpop.f32.mrb[0].mxu0
      %827 = vdwg.mxu0
      %v830 = vcombine.high %v822, %v822
      %v832 = vunpack.c.l.s4 1983009808
      %v833 = vunpack.c.0.s8 %v832
      %v834 = vlaneseq
      %v835 = vshrl.u32 %v834, 7
      %v836 = vsub.s32 %v833, %v835
      %v837 = vrot.slane %v822, %v836
      %v839 = vunpack.c.l.s4 1983009808
      %v840 = vunpack.c.0.s8 %v839
      %v841 = vlaneseq
      %v842 = vshrl.u32 %v841, 7
      %v843 = vsub.s32 %v840, %v842
      %v844 = vrot.slane %v830, %v843
      %v845 = vcombine.high %v837, %v837
      %v846 = vcombine.high %v844, %v844
      %v847 = vcombine.high %v825, %v825
      %v849 = vunpack.c.l.s4 1983009808
      %v850 = vunpack.c.0.s8 %v849
      %v851 = vlaneseq
      %v852 = vshrl.u32 %v851, 7
      %v853 = vsub.s32 %v850, %v852
      %v854 = vrot.slane %v825, %v853
      %v856 = vunpack.c.l.s4 1983009808
      %v857 = vunpack.c.0.s8 %v856
      %v858 = vlaneseq
      %v859 = vshrl.u32 %v858, 7
      %v860 = vsub.s32 %v857, %v859
      %v861 = vrot.slane %v847, %v860
      %v862 = vcombine.high %v854, %v854
      %v863 = vcombine.high %v861, %v861
      %872 = vrot.lane.b32.xlu0 %v837, 120
      %v873 = vpop.permute.xlu0 %872
      %874 = vrot.lane.b32.xlu0 %v845, 120
      %v875 = vpop.permute.xlu0 %874
      %876 = vrot.lane.b32.xlu0 %v844, 120
      %v877 = vpop.permute.xlu0 %876
      %878 = vrot.lane.b32.xlu0 %v846, 120
      %v879 = vpop.permute.xlu0 %878
      %880 = vrot.lane.b32.xlu0 %v854, 120
      %v881 = vpop.permute.xlu0 %880
      %882 = vrot.lane.b32.xlu0 %v862, 120
      %v883 = vpop.permute.xlu0 %882
      %884 = vrot.lane.b32.xlu0 %v861, 120
      %v885 = vpop.permute.xlu0 %884
      %886 = vrot.lane.b32.xlu0 %v863, 120
      %v887 = vpop.permute.xlu0 %886
      %896 = vrot.lane.b32.xlu0 %v837, 112
      %v897 = vpop.permute.xlu0 %896
      %898 = vrot.lane.b32.xlu0 %v845, 112
      %v899 = vpop.permute.xlu0 %898
      %900 = vrot.lane.b32.xlu0 %v844, 112
      %v901 = vpop.permute.xlu0 %900
      %902 = vrot.lane.b32.xlu0 %v846, 112
      %v903 = vpop.permute.xlu0 %902
      %904 = vrot.lane.b32.xlu0 %v854, 112
      %v905 = vpop.permute.xlu0 %904
      %906 = vrot.lane.b32.xlu0 %v862, 112
      %v907 = vpop.permute.xlu0 %906
      %908 = vrot.lane.b32.xlu0 %v861, 112
      %v909 = vpop.permute.xlu0 %908
      %910 = vrot.lane.b32.xlu0 %v863, 112
      %v911 = vpop.permute.xlu0 %910
      %920 = vrot.lane.b32.xlu0 %v837, 104
      %v921 = vpop.permute.xlu0 %920
      %922 = vrot.lane.b32.xlu0 %v845, 104
      %v923 = vpop.permute.xlu0 %922
      %924 = vrot.lane.b32.xlu0 %v844, 104
      %v925 = vpop.permute.xlu0 %924
      %926 = vrot.lane.b32.xlu0 %v846, 104
      %v927 = vpop.permute.xlu0 %926
      %928 = vrot.lane.b32.xlu0 %v854, 104
      %v929 = vpop.permute.xlu0 %928
      %930 = vrot.lane.b32.xlu0 %v862, 104
      %v931 = vpop.permute.xlu0 %930
      %932 = vrot.lane.b32.xlu0 %v861, 104
      %v933 = vpop.permute.xlu0 %932
      %934 = vrot.lane.b32.xlu0 %v863, 104
      %v935 = vpop.permute.xlu0 %934
      %v944 = vpack.c.bf16 %v837, %v837
      %v945 = vpack.c.bf16 %v845, %v845
      %v946 = vpack.c.bf16 %v844, %v844
      %v947 = vpack.c.bf16 %v846, %v846
      %v948 = vpack.c.bf16 %v854, %v854
      %v949 = vpack.c.bf16 %v862, %v862
      %v950 = vpack.c.bf16 %v861, %v861
      %v951 = vpack.c.bf16 %v863, %v863
      %v952 = vpack.c.bf16 %v873, %v873
      %v953 = vpack.c.bf16 %v875, %v875
      %v954 = vpack.c.bf16 %v877, %v877
      %v955 = vpack.c.bf16 %v879, %v879
      %v956 = vpack.c.bf16 %v881, %v881
      %v957 = vpack.c.bf16 %v883, %v883
      %v958 = vpack.c.bf16 %v885, %v885
      %v959 = vpack.c.bf16 %v887, %v887
      %v960 = vpack.c.bf16 %v897, %v897
      %v961 = vpack.c.bf16 %v899, %v899
      %v962 = vpack.c.bf16 %v901, %v901
      %v963 = vpack.c.bf16 %v903, %v903
      %v964 = vpack.c.bf16 %v905, %v905
      %v965 = vpack.c.bf16 %v907, %v907
      %v966 = vpack.c.bf16 %v909, %v909
      %v967 = vpack.c.bf16 %v911, %v911
      %v968 = vpack.c.bf16 %v921, %v921
      %v969 = vpack.c.bf16 %v923, %v923
      %v970 = vpack.c.bf16 %v925, %v925
      %v971 = vpack.c.bf16 %v927, %v927
      %v972 = vpack.c.bf16 %v929, %v929
      %v973 = vpack.c.bf16 %v931, %v931
      %v974 = vpack.c.bf16 %v933, %v933
      %v975 = vpack.c.bf16 %v935, %v935
      %977 = vrot.lane.b32.xlu0 %v944, 96
      %v978 = vpop.permute.xlu0 %977
      %v980 = vsel %vm613, %v944, 0
      %v983 = vsel %vm613, %v978, 0
      %985 = vmatprep.subr.bf16.mxu0 0
      %986 = vmatpush1.bf16.xpose.msra.mxu0 %v983
      %987 = vmatprep.subr.bf16.mxu0 0
      %988 = vmatpush1.bf16.xpose.msra.mxu0 0
      %989 = vmatprep.subr.bf16.mxu0 0
      %990 = vmatpush1.bf16.xpose.msra.mxu0 0
      %991 = vmatprep.subr.bf16.mxu0 0
      %992 = vmatpush1.bf16.xpose.msra.mxu0 0
      %993 = vmatprep.subr.bf16.mxu0 0
      %994 = vmatpush1.bf16.xpose.msra.mxu0 0
      %995 = vmatprep.subr.bf16.mxu0 0
      %996 = vmatpush1.bf16.xpose.msra.mxu0 0
      %997 = vmatprep.subr.bf16.mxu0 0
      %998 = vmatpush1.bf16.xpose.msra.mxu0 0
      %999 = vmatprep.subr.bf16.mxu0 0
      %1000 = vmatpush1.bf16.xpose.msra.mxu0 0
      %1001 = vmatprep.subr.bf16.mxu0 0
      %1002 = vmatpush1.bf16.xpose.msra.mxu0 0
      %1003 = vmatprep.subr.bf16.mxu0 0
      %1004 = vmatpush1.bf16.xpose.msra.mxu0 0
      %1005 = vmatprep.subr.bf16.mxu0 0
      %1006 = vmatpush1.bf16.xpose.msra.mxu0 0
      %1007 = vmatprep.subr.bf16.mxu0 0
      %1008 = vmatpush1.bf16.xpose.msra.mxu0 0
      %1009 = vmatprep.subr.bf16.mxu0 0
      %1010 = vmatpush1.bf16.xpose.msra.mxu0 0
      %1011 = vmatprep.subr.bf16.mxu0 0
      %1012 = vmatpush1.bf16.xpose.msra.mxu0 0
      %1013 = vmatprep.subr.bf16.mxu0 0
      %1014 = vmatpush1.bf16.xpose.msra.mxu0 0
      %1015 = vmatprep.subr.bf16.mxu0 0
      %1016 = vmatpush1.bf16.xpose.msra.mxu0 0
      %1017 = vmatprep.mubr.bf16.mxu0 0
      %1018 = vmatmul.mubr.bf16.gmra.mrb[0].mxu0 %v980
      %v1019 = vpop.f32.mrb[0].mxu0
      %v1020 = vadd.f32 0.0, %v1019
      %v1021 = vpop.f32.mrb[0].mxu0
      %v1022 = vpop.f32.mrb[0].mxu0
      %v1023 = vpop.f32.mrb[0].mxu0
      %1024 = vdwg.mxu0
      %1026 = vrot.lane.b32.xlu0 %v945, 96
      %v1027 = vpop.permute.xlu0 %1026
      %v1029 = vsel %vm613, %v945, 0
      %v1032 = vsel %vm613, %v1027, 0
      %1034 = vmatprep.subr.bf16.mxu0 0
      %1035 = vmatpush1.bf16.xpose.msra.mxu0 %v1032
      %1036 = vmatprep.subr.bf16.mxu0 0
      %1037 = vmatpush1.bf16.xpose.msra.mxu0 0
      %1038 = vmatprep.subr.bf16.mxu0 0
      %1039 = vmatpush1.bf16.xpose.msra.mxu0 0
      %1040 = vmatprep.subr.bf16.mxu0 0
      %1041 = vmatpush1.bf16.xpose.msra.mxu0 0
      %1042 = vmatprep.subr.bf16.mxu0 0
      %1043 = vmatpush1.bf16.xpose.msra.mxu0 0
      %1044 = vmatprep.subr.bf16.mxu0 0
      %1045 = vmatpush1.bf16.xpose.msra.mxu0 0
      %1046 = vmatprep.subr.bf16.mxu0 0
      %1047 = vmatpush1.bf16.xpose.msra.mxu0 0
      %1048 = vmatprep.subr.bf16.mxu0 0
      %1049 = vmatpush1.bf16.xpose.msra.mxu0 0
      %1050 = vmatprep.subr.bf16.mxu0 0
      %1051 = vmatpush1.bf16.xpose.msra.mxu0 0
      %1052 = vmatprep.subr.bf16.mxu0 0
      %1053 = vmatpush1.bf16.xpose.msra.mxu0 0
      %1054 = vmatprep.subr.bf16.mxu0 0
      %1055 = vmatpush1.bf16.xpose.msra.mxu0 0
      %1056 = vmatprep.subr.bf16.mxu0 0
      %1057 = vmatpush1.bf16.xpose.msra.mxu0 0
      %1058 = vmatprep.subr.bf16.mxu0 0
      %1059 = vmatpush1.bf16.xpose.msra.mxu0 0
      %1060 = vmatprep.subr.bf16.mxu0 0
      %1061 = vmatpush1.bf16.xpose.msra.mxu0 0
      %1062 = vmatprep.subr.bf16.mxu0 0
      %1063 = vmatpush1.bf16.xpose.msra.mxu0 0
      %1064 = vmatprep.subr.bf16.mxu0 0
      %1065 = vmatpush1.bf16.xpose.msra.mxu0 0
      %1066 = vmatprep.mubr.bf16.mxu0 0
      %1067 = vmatmul.mubr.bf16.gmra.mrb[0].mxu0 %v1029
      %v1068 = vpop.f32.mrb[0].mxu0
      %v1069 = vadd.f32 0.0, %v1068
      %v1070 = vpop.f32.mrb[0].mxu0
      %v1071 = vpop.f32.mrb[0].mxu0
      %v1072 = vpop.f32.mrb[0].mxu0
      %1073 = vdwg.mxu0
      %1075 = vrot.lane.b32.xlu0 %v946, 96
      %v1076 = vpop.permute.xlu0 %1075
      %v1078 = vsel %vm613, %v946, 0
      %v1081 = vsel %vm613, %v1076, 0
      %1083 = vmatprep.subr.bf16.mxu0 0
      %1084 = vmatpush1.bf16.xpose.msra.mxu0 %v1081
      %1085 = vmatprep.subr.bf16.mxu0 0
      %1086 = vmatpush1.bf16.xpose.msra.mxu0 0
      %1087 = vmatprep.subr.bf16.mxu0 0
      %1088 = vmatpush1.bf16.xpose.msra.mxu0 0
      %1089 = vmatprep.subr.bf16.mxu0 0
      %1090 = vmatpush1.bf16.xpose.msra.mxu0 0
      %1091 = vmatprep.subr.bf16.mxu0 0
      %1092 = vmatpush1.bf16.xpose.msra.mxu0 0
      %1093 = vmatprep.subr.bf16.mxu0 0
      %1094 = vmatpush1.bf16.xpose.msra.mxu0 0
      %1095 = vmatprep.subr.bf16.mxu0 0
      %1096 = vmatpush1.bf16.xpose.msra.mxu0 0
      %1097 = vmatprep.subr.bf16.mxu0 0
      %1098 = vmatpush1.bf16.xpose.msra.mxu0 0
      %1099 = vmatprep.subr.bf16.mxu0 0
      %1100 = vmatpush1.bf16.xpose.msra.mxu0 0
      %1101 = vmatprep.subr.bf16.mxu0 0
      %1102 = vmatpush1.bf16.xpose.msra.mxu0 0
      %1103 = vmatprep.subr.bf16.mxu0 0
      %1104 = vmatpush1.bf16.xpose.msra.mxu0 0
      %1105 = vmatprep.subr.bf16.mxu0 0
      %1106 = vmatpush1.bf16.xpose.msra.mxu0 0
      %1107 = vmatprep.subr.bf16.mxu0 0
      %1108 = vmatpush1.bf16.xpose.msra.mxu0 0
      %1109 = vmatprep.subr.bf16.mxu0 0
      %1110 = vmatpush1.bf16.xpose.msra.mxu0 0
      %1111 = vmatprep.subr.bf16.mxu0 0
      %1112 = vmatpush1.bf16.xpose.msra.mxu0 0
      %1113 = vmatprep.subr.bf16.mxu0 0
      %1114 = vmatpush1.bf16.xpose.msra.mxu0 0
      %1115 = vmatprep.mubr.bf16.mxu0 0
      %1116 = vmatmul.mubr.bf16.gmra.mrb[0].mxu0 %v1078
      %v1117 = vpop.f32.mrb[0].mxu0
      %v1118 = vadd.f32 0.0, %v1117
      %v1119 = vpop.f32.mrb[0].mxu0
      %v1120 = vpop.f32.mrb[0].mxu0
      %v1121 = vpop.f32.mrb[0].mxu0
      %1122 = vdwg.mxu0
      %1124 = vrot.lane.b32.xlu0 %v947, 96
      %v1125 = vpop.permute.xlu0 %1124
      %v1127 = vsel %vm613, %v947, 0
      %v1130 = vsel %vm613, %v1125, 0
      %1132 = vmatprep.subr.bf16.mxu0 0
      %1133 = vmatpush1.bf16.xpose.msra.mxu0 %v1130
      %1134 = vmatprep.subr.bf16.mxu0 0
      %1135 = vmatpush1.bf16.xpose.msra.mxu0 0
      %1136 = vmatprep.subr.bf16.mxu0 0
      %1137 = vmatpush1.bf16.xpose.msra.mxu0 0
      %1138 = vmatprep.subr.bf16.mxu0 0
      %1139 = vmatpush1.bf16.xpose.msra.mxu0 0
      %1140 = vmatprep.subr.bf16.mxu0 0
      %1141 = vmatpush1.bf16.xpose.msra.mxu0 0
      %1142 = vmatprep.subr.bf16.mxu0 0
      %1143 = vmatpush1.bf16.xpose.msra.mxu0 0
      %1144 = vmatprep.subr.bf16.mxu0 0
      %1145 = vmatpush1.bf16.xpose.msra.mxu0 0
      %1146 = vmatprep.subr.bf16.mxu0 0
      %1147 = vmatpush1.bf16.xpose.msra.mxu0 0
      %1148 = vmatprep.subr.bf16.mxu0 0
      %1149 = vmatpush1.bf16.xpose.msra.mxu0 0
      %1150 = vmatprep.subr.bf16.mxu0 0
      %1151 = vmatpush1.bf16.xpose.msra.mxu0 0
      %1152 = vmatprep.subr.bf16.mxu0 0
      %1153 = vmatpush1.bf16.xpose.msra.mxu0 0
      %1154 = vmatprep.subr.bf16.mxu0 0
      %1155 = vmatpush1.bf16.xpose.msra.mxu0 0
      %1156 = vmatprep.subr.bf16.mxu0 0
      %1157 = vmatpush1.bf16.xpose.msra.mxu0 0
      %1158 = vmatprep.subr.bf16.mxu0 0
      %1159 = vmatpush1.bf16.xpose.msra.mxu0 0
      %1160 = vmatprep.subr.bf16.mxu0 0
      %1161 = vmatpush1.bf16.xpose.msra.mxu0 0
      %1162 = vmatprep.subr.bf16.mxu0 0
      %1163 = vmatpush1.bf16.xpose.msra.mxu0 0
      %1164 = vmatprep.mubr.bf16.mxu0 0
      %1165 = vmatmul.mubr.bf16.gmra.mrb[0].mxu0 %v1127
      %v1166 = vpop.f32.mrb[0].mxu0
      %v1167 = vadd.f32 0.0, %v1166
      %v1168 = vpop.f32.mrb[0].mxu0
      %v1169 = vpop.f32.mrb[0].mxu0
      %v1170 = vpop.f32.mrb[0].mxu0
      %1171 = vdwg.mxu0
      %1173 = vrot.lane.b32.xlu0 %v948, 96
      %v1174 = vpop.permute.xlu0 %1173
      %v1176 = vsel %vm613, %v948, 0
      %v1179 = vsel %vm613, %v1174, 0
      %1181 = vmatprep.subr.bf16.mxu0 0
      %1182 = vmatpush1.bf16.xpose.msra.mxu0 %v1179
      %1183 = vmatprep.subr.bf16.mxu0 0
      %1184 = vmatpush1.bf16.xpose.msra.mxu0 0
      %1185 = vmatprep.subr.bf16.mxu0 0
      %1186 = vmatpush1.bf16.xpose.msra.mxu0 0
      %1187 = vmatprep.subr.bf16.mxu0 0
      %1188 = vmatpush1.bf16.xpose.msra.mxu0 0
      %1189 = vmatprep.subr.bf16.mxu0 0
      %1190 = vmatpush1.bf16.xpose.msra.mxu0 0
      %1191 = vmatprep.subr.bf16.mxu0 0
      %1192 = vmatpush1.bf16.xpose.msra.mxu0 0
      %1193 = vmatprep.subr.bf16.mxu0 0
      %1194 = vmatpush1.bf16.xpose.msra.mxu0 0
      %1195 = vmatprep.subr.bf16.mxu0 0
      %1196 = vmatpush1.bf16.xpose.msra.mxu0 0
      %1197 = vmatprep.subr.bf16.mxu0 0
      %1198 = vmatpush1.bf16.xpose.msra.mxu0 0
      %1199 = vmatprep.subr.bf16.mxu0 0
      %1200 = vmatpush1.bf16.xpose.msra.mxu0 0
      %1201 = vmatprep.subr.bf16.mxu0 0
      %1202 = vmatpush1.bf16.xpose.msra.mxu0 0
      %1203 = vmatprep.subr.bf16.mxu0 0
      %1204 = vmatpush1.bf16.xpose.msra.mxu0 0
      %1205 = vmatprep.subr.bf16.mxu0 0
      %1206 = vmatpush1.bf16.xpose.msra.mxu0 0
      %1207 = vmatprep.subr.bf16.mxu0 0
      %1208 = vmatpush1.bf16.xpose.msra.mxu0 0
      %1209 = vmatprep.subr.bf16.mxu0 0
      %1210 = vmatpush1.bf16.xpose.msra.mxu0 0
      %1211 = vmatprep.subr.bf16.mxu0 0
      %1212 = vmatpush1.bf16.xpose.msra.mxu0 0
      %1213 = vmatprep.mubr.bf16.mxu0 0
      %1214 = vmatmul.mubr.bf16.gmra.mrb[0].mxu0 %v1176
      %v1215 = vpop.f32.mrb[0].mxu0
      %v1216 = vadd.f32 0.0, %v1215
      %v1217 = vpop.f32.mrb[0].mxu0
      %v1218 = vpop.f32.mrb[0].mxu0
      %v1219 = vpop.f32.mrb[0].mxu0
      %1220 = vdwg.mxu0
      %1222 = vrot.lane.b32.xlu0 %v949, 96
      %v1223 = vpop.permute.xlu0 %1222
      %v1225 = vsel %vm613, %v949, 0
      %v1228 = vsel %vm613, %v1223, 0
      %1230 = vmatprep.subr.bf16.mxu0 0
      %1231 = vmatpush1.bf16.xpose.msra.mxu0 %v1228
      %1232 = vmatprep.subr.bf16.mxu0 0
      %1233 = vmatpush1.bf16.xpose.msra.mxu0 0
      %1234 = vmatprep.subr.bf16.mxu0 0
      %1235 = vmatpush1.bf16.xpose.msra.mxu0 0
      %1236 = vmatprep.subr.bf16.mxu0 0
      %1237 = vmatpush1.bf16.xpose.msra.mxu0 0
      %1238 = vmatprep.subr.bf16.mxu0 0
      %1239 = vmatpush1.bf16.xpose.msra.mxu0 0
      %1240 = vmatprep.subr.bf16.mxu0 0
      %1241 = vmatpush1.bf16.xpose.msra.mxu0 0
      %1242 = vmatprep.subr.bf16.mxu0 0
      %1243 = vmatpush1.bf16.xpose.msra.mxu0 0
      %1244 = vmatprep.subr.bf16.mxu0 0
      %1245 = vmatpush1.bf16.xpose.msra.mxu0 0
      %1246 = vmatprep.subr.bf16.mxu0 0
      %1247 = vmatpush1.bf16.xpose.msra.mxu0 0
      %1248 = vmatprep.subr.bf16.mxu0 0
      %1249 = vmatpush1.bf16.xpose.msra.mxu0 0
      %1250 = vmatprep.subr.bf16.mxu0 0
      %1251 = vmatpush1.bf16.xpose.msra.mxu0 0
      %1252 = vmatprep.subr.bf16.mxu0 0
      %1253 = vmatpush1.bf16.xpose.msra.mxu0 0
      %1254 = vmatprep.subr.bf16.mxu0 0
      %1255 = vmatpush1.bf16.xpose.msra.mxu0 0
      %1256 = vmatprep.subr.bf16.mxu0 0
      %1257 = vmatpush1.bf16.xpose.msra.mxu0 0
      %1258 = vmatprep.subr.bf16.mxu0 0
      %1259 = vmatpush1.bf16.xpose.msra.mxu0 0
      %1260 = vmatprep.subr.bf16.mxu0 0
      %1261 = vmatpush1.bf16.xpose.msra.mxu0 0
      %1262 = vmatprep.mubr.bf16.mxu0 0
      %1263 = vmatmul.mubr.bf16.gmra.mrb[0].mxu0 %v1225
      %v1264 = vpop.f32.mrb[0].mxu0
      %v1265 = vadd.f32 0.0, %v1264
      %v1266 = vpop.f32.mrb[0].mxu0
      %v1267 = vpop.f32.mrb[0].mxu0
      %v1268 = vpop.f32.mrb[0].mxu0
      %1269 = vdwg.mxu0
      %1271 = vrot.lane.b32.xlu0 %v950, 96
      %v1272 = vpop.permute.xlu0 %1271
      %v1274 = vsel %vm613, %v950, 0
      %v1277 = vsel %vm613, %v1272, 0
      %1279 = vmatprep.subr.bf16.mxu0 0
      %1280 = vmatpush1.bf16.xpose.msra.mxu0 %v1277
      %1281 = vmatprep.subr.bf16.mxu0 0
      %1282 = vmatpush1.bf16.xpose.msra.mxu0 0
      %1283 = vmatprep.subr.bf16.mxu0 0
      %1284 = vmatpush1.bf16.xpose.msra.mxu0 0
      %1285 = vmatprep.subr.bf16.mxu0 0
      %1286 = vmatpush1.bf16.xpose.msra.mxu0 0
      %1287 = vmatprep.subr.bf16.mxu0 0
      %1288 = vmatpush1.bf16.xpose.msra.mxu0 0
      %1289 = vmatprep.subr.bf16.mxu0 0
      %1290 = vmatpush1.bf16.xpose.msra.mxu0 0
      %1291 = vmatprep.subr.bf16.mxu0 0
      %1292 = vmatpush1.bf16.xpose.msra.mxu0 0
      %1293 = vmatprep.subr.bf16.mxu0 0
      %1294 = vmatpush1.bf16.xpose.msra.mxu0 0
      %1295 = vmatprep.subr.bf16.mxu0 0
      %1296 = vmatpush1.bf16.xpose.msra.mxu0 0
      %1297 = vmatprep.subr.bf16.mxu0 0
      %1298 = vmatpush1.bf16.xpose.msra.mxu0 0
      %1299 = vmatprep.subr.bf16.mxu0 0
      %1300 = vmatpush1.bf16.xpose.msra.mxu0 0
      %1301 = vmatprep.subr.bf16.mxu0 0
      %1302 = vmatpush1.bf16.xpose.msra.mxu0 0
      %1303 = vmatprep.subr.bf16.mxu0 0
      %1304 = vmatpush1.bf16.xpose.msra.mxu0 0
      %1305 = vmatprep.subr.bf16.mxu0 0
      %1306 = vmatpush1.bf16.xpose.msra.mxu0 0
      %1307 = vmatprep.subr.bf16.mxu0 0
      %1308 = vmatpush1.bf16.xpose.msra.mxu0 0
      %1309 = vmatprep.subr.bf16.mxu0 0
      %1310 = vmatpush1.bf16.xpose.msra.mxu0 0
      %1311 = vmatprep.mubr.bf16.mxu0 0
      %1312 = vmatmul.mubr.bf16.gmra.mrb[0].mxu0 %v1274
      %v1313 = vpop.f32.mrb[0].mxu0
      %v1314 = vadd.f32 0.0, %v1313
      %v1315 = vpop.f32.mrb[0].mxu0
      %v1316 = vpop.f32.mrb[0].mxu0
      %v1317 = vpop.f32.mrb[0].mxu0
      %1318 = vdwg.mxu0
      %1320 = vrot.lane.b32.xlu0 %v951, 96
      %v1321 = vpop.permute.xlu0 %1320
      %v1323 = vsel %vm613, %v951, 0
      %v1326 = vsel %vm613, %v1321, 0
      %1328 = vmatprep.subr.bf16.mxu0 0
      %1329 = vmatpush1.bf16.xpose.msra.mxu0 %v1326
      %1330 = vmatprep.subr.bf16.mxu0 0
      %1331 = vmatpush1.bf16.xpose.msra.mxu0 0
      %1332 = vmatprep.subr.bf16.mxu0 0
      %1333 = vmatpush1.bf16.xpose.msra.mxu0 0
      %1334 = vmatprep.subr.bf16.mxu0 0
      %1335 = vmatpush1.bf16.xpose.msra.mxu0 0
      %1336 = vmatprep.subr.bf16.mxu0 0
      %1337 = vmatpush1.bf16.xpose.msra.mxu0 0
      %1338 = vmatprep.subr.bf16.mxu0 0
      %1339 = vmatpush1.bf16.xpose.msra.mxu0 0
      %1340 = vmatprep.subr.bf16.mxu0 0
      %1341 = vmatpush1.bf16.xpose.msra.mxu0 0
      %1342 = vmatprep.subr.bf16.mxu0 0
      %1343 = vmatpush1.bf16.xpose.msra.mxu0 0
      %1344 = vmatprep.subr.bf16.mxu0 0
      %1345 = vmatpush1.bf16.xpose.msra.mxu0 0
      %1346 = vmatprep.subr.bf16.mxu0 0
      %1347 = vmatpush1.bf16.xpose.msra.mxu0 0
      %1348 = vmatprep.subr.bf16.mxu0 0
      %1349 = vmatpush1.bf16.xpose.msra.mxu0 0
      %1350 = vmatprep.subr.bf16.mxu0 0
      %1351 = vmatpush1.bf16.xpose.msra.mxu0 0
      %1352 = vmatprep.subr.bf16.mxu0 0
      %1353 = vmatpush1.bf16.xpose.msra.mxu0 0
      %1354 = vmatprep.subr.bf16.mxu0 0
      %1355 = vmatpush1.bf16.xpose.msra.mxu0 0
      %1356 = vmatprep.subr.bf16.mxu0 0
      %1357 = vmatpush1.bf16.xpose.msra.mxu0 0
      %1358 = vmatprep.subr.bf16.mxu0 0
      %1359 = vmatpush1.bf16.xpose.msra.mxu0 0
      %1360 = vmatprep.mubr.bf16.mxu0 0
      %1361 = vmatmul.mubr.bf16.gmra.mrb[0].mxu0 %v1323
      %v1362 = vpop.f32.mrb[0].mxu0
      %v1363 = vadd.f32 0.0, %v1362
      %v1364 = vpop.f32.mrb[0].mxu0
      %v1365 = vpop.f32.mrb[0].mxu0
      %v1366 = vpop.f32.mrb[0].mxu0
      %1367 = vdwg.mxu0
      %1369 = vrot.lane.b32.xlu0 %v952, 96
      %v1370 = vpop.permute.xlu0 %1369
      %v1372 = vsel %vm613, %v952, 0
      %v1375 = vsel %vm613, %v1370, 0
      %1377 = vmatprep.subr.bf16.mxu0 0
      %1378 = vmatpush1.bf16.xpose.msra.mxu0 %v1375
      %1379 = vmatprep.subr.bf16.mxu0 0
      %1380 = vmatpush1.bf16.xpose.msra.mxu0 0
      %1381 = vmatprep.subr.bf16.mxu0 0
      %1382 = vmatpush1.bf16.xpose.msra.mxu0 0
      %1383 = vmatprep.subr.bf16.mxu0 0
      %1384 = vmatpush1.bf16.xpose.msra.mxu0 0
      %1385 = vmatprep.subr.bf16.mxu0 0
      %1386 = vmatpush1.bf16.xpose.msra.mxu0 0
      %1387 = vmatprep.subr.bf16.mxu0 0
      %1388 = vmatpush1.bf16.xpose.msra.mxu0 0
      %1389 = vmatprep.subr.bf16.mxu0 0
      %1390 = vmatpush1.bf16.xpose.msra.mxu0 0
      %1391 = vmatprep.subr.bf16.mxu0 0
      %1392 = vmatpush1.bf16.xpose.msra.mxu0 0
      %1393 = vmatprep.subr.bf16.mxu0 0
      %1394 = vmatpush1.bf16.xpose.msra.mxu0 0
      %1395 = vmatprep.subr.bf16.mxu0 0
      %1396 = vmatpush1.bf16.xpose.msra.mxu0 0
      %1397 = vmatprep.subr.bf16.mxu0 0
      %1398 = vmatpush1.bf16.xpose.msra.mxu0 0
      %1399 = vmatprep.subr.bf16.mxu0 0
      %1400 = vmatpush1.bf16.xpose.msra.mxu0 0
      %1401 = vmatprep.subr.bf16.mxu0 0
      %1402 = vmatpush1.bf16.xpose.msra.mxu0 0
      %1403 = vmatprep.subr.bf16.mxu0 0
      %1404 = vmatpush1.bf16.xpose.msra.mxu0 0
      %1405 = vmatprep.subr.bf16.mxu0 0
      %1406 = vmatpush1.bf16.xpose.msra.mxu0 0
      %1407 = vmatprep.subr.bf16.mxu0 0
      %1408 = vmatpush1.bf16.xpose.msra.mxu0 0
      %1409 = vmatprep.mubr.bf16.mxu0 0
      %1410 = vmatmul.mubr.bf16.gmra.mrb[0].mxu0 %v1372
      %v1411 = vpop.f32.mrb[0].mxu0
      %v1412 = vadd.f32 0.0, %v1411
      %v1413 = vpop.f32.mrb[0].mxu0
      %v1414 = vpop.f32.mrb[0].mxu0
      %v1415 = vpop.f32.mrb[0].mxu0
      %1416 = vdwg.mxu0
      %1418 = vrot.lane.b32.xlu0 %v953, 96
      %v1419 = vpop.permute.xlu0 %1418
      %v1421 = vsel %vm613, %v953, 0
      %v1424 = vsel %vm613, %v1419, 0
      %1426 = vmatprep.subr.bf16.mxu0 0
      %1427 = vmatpush1.bf16.xpose.msra.mxu0 %v1424
      %1428 = vmatprep.subr.bf16.mxu0 0
      %1429 = vmatpush1.bf16.xpose.msra.mxu0 0
      %1430 = vmatprep.subr.bf16.mxu0 0
      %1431 = vmatpush1.bf16.xpose.msra.mxu0 0
      %1432 = vmatprep.subr.bf16.mxu0 0
      %1433 = vmatpush1.bf16.xpose.msra.mxu0 0
      %1434 = vmatprep.subr.bf16.mxu0 0
      %1435 = vmatpush1.bf16.xpose.msra.mxu0 0
      %1436 = vmatprep.subr.bf16.mxu0 0
      %1437 = vmatpush1.bf16.xpose.msra.mxu0 0
      %1438 = vmatprep.subr.bf16.mxu0 0
      %1439 = vmatpush1.bf16.xpose.msra.mxu0 0
      %1440 = vmatprep.subr.bf16.mxu0 0
      %1441 = vmatpush1.bf16.xpose.msra.mxu0 0
      %1442 = vmatprep.subr.bf16.mxu0 0
      %1443 = vmatpush1.bf16.xpose.msra.mxu0 0
      %1444 = vmatprep.subr.bf16.mxu0 0
      %1445 = vmatpush1.bf16.xpose.msra.mxu0 0
      %1446 = vmatprep.subr.bf16.mxu0 0
      %1447 = vmatpush1.bf16.xpose.msra.mxu0 0
      %1448 = vmatprep.subr.bf16.mxu0 0
      %1449 = vmatpush1.bf16.xpose.msra.mxu0 0
      %1450 = vmatprep.subr.bf16.mxu0 0
      %1451 = vmatpush1.bf16.xpose.msra.mxu0 0
      %1452 = vmatprep.subr.bf16.mxu0 0
      %1453 = vmatpush1.bf16.xpose.msra.mxu0 0
      %1454 = vmatprep.subr.bf16.mxu0 0
      %1455 = vmatpush1.bf16.xpose.msra.mxu0 0
      %1456 = vmatprep.subr.bf16.mxu0 0
      %1457 = vmatpush1.bf16.xpose.msra.mxu0 0
      %1458 = vmatprep.mubr.bf16.mxu0 0
      %1459 = vmatmul.mubr.bf16.gmra.mrb[0].mxu0 %v1421
      %v1460 = vpop.f32.mrb[0].mxu0
      %v1461 = vadd.f32 0.0, %v1460
      %v1462 = vpop.f32.mrb[0].mxu0
      %v1463 = vpop.f32.mrb[0].mxu0
      %v1464 = vpop.f32.mrb[0].mxu0
      %1465 = vdwg.mxu0
      %1467 = vrot.lane.b32.xlu0 %v954, 96
      %v1468 = vpop.permute.xlu0 %1467
      %v1470 = vsel %vm613, %v954, 0
      %v1473 = vsel %vm613, %v1468, 0
      %1475 = vmatprep.subr.bf16.mxu0 0
      %1476 = vmatpush1.bf16.xpose.msra.mxu0 %v1473
      %1477 = vmatprep.subr.bf16.mxu0 0
      %1478 = vmatpush1.bf16.xpose.msra.mxu0 0
      %1479 = vmatprep.subr.bf16.mxu0 0
      %1480 = vmatpush1.bf16.xpose.msra.mxu0 0
      %1481 = vmatprep.subr.bf16.mxu0 0
      %1482 = vmatpush1.bf16.xpose.msra.mxu0 0
      %1483 = vmatprep.subr.bf16.mxu0 0
      %1484 = vmatpush1.bf16.xpose.msra.mxu0 0
      %1485 = vmatprep.subr.bf16.mxu0 0
      %1486 = vmatpush1.bf16.xpose.msra.mxu0 0
      %1487 = vmatprep.subr.bf16.mxu0 0
      %1488 = vmatpush1.bf16.xpose.msra.mxu0 0
      %1489 = vmatprep.subr.bf16.mxu0 0
      %1490 = vmatpush1.bf16.xpose.msra.mxu0 0
      %1491 = vmatprep.subr.bf16.mxu0 0
      %1492 = vmatpush1.bf16.xpose.msra.mxu0 0
      %1493 = vmatprep.subr.bf16.mxu0 0
      %1494 = vmatpush1.bf16.xpose.msra.mxu0 0
      %1495 = vmatprep.subr.bf16.mxu0 0
      %1496 = vmatpush1.bf16.xpose.msra.mxu0 0
      %1497 = vmatprep.subr.bf16.mxu0 0
      %1498 = vmatpush1.bf16.xpose.msra.mxu0 0
      %1499 = vmatprep.subr.bf16.mxu0 0
      %1500 = vmatpush1.bf16.xpose.msra.mxu0 0
      %1501 = vmatprep.subr.bf16.mxu0 0
      %1502 = vmatpush1.bf16.xpose.msra.mxu0 0
      %1503 = vmatprep.subr.bf16.mxu0 0
      %1504 = vmatpush1.bf16.xpose.msra.mxu0 0
      %1505 = vmatprep.subr.bf16.mxu0 0
      %1506 = vmatpush1.bf16.xpose.msra.mxu0 0
      %1507 = vmatprep.mubr.bf16.mxu0 0
      %1508 = vmatmul.mubr.bf16.gmra.mrb[0].mxu0 %v1470
      %v1509 = vpop.f32.mrb[0].mxu0
      %v1510 = vadd.f32 0.0, %v1509
      %v1511 = vpop.f32.mrb[0].mxu0
      %v1512 = vpop.f32.mrb[0].mxu0
      %v1513 = vpop.f32.mrb[0].mxu0
      %1514 = vdwg.mxu0
      %1516 = vrot.lane.b32.xlu0 %v955, 96
      %v1517 = vpop.permute.xlu0 %1516
      %v1519 = vsel %vm613, %v955, 0
      %v1522 = vsel %vm613, %v1517, 0
      %1524 = vmatprep.subr.bf16.mxu0 0
      %1525 = vmatpush1.bf16.xpose.msra.mxu0 %v1522
      %1526 = vmatprep.subr.bf16.mxu0 0
      %1527 = vmatpush1.bf16.xpose.msra.mxu0 0
      %1528 = vmatprep.subr.bf16.mxu0 0
      %1529 = vmatpush1.bf16.xpose.msra.mxu0 0
      %1530 = vmatprep.subr.bf16.mxu0 0
      %1531 = vmatpush1.bf16.xpose.msra.mxu0 0
      %1532 = vmatprep.subr.bf16.mxu0 0
      %1533 = vmatpush1.bf16.xpose.msra.mxu0 0
      %1534 = vmatprep.subr.bf16.mxu0 0
      %1535 = vmatpush1.bf16.xpose.msra.mxu0 0
      %1536 = vmatprep.subr.bf16.mxu0 0
      %1537 = vmatpush1.bf16.xpose.msra.mxu0 0
      %1538 = vmatprep.subr.bf16.mxu0 0
      %1539 = vmatpush1.bf16.xpose.msra.mxu0 0
      %1540 = vmatprep.subr.bf16.mxu0 0
      %1541 = vmatpush1.bf16.xpose.msra.mxu0 0
      %1542 = vmatprep.subr.bf16.mxu0 0
      %1543 = vmatpush1.bf16.xpose.msra.mxu0 0
      %1544 = vmatprep.subr.bf16.mxu0 0
      %1545 = vmatpush1.bf16.xpose.msra.mxu0 0
      %1546 = vmatprep.subr.bf16.mxu0 0
      %1547 = vmatpush1.bf16.xpose.msra.mxu0 0
      %1548 = vmatprep.subr.bf16.mxu0 0
      %1549 = vmatpush1.bf16.xpose.msra.mxu0 0
      %1550 = vmatprep.subr.bf16.mxu0 0
      %1551 = vmatpush1.bf16.xpose.msra.mxu0 0
      %1552 = vmatprep.subr.bf16.mxu0 0
      %1553 = vmatpush1.bf16.xpose.msra.mxu0 0
      %1554 = vmatprep.subr.bf16.mxu0 0
      %1555 = vmatpush1.bf16.xpose.msra.mxu0 0
      %1556 = vmatprep.mubr.bf16.mxu0 0
      %1557 = vmatmul.mubr.bf16.gmra.mrb[0].mxu0 %v1519
      %v1558 = vpop.f32.mrb[0].mxu0
      %v1559 = vadd.f32 0.0, %v1558
      %v1560 = vpop.f32.mrb[0].mxu0
      %v1561 = vpop.f32.mrb[0].mxu0
      %v1562 = vpop.f32.mrb[0].mxu0
      %1563 = vdwg.mxu0
      %1565 = vrot.lane.b32.xlu0 %v956, 96
      %v1566 = vpop.permute.xlu0 %1565
      %v1568 = vsel %vm613, %v956, 0
      %v1571 = vsel %vm613, %v1566, 0
      %1573 = vmatprep.subr.bf16.mxu0 0
      %1574 = vmatpush1.bf16.xpose.msra.mxu0 %v1571
      %1575 = vmatprep.subr.bf16.mxu0 0
      %1576 = vmatpush1.bf16.xpose.msra.mxu0 0
      %1577 = vmatprep.subr.bf16.mxu0 0
      %1578 = vmatpush1.bf16.xpose.msra.mxu0 0
      %1579 = vmatprep.subr.bf16.mxu0 0
      %1580 = vmatpush1.bf16.xpose.msra.mxu0 0
      %1581 = vmatprep.subr.bf16.mxu0 0
      %1582 = vmatpush1.bf16.xpose.msra.mxu0 0
      %1583 = vmatprep.subr.bf16.mxu0 0
      %1584 = vmatpush1.bf16.xpose.msra.mxu0 0
      %1585 = vmatprep.subr.bf16.mxu0 0
      %1586 = vmatpush1.bf16.xpose.msra.mxu0 0
      %1587 = vmatprep.subr.bf16.mxu0 0
      %1588 = vmatpush1.bf16.xpose.msra.mxu0 0
      %1589 = vmatprep.subr.bf16.mxu0 0
      %1590 = vmatpush1.bf16.xpose.msra.mxu0 0
      %1591 = vmatprep.subr.bf16.mxu0 0
      %1592 = vmatpush1.bf16.xpose.msra.mxu0 0
      %1593 = vmatprep.subr.bf16.mxu0 0
      %1594 = vmatpush1.bf16.xpose.msra.mxu0 0
      %1595 = vmatprep.subr.bf16.mxu0 0
      %1596 = vmatpush1.bf16.xpose.msra.mxu0 0
      %1597 = vmatprep.subr.bf16.mxu0 0
      %1598 = vmatpush1.bf16.xpose.msra.mxu0 0
      %1599 = vmatprep.subr.bf16.mxu0 0
      %1600 = vmatpush1.bf16.xpose.msra.mxu0 0
      %1601 = vmatprep.subr.bf16.mxu0 0
      %1602 = vmatpush1.bf16.xpose.msra.mxu0 0
      %1603 = vmatprep.subr.bf16.mxu0 0
      %1604 = vmatpush1.bf16.xpose.msra.mxu0 0
      %1605 = vmatprep.mubr.bf16.mxu0 0
      %1606 = vmatmul.mubr.bf16.gmra.mrb[0].mxu0 %v1568
      %v1607 = vpop.f32.mrb[0].mxu0
      %v1608 = vadd.f32 0.0, %v1607
      %v1609 = vpop.f32.mrb[0].mxu0
      %v1610 = vpop.f32.mrb[0].mxu0
      %v1611 = vpop.f32.mrb[0].mxu0
      %1612 = vdwg.mxu0
      %1614 = vrot.lane.b32.xlu0 %v957, 96
      %v1615 = vpop.permute.xlu0 %1614
      %v1617 = vsel %vm613, %v957, 0
      %v1620 = vsel %vm613, %v1615, 0
      %1622 = vmatprep.subr.bf16.mxu0 0
      %1623 = vmatpush1.bf16.xpose.msra.mxu0 %v1620
      %1624 = vmatprep.subr.bf16.mxu0 0
      %1625 = vmatpush1.bf16.xpose.msra.mxu0 0
      %1626 = vmatprep.subr.bf16.mxu0 0
      %1627 = vmatpush1.bf16.xpose.msra.mxu0 0
      %1628 = vmatprep.subr.bf16.mxu0 0
      %1629 = vmatpush1.bf16.xpose.msra.mxu0 0
      %1630 = vmatprep.subr.bf16.mxu0 0
      %1631 = vmatpush1.bf16.xpose.msra.mxu0 0
      %1632 = vmatprep.subr.bf16.mxu0 0
      %1633 = vmatpush1.bf16.xpose.msra.mxu0 0
      %1634 = vmatprep.subr.bf16.mxu0 0
      %1635 = vmatpush1.bf16.xpose.msra.mxu0 0
      %1636 = vmatprep.subr.bf16.mxu0 0
      %1637 = vmatpush1.bf16.xpose.msra.mxu0 0
      %1638 = vmatprep.subr.bf16.mxu0 0
      %1639 = vmatpush1.bf16.xpose.msra.mxu0 0
      %1640 = vmatprep.subr.bf16.mxu0 0
      %1641 = vmatpush1.bf16.xpose.msra.mxu0 0
      %1642 = vmatprep.subr.bf16.mxu0 0
      %1643 = vmatpush1.bf16.xpose.msra.mxu0 0
      %1644 = vmatprep.subr.bf16.mxu0 0
      %1645 = vmatpush1.bf16.xpose.msra.mxu0 0
      %1646 = vmatprep.subr.bf16.mxu0 0
      %1647 = vmatpush1.bf16.xpose.msra.mxu0 0
      %1648 = vmatprep.subr.bf16.mxu0 0
      %1649 = vmatpush1.bf16.xpose.msra.mxu0 0
      %1650 = vmatprep.subr.bf16.mxu0 0
      %1651 = vmatpush1.bf16.xpose.msra.mxu0 0
      %1652 = vmatprep.subr.bf16.mxu0 0
      %1653 = vmatpush1.bf16.xpose.msra.mxu0 0
      %1654 = vmatprep.mubr.bf16.mxu0 0
      %1655 = vmatmul.mubr.bf16.gmra.mrb[0].mxu0 %v1617
      %v1656 = vpop.f32.mrb[0].mxu0
      %v1657 = vadd.f32 0.0, %v1656
      %v1658 = vpop.f32.mrb[0].mxu0
      %v1659 = vpop.f32.mrb[0].mxu0
      %v1660 = vpop.f32.mrb[0].mxu0
      %1661 = vdwg.mxu0
      %1663 = vrot.lane.b32.xlu0 %v958, 96
      %v1664 = vpop.permute.xlu0 %1663
      %v1666 = vsel %vm613, %v958, 0
      %v1669 = vsel %vm613, %v1664, 0
      %1671 = vmatprep.subr.bf16.mxu0 0
      %1672 = vmatpush1.bf16.xpose.msra.mxu0 %v1669
      %1673 = vmatprep.subr.bf16.mxu0 0
      %1674 = vmatpush1.bf16.xpose.msra.mxu0 0
      %1675 = vmatprep.subr.bf16.mxu0 0
      %1676 = vmatpush1.bf16.xpose.msra.mxu0 0
      %1677 = vmatprep.subr.bf16.mxu0 0
      %1678 = vmatpush1.bf16.xpose.msra.mxu0 0
      %1679 = vmatprep.subr.bf16.mxu0 0
      %1680 = vmatpush1.bf16.xpose.msra.mxu0 0
      %1681 = vmatprep.subr.bf16.mxu0 0
      %1682 = vmatpush1.bf16.xpose.msra.mxu0 0
      %1683 = vmatprep.subr.bf16.mxu0 0
      %1684 = vmatpush1.bf16.xpose.msra.mxu0 0
      %1685 = vmatprep.subr.bf16.mxu0 0
      %1686 = vmatpush1.bf16.xpose.msra.mxu0 0
      %1687 = vmatprep.subr.bf16.mxu0 0
      %1688 = vmatpush1.bf16.xpose.msra.mxu0 0
      %1689 = vmatprep.subr.bf16.mxu0 0
      %1690 = vmatpush1.bf16.xpose.msra.mxu0 0
      %1691 = vmatprep.subr.bf16.mxu0 0
      %1692 = vmatpush1.bf16.xpose.msra.mxu0 0
      %1693 = vmatprep.subr.bf16.mxu0 0
      %1694 = vmatpush1.bf16.xpose.msra.mxu0 0
      %1695 = vmatprep.subr.bf16.mxu0 0
      %1696 = vmatpush1.bf16.xpose.msra.mxu0 0
      %1697 = vmatprep.subr.bf16.mxu0 0
      %1698 = vmatpush1.bf16.xpose.msra.mxu0 0
      %1699 = vmatprep.subr.bf16.mxu0 0
      %1700 = vmatpush1.bf16.xpose.msra.mxu0 0
      %1701 = vmatprep.subr.bf16.mxu0 0
      %1702 = vmatpush1.bf16.xpose.msra.mxu0 0
      %1703 = vmatprep.mubr.bf16.mxu0 0
      %1704 = vmatmul.mubr.bf16.gmra.mrb[0].mxu0 %v1666
      %v1705 = vpop.f32.mrb[0].mxu0
      %v1706 = vadd.f32 0.0, %v1705
      %v1707 = vpop.f32.mrb[0].mxu0
      %v1708 = vpop.f32.mrb[0].mxu0
      %v1709 = vpop.f32.mrb[0].mxu0
      %1710 = vdwg.mxu0
      %1712 = vrot.lane.b32.xlu0 %v959, 96
      %v1713 = vpop.permute.xlu0 %1712
      %v1715 = vsel %vm613, %v959, 0
      %v1718 = vsel %vm613, %v1713, 0
      %1720 = vmatprep.subr.bf16.mxu0 0
      %1721 = vmatpush1.bf16.xpose.msra.mxu0 %v1718
      %1722 = vmatprep.subr.bf16.mxu0 0
      %1723 = vmatpush1.bf16.xpose.msra.mxu0 0
      %1724 = vmatprep.subr.bf16.mxu0 0
      %1725 = vmatpush1.bf16.xpose.msra.mxu0 0
      %1726 = vmatprep.subr.bf16.mxu0 0
      %1727 = vmatpush1.bf16.xpose.msra.mxu0 0
      %1728 = vmatprep.subr.bf16.mxu0 0
      %1729 = vmatpush1.bf16.xpose.msra.mxu0 0
      %1730 = vmatprep.subr.bf16.mxu0 0
      %1731 = vmatpush1.bf16.xpose.msra.mxu0 0
      %1732 = vmatprep.subr.bf16.mxu0 0
      %1733 = vmatpush1.bf16.xpose.msra.mxu0 0
      %1734 = vmatprep.subr.bf16.mxu0 0
      %1735 = vmatpush1.bf16.xpose.msra.mxu0 0
      %1736 = vmatprep.subr.bf16.mxu0 0
      %1737 = vmatpush1.bf16.xpose.msra.mxu0 0
      %1738 = vmatprep.subr.bf16.mxu0 0
      %1739 = vmatpush1.bf16.xpose.msra.mxu0 0
      %1740 = vmatprep.subr.bf16.mxu0 0
      %1741 = vmatpush1.bf16.xpose.msra.mxu0 0
      %1742 = vmatprep.subr.bf16.mxu0 0
      %1743 = vmatpush1.bf16.xpose.msra.mxu0 0
      %1744 = vmatprep.subr.bf16.mxu0 0
      %1745 = vmatpush1.bf16.xpose.msra.mxu0 0
      %1746 = vmatprep.subr.bf16.mxu0 0
      %1747 = vmatpush1.bf16.xpose.msra.mxu0 0
      %1748 = vmatprep.subr.bf16.mxu0 0
      %1749 = vmatpush1.bf16.xpose.msra.mxu0 0
      %1750 = vmatprep.subr.bf16.mxu0 0
      %1751 = vmatpush1.bf16.xpose.msra.mxu0 0
      %1752 = vmatprep.mubr.bf16.mxu0 0
      %1753 = vmatmul.mubr.bf16.gmra.mrb[0].mxu0 %v1715
      %v1754 = vpop.f32.mrb[0].mxu0
      %v1755 = vadd.f32 0.0, %v1754
      %v1756 = vpop.f32.mrb[0].mxu0
      %v1757 = vpop.f32.mrb[0].mxu0
      %v1758 = vpop.f32.mrb[0].mxu0
      %1759 = vdwg.mxu0
      %1761 = vrot.lane.b32.xlu0 %v960, 96
      %v1762 = vpop.permute.xlu0 %1761
      %v1764 = vsel %vm613, %v960, 0
      %v1767 = vsel %vm613, %v1762, 0
      %1769 = vmatprep.subr.bf16.mxu0 0
      %1770 = vmatpush1.bf16.xpose.msra.mxu0 %v1767
      %1771 = vmatprep.subr.bf16.mxu0 0
      %1772 = vmatpush1.bf16.xpose.msra.mxu0 0
      %1773 = vmatprep.subr.bf16.mxu0 0
      %1774 = vmatpush1.bf16.xpose.msra.mxu0 0
      %1775 = vmatprep.subr.bf16.mxu0 0
      %1776 = vmatpush1.bf16.xpose.msra.mxu0 0
      %1777 = vmatprep.subr.bf16.mxu0 0
      %1778 = vmatpush1.bf16.xpose.msra.mxu0 0
      %1779 = vmatprep.subr.bf16.mxu0 0
      %1780 = vmatpush1.bf16.xpose.msra.mxu0 0
      %1781 = vmatprep.subr.bf16.mxu0 0
      %1782 = vmatpush1.bf16.xpose.msra.mxu0 0
      %1783 = vmatprep.subr.bf16.mxu0 0
      %1784 = vmatpush1.bf16.xpose.msra.mxu0 0
      %1785 = vmatprep.subr.bf16.mxu0 0
      %1786 = vmatpush1.bf16.xpose.msra.mxu0 0
      %1787 = vmatprep.subr.bf16.mxu0 0
      %1788 = vmatpush1.bf16.xpose.msra.mxu0 0
      %1789 = vmatprep.subr.bf16.mxu0 0
      %1790 = vmatpush1.bf16.xpose.msra.mxu0 0
      %1791 = vmatprep.subr.bf16.mxu0 0
      %1792 = vmatpush1.bf16.xpose.msra.mxu0 0
      %1793 = vmatprep.subr.bf16.mxu0 0
      %1794 = vmatpush1.bf16.xpose.msra.mxu0 0
      %1795 = vmatprep.subr.bf16.mxu0 0
      %1796 = vmatpush1.bf16.xpose.msra.mxu0 0
      %1797 = vmatprep.subr.bf16.mxu0 0
      %1798 = vmatpush1.bf16.xpose.msra.mxu0 0
      %1799 = vmatprep.subr.bf16.mxu0 0
      %1800 = vmatpush1.bf16.xpose.msra.mxu0 0
      %1801 = vmatprep.mubr.bf16.mxu0 0
      %1802 = vmatmul.mubr.bf16.gmra.mrb[0].mxu0 %v1764
      %v1803 = vpop.f32.mrb[0].mxu0
      %v1804 = vadd.f32 0.0, %v1803
      %v1805 = vpop.f32.mrb[0].mxu0
      %v1806 = vpop.f32.mrb[0].mxu0
      %v1807 = vpop.f32.mrb[0].mxu0
      %1808 = vdwg.mxu0
      %1810 = vrot.lane.b32.xlu0 %v961, 96
      %v1811 = vpop.permute.xlu0 %1810
      %v1813 = vsel %vm613, %v961, 0
      %v1816 = vsel %vm613, %v1811, 0
      %1818 = vmatprep.subr.bf16.mxu0 0
      %1819 = vmatpush1.bf16.xpose.msra.mxu0 %v1816
      %1820 = vmatprep.subr.bf16.mxu0 0
      %1821 = vmatpush1.bf16.xpose.msra.mxu0 0
      %1822 = vmatprep.subr.bf16.mxu0 0
      %1823 = vmatpush1.bf16.xpose.msra.mxu0 0
      %1824 = vmatprep.subr.bf16.mxu0 0
      %1825 = vmatpush1.bf16.xpose.msra.mxu0 0
      %1826 = vmatprep.subr.bf16.mxu0 0
      %1827 = vmatpush1.bf16.xpose.msra.mxu0 0
      %1828 = vmatprep.subr.bf16.mxu0 0
      %1829 = vmatpush1.bf16.xpose.msra.mxu0 0
      %1830 = vmatprep.subr.bf16.mxu0 0
      %1831 = vmatpush1.bf16.xpose.msra.mxu0 0
      %1832 = vmatprep.subr.bf16.mxu0 0
      %1833 = vmatpush1.bf16.xpose.msra.mxu0 0
      %1834 = vmatprep.subr.bf16.mxu0 0
      %1835 = vmatpush1.bf16.xpose.msra.mxu0 0
      %1836 = vmatprep.subr.bf16.mxu0 0
      %1837 = vmatpush1.bf16.xpose.msra.mxu0 0
      %1838 = vmatprep.subr.bf16.mxu0 0
      %1839 = vmatpush1.bf16.xpose.msra.mxu0 0
      %1840 = vmatprep.subr.bf16.mxu0 0
      %1841 = vmatpush1.bf16.xpose.msra.mxu0 0
      %1842 = vmatprep.subr.bf16.mxu0 0
      %1843 = vmatpush1.bf16.xpose.msra.mxu0 0
      %1844 = vmatprep.subr.bf16.mxu0 0
      %1845 = vmatpush1.bf16.xpose.msra.mxu0 0
      %1846 = vmatprep.subr.bf16.mxu0 0
      %1847 = vmatpush1.bf16.xpose.msra.mxu0 0
      %1848 = vmatprep.subr.bf16.mxu0 0
      %1849 = vmatpush1.bf16.xpose.msra.mxu0 0
      %1850 = vmatprep.mubr.bf16.mxu0 0
      %1851 = vmatmul.mubr.bf16.gmra.mrb[0].mxu0 %v1813
      %v1852 = vpop.f32.mrb[0].mxu0
      %v1853 = vadd.f32 0.0, %v1852
      %v1854 = vpop.f32.mrb[0].mxu0
      %v1855 = vpop.f32.mrb[0].mxu0
      %v1856 = vpop.f32.mrb[0].mxu0
      %1857 = vdwg.mxu0
      %1859 = vrot.lane.b32.xlu0 %v962, 96
      %v1860 = vpop.permute.xlu0 %1859
      %v1862 = vsel %vm613, %v962, 0
      %v1865 = vsel %vm613, %v1860, 0
      %1867 = vmatprep.subr.bf16.mxu0 0
      %1868 = vmatpush1.bf16.xpose.msra.mxu0 %v1865
      %1869 = vmatprep.subr.bf16.mxu0 0
      %1870 = vmatpush1.bf16.xpose.msra.mxu0 0
      %1871 = vmatprep.subr.bf16.mxu0 0
      %1872 = vmatpush1.bf16.xpose.msra.mxu0 0
      %1873 = vmatprep.subr.bf16.mxu0 0
      %1874 = vmatpush1.bf16.xpose.msra.mxu0 0
      %1875 = vmatprep.subr.bf16.mxu0 0
      %1876 = vmatpush1.bf16.xpose.msra.mxu0 0
      %1877 = vmatprep.subr.bf16.mxu0 0
      %1878 = vmatpush1.bf16.xpose.msra.mxu0 0
      %1879 = vmatprep.subr.bf16.mxu0 0
      %1880 = vmatpush1.bf16.xpose.msra.mxu0 0
      %1881 = vmatprep.subr.bf16.mxu0 0
      %1882 = vmatpush1.bf16.xpose.msra.mxu0 0
      %1883 = vmatprep.subr.bf16.mxu0 0
      %1884 = vmatpush1.bf16.xpose.msra.mxu0 0
      %1885 = vmatprep.subr.bf16.mxu0 0
      %1886 = vmatpush1.bf16.xpose.msra.mxu0 0
      %1887 = vmatprep.subr.bf16.mxu0 0
      %1888 = vmatpush1.bf16.xpose.msra.mxu0 0
      %1889 = vmatprep.subr.bf16.mxu0 0
      %1890 = vmatpush1.bf16.xpose.msra.mxu0 0
      %1891 = vmatprep.subr.bf16.mxu0 0
      %1892 = vmatpush1.bf16.xpose.msra.mxu0 0
      %1893 = vmatprep.subr.bf16.mxu0 0
      %1894 = vmatpush1.bf16.xpose.msra.mxu0 0
      %1895 = vmatprep.subr.bf16.mxu0 0
      %1896 = vmatpush1.bf16.xpose.msra.mxu0 0
      %1897 = vmatprep.subr.bf16.mxu0 0
      %1898 = vmatpush1.bf16.xpose.msra.mxu0 0
      %1899 = vmatprep.mubr.bf16.mxu0 0
      %1900 = vmatmul.mubr.bf16.gmra.mrb[0].mxu0 %v1862
      %v1901 = vpop.f32.mrb[0].mxu0
      %v1902 = vadd.f32 0.0, %v1901
      %v1903 = vpop.f32.mrb[0].mxu0
      %v1904 = vpop.f32.mrb[0].mxu0
      %v1905 = vpop.f32.mrb[0].mxu0
      %1906 = vdwg.mxu0
      %1908 = vrot.lane.b32.xlu0 %v963, 96
      %v1909 = vpop.permute.xlu0 %1908
      %v1911 = vsel %vm613, %v963, 0
      %v1914 = vsel %vm613, %v1909, 0
      %1916 = vmatprep.subr.bf16.mxu0 0
      %1917 = vmatpush1.bf16.xpose.msra.mxu0 %v1914
      %1918 = vmatprep.subr.bf16.mxu0 0
      %1919 = vmatpush1.bf16.xpose.msra.mxu0 0
      %1920 = vmatprep.subr.bf16.mxu0 0
      %1921 = vmatpush1.bf16.xpose.msra.mxu0 0
      %1922 = vmatprep.subr.bf16.mxu0 0
      %1923 = vmatpush1.bf16.xpose.msra.mxu0 0
      %1924 = vmatprep.subr.bf16.mxu0 0
      %1925 = vmatpush1.bf16.xpose.msra.mxu0 0
      %1926 = vmatprep.subr.bf16.mxu0 0
      %1927 = vmatpush1.bf16.xpose.msra.mxu0 0
      %1928 = vmatprep.subr.bf16.mxu0 0
      %1929 = vmatpush1.bf16.xpose.msra.mxu0 0
      %1930 = vmatprep.subr.bf16.mxu0 0
      %1931 = vmatpush1.bf16.xpose.msra.mxu0 0
      %1932 = vmatprep.subr.bf16.mxu0 0
      %1933 = vmatpush1.bf16.xpose.msra.mxu0 0
      %1934 = vmatprep.subr.bf16.mxu0 0
      %1935 = vmatpush1.bf16.xpose.msra.mxu0 0
      %1936 = vmatprep.subr.bf16.mxu0 0
      %1937 = vmatpush1.bf16.xpose.msra.mxu0 0
      %1938 = vmatprep.subr.bf16.mxu0 0
      %1939 = vmatpush1.bf16.xpose.msra.mxu0 0
      %1940 = vmatprep.subr.bf16.mxu0 0
      %1941 = vmatpush1.bf16.xpose.msra.mxu0 0
      %1942 = vmatprep.subr.bf16.mxu0 0
      %1943 = vmatpush1.bf16.xpose.msra.mxu0 0
      %1944 = vmatprep.subr.bf16.mxu0 0
      %1945 = vmatpush1.bf16.xpose.msra.mxu0 0
      %1946 = vmatprep.subr.bf16.mxu0 0
      %1947 = vmatpush1.bf16.xpose.msra.mxu0 0
      %1948 = vmatprep.mubr.bf16.mxu0 0
      %1949 = vmatmul.mubr.bf16.gmra.mrb[0].mxu0 %v1911
      %v1950 = vpop.f32.mrb[0].mxu0
      %v1951 = vadd.f32 0.0, %v1950
      %v1952 = vpop.f32.mrb[0].mxu0
      %v1953 = vpop.f32.mrb[0].mxu0
      %v1954 = vpop.f32.mrb[0].mxu0
      %1955 = vdwg.mxu0
      %1957 = vrot.lane.b32.xlu0 %v964, 96
      %v1958 = vpop.permute.xlu0 %1957
      %v1960 = vsel %vm613, %v964, 0
      %v1963 = vsel %vm613, %v1958, 0
      %1965 = vmatprep.subr.bf16.mxu0 0
      %1966 = vmatpush1.bf16.xpose.msra.mxu0 %v1963
      %1967 = vmatprep.subr.bf16.mxu0 0
      %1968 = vmatpush1.bf16.xpose.msra.mxu0 0
      %1969 = vmatprep.subr.bf16.mxu0 0
      %1970 = vmatpush1.bf16.xpose.msra.mxu0 0
      %1971 = vmatprep.subr.bf16.mxu0 0
      %1972 = vmatpush1.bf16.xpose.msra.mxu0 0
      %1973 = vmatprep.subr.bf16.mxu0 0
      %1974 = vmatpush1.bf16.xpose.msra.mxu0 0
      %1975 = vmatprep.subr.bf16.mxu0 0
      %1976 = vmatpush1.bf16.xpose.msra.mxu0 0
      %1977 = vmatprep.subr.bf16.mxu0 0
      %1978 = vmatpush1.bf16.xpose.msra.mxu0 0
      %1979 = vmatprep.subr.bf16.mxu0 0
      %1980 = vmatpush1.bf16.xpose.msra.mxu0 0
      %1981 = vmatprep.subr.bf16.mxu0 0
      %1982 = vmatpush1.bf16.xpose.msra.mxu0 0
      %1983 = vmatprep.subr.bf16.mxu0 0
      %1984 = vmatpush1.bf16.xpose.msra.mxu0 0
      %1985 = vmatprep.subr.bf16.mxu0 0
      %1986 = vmatpush1.bf16.xpose.msra.mxu0 0
      %1987 = vmatprep.subr.bf16.mxu0 0
      %1988 = vmatpush1.bf16.xpose.msra.mxu0 0
      %1989 = vmatprep.subr.bf16.mxu0 0
      %1990 = vmatpush1.bf16.xpose.msra.mxu0 0
      %1991 = vmatprep.subr.bf16.mxu0 0
      %1992 = vmatpush1.bf16.xpose.msra.mxu0 0
      %1993 = vmatprep.subr.bf16.mxu0 0
      %1994 = vmatpush1.bf16.xpose.msra.mxu0 0
      %1995 = vmatprep.subr.bf16.mxu0 0
      %1996 = vmatpush1.bf16.xpose.msra.mxu0 0
      %1997 = vmatprep.mubr.bf16.mxu0 0
      %1998 = vmatmul.mubr.bf16.gmra.mrb[0].mxu0 %v1960
      %v1999 = vpop.f32.mrb[0].mxu0
      %v2000 = vadd.f32 0.0, %v1999
      %v2001 = vpop.f32.mrb[0].mxu0
      %v2002 = vpop.f32.mrb[0].mxu0
      %v2003 = vpop.f32.mrb[0].mxu0
      %2004 = vdwg.mxu0
      %2006 = vrot.lane.b32.xlu0 %v965, 96
      %v2007 = vpop.permute.xlu0 %2006
      %v2009 = vsel %vm613, %v965, 0
      %v2012 = vsel %vm613, %v2007, 0
      %2014 = vmatprep.subr.bf16.mxu0 0
      %2015 = vmatpush1.bf16.xpose.msra.mxu0 %v2012
      %2016 = vmatprep.subr.bf16.mxu0 0
      %2017 = vmatpush1.bf16.xpose.msra.mxu0 0
      %2018 = vmatprep.subr.bf16.mxu0 0
      %2019 = vmatpush1.bf16.xpose.msra.mxu0 0
      %2020 = vmatprep.subr.bf16.mxu0 0
      %2021 = vmatpush1.bf16.xpose.msra.mxu0 0
      %2022 = vmatprep.subr.bf16.mxu0 0
      %2023 = vmatpush1.bf16.xpose.msra.mxu0 0
      %2024 = vmatprep.subr.bf16.mxu0 0
      %2025 = vmatpush1.bf16.xpose.msra.mxu0 0
      %2026 = vmatprep.subr.bf16.mxu0 0
      %2027 = vmatpush1.bf16.xpose.msra.mxu0 0
      %2028 = vmatprep.subr.bf16.mxu0 0
      %2029 = vmatpush1.bf16.xpose.msra.mxu0 0
      %2030 = vmatprep.subr.bf16.mxu0 0
      %2031 = vmatpush1.bf16.xpose.msra.mxu0 0
      %2032 = vmatprep.subr.bf16.mxu0 0
      %2033 = vmatpush1.bf16.xpose.msra.mxu0 0
      %2034 = vmatprep.subr.bf16.mxu0 0
      %2035 = vmatpush1.bf16.xpose.msra.mxu0 0
      %2036 = vmatprep.subr.bf16.mxu0 0
      %2037 = vmatpush1.bf16.xpose.msra.mxu0 0
      %2038 = vmatprep.subr.bf16.mxu0 0
      %2039 = vmatpush1.bf16.xpose.msra.mxu0 0
      %2040 = vmatprep.subr.bf16.mxu0 0
      %2041 = vmatpush1.bf16.xpose.msra.mxu0 0
      %2042 = vmatprep.subr.bf16.mxu0 0
      %2043 = vmatpush1.bf16.xpose.msra.mxu0 0
      %2044 = vmatprep.subr.bf16.mxu0 0
      %2045 = vmatpush1.bf16.xpose.msra.mxu0 0
      %2046 = vmatprep.mubr.bf16.mxu0 0
      %2047 = vmatmul.mubr.bf16.gmra.mrb[0].mxu0 %v2009
      %v2048 = vpop.f32.mrb[0].mxu0
      %v2049 = vadd.f32 0.0, %v2048
      %v2050 = vpop.f32.mrb[0].mxu0
      %v2051 = vpop.f32.mrb[0].mxu0
      %v2052 = vpop.f32.mrb[0].mxu0
      %2053 = vdwg.mxu0
      %2055 = vrot.lane.b32.xlu0 %v966, 96
      %v2056 = vpop.permute.xlu0 %2055
      %v2058 = vsel %vm613, %v966, 0
      %v2061 = vsel %vm613, %v2056, 0
      %2063 = vmatprep.subr.bf16.mxu0 0
      %2064 = vmatpush1.bf16.xpose.msra.mxu0 %v2061
      %2065 = vmatprep.subr.bf16.mxu0 0
      %2066 = vmatpush1.bf16.xpose.msra.mxu0 0
      %2067 = vmatprep.subr.bf16.mxu0 0
      %2068 = vmatpush1.bf16.xpose.msra.mxu0 0
      %2069 = vmatprep.subr.bf16.mxu0 0
      %2070 = vmatpush1.bf16.xpose.msra.mxu0 0
      %2071 = vmatprep.subr.bf16.mxu0 0
      %2072 = vmatpush1.bf16.xpose.msra.mxu0 0
      %2073 = vmatprep.subr.bf16.mxu0 0
      %2074 = vmatpush1.bf16.xpose.msra.mxu0 0
      %2075 = vmatprep.subr.bf16.mxu0 0
      %2076 = vmatpush1.bf16.xpose.msra.mxu0 0
      %2077 = vmatprep.subr.bf16.mxu0 0
      %2078 = vmatpush1.bf16.xpose.msra.mxu0 0
      %2079 = vmatprep.subr.bf16.mxu0 0
      %2080 = vmatpush1.bf16.xpose.msra.mxu0 0
      %2081 = vmatprep.subr.bf16.mxu0 0
      %2082 = vmatpush1.bf16.xpose.msra.mxu0 0
      %2083 = vmatprep.subr.bf16.mxu0 0
      %2084 = vmatpush1.bf16.xpose.msra.mxu0 0
      %2085 = vmatprep.subr.bf16.mxu0 0
      %2086 = vmatpush1.bf16.xpose.msra.mxu0 0
      %2087 = vmatprep.subr.bf16.mxu0 0
      %2088 = vmatpush1.bf16.xpose.msra.mxu0 0
      %2089 = vmatprep.subr.bf16.mxu0 0
      %2090 = vmatpush1.bf16.xpose.msra.mxu0 0
      %2091 = vmatprep.subr.bf16.mxu0 0
      %2092 = vmatpush1.bf16.xpose.msra.mxu0 0
      %2093 = vmatprep.subr.bf16.mxu0 0
      %2094 = vmatpush1.bf16.xpose.msra.mxu0 0
      %2095 = vmatprep.mubr.bf16.mxu0 0
      %2096 = vmatmul.mubr.bf16.gmra.mrb[0].mxu0 %v2058
      %v2097 = vpop.f32.mrb[0].mxu0
      %v2098 = vadd.f32 0.0, %v2097
      %v2099 = vpop.f32.mrb[0].mxu0
      %v2100 = vpop.f32.mrb[0].mxu0
      %v2101 = vpop.f32.mrb[0].mxu0
      %2102 = vdwg.mxu0
      %2104 = vrot.lane.b32.xlu0 %v967, 96
      %v2105 = vpop.permute.xlu0 %2104
      %v2107 = vsel %vm613, %v967, 0
      %v2110 = vsel %vm613, %v2105, 0
      %2112 = vmatprep.subr.bf16.mxu0 0
      %2113 = vmatpush1.bf16.xpose.msra.mxu0 %v2110
      %2114 = vmatprep.subr.bf16.mxu0 0
      %2115 = vmatpush1.bf16.xpose.msra.mxu0 0
      %2116 = vmatprep.subr.bf16.mxu0 0
      %2117 = vmatpush1.bf16.xpose.msra.mxu0 0
      %2118 = vmatprep.subr.bf16.mxu0 0
      %2119 = vmatpush1.bf16.xpose.msra.mxu0 0
      %2120 = vmatprep.subr.bf16.mxu0 0
      %2121 = vmatpush1.bf16.xpose.msra.mxu0 0
      %2122 = vmatprep.subr.bf16.mxu0 0
      %2123 = vmatpush1.bf16.xpose.msra.mxu0 0
      %2124 = vmatprep.subr.bf16.mxu0 0
      %2125 = vmatpush1.bf16.xpose.msra.mxu0 0
      %2126 = vmatprep.subr.bf16.mxu0 0
      %2127 = vmatpush1.bf16.xpose.msra.mxu0 0
      %2128 = vmatprep.subr.bf16.mxu0 0
      %2129 = vmatpush1.bf16.xpose.msra.mxu0 0
      %2130 = vmatprep.subr.bf16.mxu0 0
      %2131 = vmatpush1.bf16.xpose.msra.mxu0 0
      %2132 = vmatprep.subr.bf16.mxu0 0
      %2133 = vmatpush1.bf16.xpose.msra.mxu0 0
      %2134 = vmatprep.subr.bf16.mxu0 0
      %2135 = vmatpush1.bf16.xpose.msra.mxu0 0
      %2136 = vmatprep.subr.bf16.mxu0 0
      %2137 = vmatpush1.bf16.xpose.msra.mxu0 0
      %2138 = vmatprep.subr.bf16.mxu0 0
      %2139 = vmatpush1.bf16.xpose.msra.mxu0 0
      %2140 = vmatprep.subr.bf16.mxu0 0
      %2141 = vmatpush1.bf16.xpose.msra.mxu0 0
      %2142 = vmatprep.subr.bf16.mxu0 0
      %2143 = vmatpush1.bf16.xpose.msra.mxu0 0
      %2144 = vmatprep.mubr.bf16.mxu0 0
      %2145 = vmatmul.mubr.bf16.gmra.mrb[0].mxu0 %v2107
      %v2146 = vpop.f32.mrb[0].mxu0
      %v2147 = vadd.f32 0.0, %v2146
      %v2148 = vpop.f32.mrb[0].mxu0
      %v2149 = vpop.f32.mrb[0].mxu0
      %v2150 = vpop.f32.mrb[0].mxu0
      %2151 = vdwg.mxu0
      %2153 = vrot.lane.b32.xlu0 %v968, 96
      %v2154 = vpop.permute.xlu0 %2153
      %v2156 = vsel %vm613, %v968, 0
      %v2159 = vsel %vm613, %v2154, 0
      %2161 = vmatprep.subr.bf16.mxu0 0
      %2162 = vmatpush1.bf16.xpose.msra.mxu0 %v2159
      %2163 = vmatprep.subr.bf16.mxu0 0
      %2164 = vmatpush1.bf16.xpose.msra.mxu0 0
      %2165 = vmatprep.subr.bf16.mxu0 0
      %2166 = vmatpush1.bf16.xpose.msra.mxu0 0
      %2167 = vmatprep.subr.bf16.mxu0 0
      %2168 = vmatpush1.bf16.xpose.msra.mxu0 0
      %2169 = vmatprep.subr.bf16.mxu0 0
      %2170 = vmatpush1.bf16.xpose.msra.mxu0 0
      %2171 = vmatprep.subr.bf16.mxu0 0
      %2172 = vmatpush1.bf16.xpose.msra.mxu0 0
      %2173 = vmatprep.subr.bf16.mxu0 0
      %2174 = vmatpush1.bf16.xpose.msra.mxu0 0
      %2175 = vmatprep.subr.bf16.mxu0 0
      %2176 = vmatpush1.bf16.xpose.msra.mxu0 0
      %2177 = vmatprep.subr.bf16.mxu0 0
      %2178 = vmatpush1.bf16.xpose.msra.mxu0 0
      %2179 = vmatprep.subr.bf16.mxu0 0
      %2180 = vmatpush1.bf16.xpose.msra.mxu0 0
      %2181 = vmatprep.subr.bf16.mxu0 0
      %2182 = vmatpush1.bf16.xpose.msra.mxu0 0
      %2183 = vmatprep.subr.bf16.mxu0 0
      %2184 = vmatpush1.bf16.xpose.msra.mxu0 0
      %2185 = vmatprep.subr.bf16.mxu0 0
      %2186 = vmatpush1.bf16.xpose.msra.mxu0 0
      %2187 = vmatprep.subr.bf16.mxu0 0
      %2188 = vmatpush1.bf16.xpose.msra.mxu0 0
      %2189 = vmatprep.subr.bf16.mxu0 0
      %2190 = vmatpush1.bf16.xpose.msra.mxu0 0
      %2191 = vmatprep.subr.bf16.mxu0 0
      %2192 = vmatpush1.bf16.xpose.msra.mxu0 0
      %2193 = vmatprep.mubr.bf16.mxu0 0
      %2194 = vmatmul.mubr.bf16.gmra.mrb[0].mxu0 %v2156
      %v2195 = vpop.f32.mrb[0].mxu0
      %v2196 = vadd.f32 0.0, %v2195
      %v2197 = vpop.f32.mrb[0].mxu0
      %v2198 = vpop.f32.mrb[0].mxu0
      %v2199 = vpop.f32.mrb[0].mxu0
      %2200 = vdwg.mxu0
      %2202 = vrot.lane.b32.xlu0 %v969, 96
      %v2203 = vpop.permute.xlu0 %2202
      %v2205 = vsel %vm613, %v969, 0
      %v2208 = vsel %vm613, %v2203, 0
      %2210 = vmatprep.subr.bf16.mxu0 0
      %2211 = vmatpush1.bf16.xpose.msra.mxu0 %v2208
      %2212 = vmatprep.subr.bf16.mxu0 0
      %2213 = vmatpush1.bf16.xpose.msra.mxu0 0
      %2214 = vmatprep.subr.bf16.mxu0 0
      %2215 = vmatpush1.bf16.xpose.msra.mxu0 0
      %2216 = vmatprep.subr.bf16.mxu0 0
      %2217 = vmatpush1.bf16.xpose.msra.mxu0 0
      %2218 = vmatprep.subr.bf16.mxu0 0
      %2219 = vmatpush1.bf16.xpose.msra.mxu0 0
      %2220 = vmatprep.subr.bf16.mxu0 0
      %2221 = vmatpush1.bf16.xpose.msra.mxu0 0
      %2222 = vmatprep.subr.bf16.mxu0 0
      %2223 = vmatpush1.bf16.xpose.msra.mxu0 0
      %2224 = vmatprep.subr.bf16.mxu0 0
      %2225 = vmatpush1.bf16.xpose.msra.mxu0 0
      %2226 = vmatprep.subr.bf16.mxu0 0
      %2227 = vmatpush1.bf16.xpose.msra.mxu0 0
      %2228 = vmatprep.subr.bf16.mxu0 0
      %2229 = vmatpush1.bf16.xpose.msra.mxu0 0
      %2230 = vmatprep.subr.bf16.mxu0 0
      %2231 = vmatpush1.bf16.xpose.msra.mxu0 0
      %2232 = vmatprep.subr.bf16.mxu0 0
      %2233 = vmatpush1.bf16.xpose.msra.mxu0 0
      %2234 = vmatprep.subr.bf16.mxu0 0
      %2235 = vmatpush1.bf16.xpose.msra.mxu0 0
      %2236 = vmatprep.subr.bf16.mxu0 0
      %2237 = vmatpush1.bf16.xpose.msra.mxu0 0
      %2238 = vmatprep.subr.bf16.mxu0 0
      %2239 = vmatpush1.bf16.xpose.msra.mxu0 0
      %2240 = vmatprep.subr.bf16.mxu0 0
      %2241 = vmatpush1.bf16.xpose.msra.mxu0 0
      %2242 = vmatprep.mubr.bf16.mxu0 0
      %2243 = vmatmul.mubr.bf16.gmra.mrb[0].mxu0 %v2205
      %v2244 = vpop.f32.mrb[0].mxu0
      %v2245 = vadd.f32 0.0, %v2244
      %v2246 = vpop.f32.mrb[0].mxu0
      %v2247 = vpop.f32.mrb[0].mxu0
      %v2248 = vpop.f32.mrb[0].mxu0
      %2249 = vdwg.mxu0
      %2251 = vrot.lane.b32.xlu0 %v970, 96
      %v2252 = vpop.permute.xlu0 %2251
      %v2254 = vsel %vm613, %v970, 0
      %v2257 = vsel %vm613, %v2252, 0
      %2259 = vmatprep.subr.bf16.mxu0 0
      %2260 = vmatpush1.bf16.xpose.msra.mxu0 %v2257
      %2261 = vmatprep.subr.bf16.mxu0 0
      %2262 = vmatpush1.bf16.xpose.msra.mxu0 0
      %2263 = vmatprep.subr.bf16.mxu0 0
      %2264 = vmatpush1.bf16.xpose.msra.mxu0 0
      %2265 = vmatprep.subr.bf16.mxu0 0
      %2266 = vmatpush1.bf16.xpose.msra.mxu0 0
      %2267 = vmatprep.subr.bf16.mxu0 0
      %2268 = vmatpush1.bf16.xpose.msra.mxu0 0
      %2269 = vmatprep.subr.bf16.mxu0 0
      %2270 = vmatpush1.bf16.xpose.msra.mxu0 0
      %2271 = vmatprep.subr.bf16.mxu0 0
      %2272 = vmatpush1.bf16.xpose.msra.mxu0 0
      %2273 = vmatprep.subr.bf16.mxu0 0
      %2274 = vmatpush1.bf16.xpose.msra.mxu0 0
      %2275 = vmatprep.subr.bf16.mxu0 0
      %2276 = vmatpush1.bf16.xpose.msra.mxu0 0
      %2277 = vmatprep.subr.bf16.mxu0 0
      %2278 = vmatpush1.bf16.xpose.msra.mxu0 0
      %2279 = vmatprep.subr.bf16.mxu0 0
      %2280 = vmatpush1.bf16.xpose.msra.mxu0 0
      %2281 = vmatprep.subr.bf16.mxu0 0
      %2282 = vmatpush1.bf16.xpose.msra.mxu0 0
      %2283 = vmatprep.subr.bf16.mxu0 0
      %2284 = vmatpush1.bf16.xpose.msra.mxu0 0
      %2285 = vmatprep.subr.bf16.mxu0 0
      %2286 = vmatpush1.bf16.xpose.msra.mxu0 0
      %2287 = vmatprep.subr.bf16.mxu0 0
      %2288 = vmatpush1.bf16.xpose.msra.mxu0 0
      %2289 = vmatprep.subr.bf16.mxu0 0
      %2290 = vmatpush1.bf16.xpose.msra.mxu0 0
      %2291 = vmatprep.mubr.bf16.mxu0 0
      %2292 = vmatmul.mubr.bf16.gmra.mrb[0].mxu0 %v2254
      %v2293 = vpop.f32.mrb[0].mxu0
      %v2294 = vadd.f32 0.0, %v2293
      %v2295 = vpop.f32.mrb[0].mxu0
      %v2296 = vpop.f32.mrb[0].mxu0
      %v2297 = vpop.f32.mrb[0].mxu0
      %2298 = vdwg.mxu0
      %2300 = vrot.lane.b32.xlu0 %v971, 96
      %v2301 = vpop.permute.xlu0 %2300
      %v2303 = vsel %vm613, %v971, 0
      %v2306 = vsel %vm613, %v2301, 0
      %2308 = vmatprep.subr.bf16.mxu0 0
      %2309 = vmatpush1.bf16.xpose.msra.mxu0 %v2306
      %2310 = vmatprep.subr.bf16.mxu0 0
      %2311 = vmatpush1.bf16.xpose.msra.mxu0 0
      %2312 = vmatprep.subr.bf16.mxu0 0
      %2313 = vmatpush1.bf16.xpose.msra.mxu0 0
      %2314 = vmatprep.subr.bf16.mxu0 0
      %2315 = vmatpush1.bf16.xpose.msra.mxu0 0
      %2316 = vmatprep.subr.bf16.mxu0 0
      %2317 = vmatpush1.bf16.xpose.msra.mxu0 0
      %2318 = vmatprep.subr.bf16.mxu0 0
      %2319 = vmatpush1.bf16.xpose.msra.mxu0 0
      %2320 = vmatprep.subr.bf16.mxu0 0
      %2321 = vmatpush1.bf16.xpose.msra.mxu0 0
      %2322 = vmatprep.subr.bf16.mxu0 0
      %2323 = vmatpush1.bf16.xpose.msra.mxu0 0
      %2324 = vmatprep.subr.bf16.mxu0 0
      %2325 = vmatpush1.bf16.xpose.msra.mxu0 0
      %2326 = vmatprep.subr.bf16.mxu0 0
      %2327 = vmatpush1.bf16.xpose.msra.mxu0 0
      %2328 = vmatprep.subr.bf16.mxu0 0
      %2329 = vmatpush1.bf16.xpose.msra.mxu0 0
      %2330 = vmatprep.subr.bf16.mxu0 0
      %2331 = vmatpush1.bf16.xpose.msra.mxu0 0
      %2332 = vmatprep.subr.bf16.mxu0 0
      %2333 = vmatpush1.bf16.xpose.msra.mxu0 0
      %2334 = vmatprep.subr.bf16.mxu0 0
      %2335 = vmatpush1.bf16.xpose.msra.mxu0 0
      %2336 = vmatprep.subr.bf16.mxu0 0
      %2337 = vmatpush1.bf16.xpose.msra.mxu0 0
      %2338 = vmatprep.subr.bf16.mxu0 0
      %2339 = vmatpush1.bf16.xpose.msra.mxu0 0
      %2340 = vmatprep.mubr.bf16.mxu0 0
      %2341 = vmatmul.mubr.bf16.gmra.mrb[0].mxu0 %v2303
      %v2342 = vpop.f32.mrb[0].mxu0
      %v2343 = vadd.f32 0.0, %v2342
      %v2344 = vpop.f32.mrb[0].mxu0
      %v2345 = vpop.f32.mrb[0].mxu0
      %v2346 = vpop.f32.mrb[0].mxu0
      %2347 = vdwg.mxu0
      %2349 = vrot.lane.b32.xlu0 %v972, 96
      %v2350 = vpop.permute.xlu0 %2349
      %v2352 = vsel %vm613, %v972, 0
      %v2355 = vsel %vm613, %v2350, 0
      %2357 = vmatprep.subr.bf16.mxu0 0
      %2358 = vmatpush1.bf16.xpose.msra.mxu0 %v2355
      %2359 = vmatprep.subr.bf16.mxu0 0
      %2360 = vmatpush1.bf16.xpose.msra.mxu0 0
      %2361 = vmatprep.subr.bf16.mxu0 0
      %2362 = vmatpush1.bf16.xpose.msra.mxu0 0
      %2363 = vmatprep.subr.bf16.mxu0 0
      %2364 = vmatpush1.bf16.xpose.msra.mxu0 0
      %2365 = vmatprep.subr.bf16.mxu0 0
      %2366 = vmatpush1.bf16.xpose.msra.mxu0 0
      %2367 = vmatprep.subr.bf16.mxu0 0
      %2368 = vmatpush1.bf16.xpose.msra.mxu0 0
      %2369 = vmatprep.subr.bf16.mxu0 0
      %2370 = vmatpush1.bf16.xpose.msra.mxu0 0
      %2371 = vmatprep.subr.bf16.mxu0 0
      %2372 = vmatpush1.bf16.xpose.msra.mxu0 0
      %2373 = vmatprep.subr.bf16.mxu0 0
      %2374 = vmatpush1.bf16.xpose.msra.mxu0 0
      %2375 = vmatprep.subr.bf16.mxu0 0
      %2376 = vmatpush1.bf16.xpose.msra.mxu0 0
      %2377 = vmatprep.subr.bf16.mxu0 0
      %2378 = vmatpush1.bf16.xpose.msra.mxu0 0
      %2379 = vmatprep.subr.bf16.mxu0 0
      %2380 = vmatpush1.bf16.xpose.msra.mxu0 0
      %2381 = vmatprep.subr.bf16.mxu0 0
      %2382 = vmatpush1.bf16.xpose.msra.mxu0 0
      %2383 = vmatprep.subr.bf16.mxu0 0
      %2384 = vmatpush1.bf16.xpose.msra.mxu0 0
      %2385 = vmatprep.subr.bf16.mxu0 0
      %2386 = vmatpush1.bf16.xpose.msra.mxu0 0
      %2387 = vmatprep.subr.bf16.mxu0 0
      %2388 = vmatpush1.bf16.xpose.msra.mxu0 0
      %2389 = vmatprep.mubr.bf16.mxu0 0
      %2390 = vmatmul.mubr.bf16.gmra.mrb[0].mxu0 %v2352
      %v2391 = vpop.f32.mrb[0].mxu0
      %v2392 = vadd.f32 0.0, %v2391
      %v2393 = vpop.f32.mrb[0].mxu0
      %v2394 = vpop.f32.mrb[0].mxu0
      %v2395 = vpop.f32.mrb[0].mxu0
      %2396 = vdwg.mxu0
      %2398 = vrot.lane.b32.xlu0 %v973, 96
      %v2399 = vpop.permute.xlu0 %2398
      %v2401 = vsel %vm613, %v973, 0
      %v2404 = vsel %vm613, %v2399, 0
      %2406 = vmatprep.subr.bf16.mxu0 0
      %2407 = vmatpush1.bf16.xpose.msra.mxu0 %v2404
      %2408 = vmatprep.subr.bf16.mxu0 0
      %2409 = vmatpush1.bf16.xpose.msra.mxu0 0
      %2410 = vmatprep.subr.bf16.mxu0 0
      %2411 = vmatpush1.bf16.xpose.msra.mxu0 0
      %2412 = vmatprep.subr.bf16.mxu0 0
      %2413 = vmatpush1.bf16.xpose.msra.mxu0 0
      %2414 = vmatprep.subr.bf16.mxu0 0
      %2415 = vmatpush1.bf16.xpose.msra.mxu0 0
      %2416 = vmatprep.subr.bf16.mxu0 0
      %2417 = vmatpush1.bf16.xpose.msra.mxu0 0
      %2418 = vmatprep.subr.bf16.mxu0 0
      %2419 = vmatpush1.bf16.xpose.msra.mxu0 0
      %2420 = vmatprep.subr.bf16.mxu0 0
      %2421 = vmatpush1.bf16.xpose.msra.mxu0 0
      %2422 = vmatprep.subr.bf16.mxu0 0
      %2423 = vmatpush1.bf16.xpose.msra.mxu0 0
      %2424 = vmatprep.subr.bf16.mxu0 0
      %2425 = vmatpush1.bf16.xpose.msra.mxu0 0
      %2426 = vmatprep.subr.bf16.mxu0 0
      %2427 = vmatpush1.bf16.xpose.msra.mxu0 0
      %2428 = vmatprep.subr.bf16.mxu0 0
      %2429 = vmatpush1.bf16.xpose.msra.mxu0 0
      %2430 = vmatprep.subr.bf16.mxu0 0
      %2431 = vmatpush1.bf16.xpose.msra.mxu0 0
      %2432 = vmatprep.subr.bf16.mxu0 0
      %2433 = vmatpush1.bf16.xpose.msra.mxu0 0
      %2434 = vmatprep.subr.bf16.mxu0 0
      %2435 = vmatpush1.bf16.xpose.msra.mxu0 0
      %2436 = vmatprep.subr.bf16.mxu0 0
      %2437 = vmatpush1.bf16.xpose.msra.mxu0 0
      %2438 = vmatprep.mubr.bf16.mxu0 0
      %2439 = vmatmul.mubr.bf16.gmra.mrb[0].mxu0 %v2401
      %v2440 = vpop.f32.mrb[0].mxu0
      %v2441 = vadd.f32 0.0, %v2440
      %v2442 = vpop.f32.mrb[0].mxu0
      %v2443 = vpop.f32.mrb[0].mxu0
      %v2444 = vpop.f32.mrb[0].mxu0
      %2445 = vdwg.mxu0
      %2447 = vrot.lane.b32.xlu0 %v974, 96
      %v2448 = vpop.permute.xlu0 %2447
      %v2450 = vsel %vm613, %v974, 0
      %v2453 = vsel %vm613, %v2448, 0
      %2455 = vmatprep.subr.bf16.mxu0 0
      %2456 = vmatpush1.bf16.xpose.msra.mxu0 %v2453
      %2457 = vmatprep.subr.bf16.mxu0 0
      %2458 = vmatpush1.bf16.xpose.msra.mxu0 0
      %2459 = vmatprep.subr.bf16.mxu0 0
      %2460 = vmatpush1.bf16.xpose.msra.mxu0 0
      %2461 = vmatprep.subr.bf16.mxu0 0
      %2462 = vmatpush1.bf16.xpose.msra.mxu0 0
      %2463 = vmatprep.subr.bf16.mxu0 0
      %2464 = vmatpush1.bf16.xpose.msra.mxu0 0
      %2465 = vmatprep.subr.bf16.mxu0 0
      %2466 = vmatpush1.bf16.xpose.msra.mxu0 0
      %2467 = vmatprep.subr.bf16.mxu0 0
      %2468 = vmatpush1.bf16.xpose.msra.mxu0 0
      %2469 = vmatprep.subr.bf16.mxu0 0
      %2470 = vmatpush1.bf16.xpose.msra.mxu0 0
      %2471 = vmatprep.subr.bf16.mxu0 0
      %2472 = vmatpush1.bf16.xpose.msra.mxu0 0
      %2473 = vmatprep.subr.bf16.mxu0 0
      %2474 = vmatpush1.bf16.xpose.msra.mxu0 0
      %2475 = vmatprep.subr.bf16.mxu0 0
      %2476 = vmatpush1.bf16.xpose.msra.mxu0 0
      %2477 = vmatprep.subr.bf16.mxu0 0
      %2478 = vmatpush1.bf16.xpose.msra.mxu0 0
      %2479 = vmatprep.subr.bf16.mxu0 0
      %2480 = vmatpush1.bf16.xpose.msra.mxu0 0
      %2481 = vmatprep.subr.bf16.mxu0 0
      %2482 = vmatpush1.bf16.xpose.msra.mxu0 0
      %2483 = vmatprep.subr.bf16.mxu0 0
      %2484 = vmatpush1.bf16.xpose.msra.mxu0 0
      %2485 = vmatprep.subr.bf16.mxu0 0
      %2486 = vmatpush1.bf16.xpose.msra.mxu0 0
      %2487 = vmatprep.mubr.bf16.mxu0 0
      %2488 = vmatmul.mubr.bf16.gmra.mrb[0].mxu0 %v2450
      %v2489 = vpop.f32.mrb[0].mxu0
      %v2490 = vadd.f32 0.0, %v2489
      %v2491 = vpop.f32.mrb[0].mxu0
      %v2492 = vpop.f32.mrb[0].mxu0
      %v2493 = vpop.f32.mrb[0].mxu0
      %2494 = vdwg.mxu0
      %2496 = vrot.lane.b32.xlu0 %v975, 96
      %v2497 = vpop.permute.xlu0 %2496
      %v2499 = vsel %vm613, %v975, 0
      %v2502 = vsel %vm613, %v2497, 0
      %2504 = vmatprep.subr.bf16.mxu0 0
      %2505 = vmatpush1.bf16.xpose.msra.mxu0 %v2502
      %2506 = vmatprep.subr.bf16.mxu0 0
      %2507 = vmatpush1.bf16.xpose.msra.mxu0 0
      %2508 = vmatprep.subr.bf16.mxu0 0
      %2509 = vmatpush1.bf16.xpose.msra.mxu0 0
      %2510 = vmatprep.subr.bf16.mxu0 0
      %2511 = vmatpush1.bf16.xpose.msra.mxu0 0
      %2512 = vmatprep.subr.bf16.mxu0 0
      %2513 = vmatpush1.bf16.xpose.msra.mxu0 0
      %2514 = vmatprep.subr.bf16.mxu0 0
      %2515 = vmatpush1.bf16.xpose.msra.mxu0 0
      %2516 = vmatprep.subr.bf16.mxu0 0
      %2517 = vmatpush1.bf16.xpose.msra.mxu0 0
      %2518 = vmatprep.subr.bf16.mxu0 0
      %2519 = vmatpush1.bf16.xpose.msra.mxu0 0
      %2520 = vmatprep.subr.bf16.mxu0 0
      %2521 = vmatpush1.bf16.xpose.msra.mxu0 0
      %2522 = vmatprep.subr.bf16.mxu0 0
      %2523 = vmatpush1.bf16.xpose.msra.mxu0 0
      %2524 = vmatprep.subr.bf16.mxu0 0
      %2525 = vmatpush1.bf16.xpose.msra.mxu0 0
      %2526 = vmatprep.subr.bf16.mxu0 0
      %2527 = vmatpush1.bf16.xpose.msra.mxu0 0
      %2528 = vmatprep.subr.bf16.mxu0 0
      %2529 = vmatpush1.bf16.xpose.msra.mxu0 0
      %2530 = vmatprep.subr.bf16.mxu0 0
      %2531 = vmatpush1.bf16.xpose.msra.mxu0 0
      %2532 = vmatprep.subr.bf16.mxu0 0
      %2533 = vmatpush1.bf16.xpose.msra.mxu0 0
      %2534 = vmatprep.subr.bf16.mxu0 0
      %2535 = vmatpush1.bf16.xpose.msra.mxu0 0
      %2536 = vmatprep.mubr.bf16.mxu0 0
      %2537 = vmatmul.mubr.bf16.gmra.mrb[0].mxu0 %v2499
      %v2538 = vpop.f32.mrb[0].mxu0
      %v2539 = vadd.f32 0.0, %v2538
      %v2540 = vpop.f32.mrb[0].mxu0
      %v2541 = vpop.f32.mrb[0].mxu0
      %v2542 = vpop.f32.mrb[0].mxu0
      %2543 = vdwg.mxu0
      %vm2544 = vcmask 9216
      %v2545 = vsel %vm2544, %v1020, -inf
      %2546 = vmax.xlane.f32.xlu0 %v2545
      %v2547 = vpop.xlane.xlu0 %2546
      %v2548 = vsel %vm2544, %v1069, -inf
      %2549 = vmax.xlane.f32.xlu0 %v2548
      %v2550 = vpop.xlane.xlu0 %2549
      %v2551 = vsel %vm2544, %v1118, -inf
      %2552 = vmax.xlane.f32.xlu0 %v2551
      %v2553 = vpop.xlane.xlu0 %2552
      %v2554 = vsel %vm2544, %v1167, -inf
      %2555 = vmax.xlane.f32.xlu0 %v2554
      %v2556 = vpop.xlane.xlu0 %2555
      %v2557 = vsel %vm2544, %v1216, -inf
      %2558 = vmax.xlane.f32.xlu0 %v2557
      %v2559 = vpop.xlane.xlu0 %2558
      %v2560 = vsel %vm2544, %v1265, -inf
      %2561 = vmax.xlane.f32.xlu0 %v2560
      %v2562 = vpop.xlane.xlu0 %2561
      %v2563 = vsel %vm2544, %v1314, -inf
      %2564 = vmax.xlane.f32.xlu0 %v2563
      %v2565 = vpop.xlane.xlu0 %2564
      %v2566 = vsel %vm2544, %v1363, -inf
      %2567 = vmax.xlane.f32.xlu0 %v2566
      %v2568 = vpop.xlane.xlu0 %2567
      %v2569 = vsel %vm2544, %v1412, -inf
      %2570 = vmax.xlane.f32.xlu0 %v2569
      %v2571 = vpop.xlane.xlu0 %2570
      %v2572 = vsel %vm2544, %v1461, -inf
      %2573 = vmax.xlane.f32.xlu0 %v2572
      %v2574 = vpop.xlane.xlu0 %2573
      %v2575 = vsel %vm2544, %v1510, -inf
      %2576 = vmax.xlane.f32.xlu0 %v2575
      %v2577 = vpop.xlane.xlu0 %2576
      %v2578 = vsel %vm2544, %v1559, -inf
      %2579 = vmax.xlane.f32.xlu0 %v2578
      %v2580 = vpop.xlane.xlu0 %2579
      %v2581 = vsel %vm2544, %v1608, -inf
      %2582 = vmax.xlane.f32.xlu0 %v2581
      %v2583 = vpop.xlane.xlu0 %2582
      %v2584 = vsel %vm2544, %v1657, -inf
      %2585 = vmax.xlane.f32.xlu0 %v2584
      %v2586 = vpop.xlane.xlu0 %2585
      %v2587 = vsel %vm2544, %v1706, -inf
      %2588 = vmax.xlane.f32.xlu0 %v2587
      %v2589 = vpop.xlane.xlu0 %2588
      %v2590 = vsel %vm2544, %v1755, -inf
      %2591 = vmax.xlane.f32.xlu0 %v2590
      %v2592 = vpop.xlane.xlu0 %2591
      %v2593 = vsel %vm2544, %v1804, -inf
      %2594 = vmax.xlane.f32.xlu0 %v2593
      %v2595 = vpop.xlane.xlu0 %2594
      %v2596 = vsel %vm2544, %v1853, -inf
      %2597 = vmax.xlane.f32.xlu0 %v2596
      %v2598 = vpop.xlane.xlu0 %2597
      %v2599 = vsel %vm2544, %v1902, -inf
      %2600 = vmax.xlane.f32.xlu0 %v2599
      %v2601 = vpop.xlane.xlu0 %2600
      %v2602 = vsel %vm2544, %v1951, -inf
      %2603 = vmax.xlane.f32.xlu0 %v2602
      %v2604 = vpop.xlane.xlu0 %2603
      %v2605 = vsel %vm2544, %v2000, -inf
      %2606 = vmax.xlane.f32.xlu0 %v2605
      %v2607 = vpop.xlane.xlu0 %2606
      %v2608 = vsel %vm2544, %v2049, -inf
      %2609 = vmax.xlane.f32.xlu0 %v2608
      %v2610 = vpop.xlane.xlu0 %2609
      %v2611 = vsel %vm2544, %v2098, -inf
      %2612 = vmax.xlane.f32.xlu0 %v2611
      %v2613 = vpop.xlane.xlu0 %2612
      %v2614 = vsel %vm2544, %v2147, -inf
      %2615 = vmax.xlane.f32.xlu0 %v2614
      %v2616 = vpop.xlane.xlu0 %2615
      %v2617 = vsel %vm2544, %v2196, -inf
      %2618 = vmax.xlane.f32.xlu0 %v2617
      %v2619 = vpop.xlane.xlu0 %2618
      %v2620 = vsel %vm2544, %v2245, -inf
      %2621 = vmax.xlane.f32.xlu0 %v2620
      %v2622 = vpop.xlane.xlu0 %2621
      %v2623 = vsel %vm2544, %v2294, -inf
      %2624 = vmax.xlane.f32.xlu0 %v2623
      %v2625 = vpop.xlane.xlu0 %2624
      %v2626 = vsel %vm2544, %v2343, -inf
      %2627 = vmax.xlane.f32.xlu0 %v2626
      %v2628 = vpop.xlane.xlu0 %2627
      %v2629 = vsel %vm2544, %v2392, -inf
      %2630 = vmax.xlane.f32.xlu0 %v2629
      %v2631 = vpop.xlane.xlu0 %2630
      %v2632 = vsel %vm2544, %v2441, -inf
      %2633 = vmax.xlane.f32.xlu0 %v2632
      %v2634 = vpop.xlane.xlu0 %2633
      %v2635 = vsel %vm2544, %v2490, -inf
      %2636 = vmax.xlane.f32.xlu0 %v2635
      %v2637 = vpop.xlane.xlu0 %2636
      %v2638 = vsel %vm2544, %v2539, -inf
      %2639 = vmax.xlane.f32.xlu0 %v2638
      %v2640 = vpop.xlane.xlu0 %2639
      %v2641 = vsub.f32 %v1020, %v2547
      %v2642 = vsub.f32 %v1069, %v2550
      %v2643 = vsub.f32 %v1118, %v2553
      %v2644 = vsub.f32 %v1167, %v2556
      %v2645 = vsub.f32 %v1216, %v2559
      %v2646 = vsub.f32 %v1265, %v2562
      %v2647 = vsub.f32 %v1314, %v2565
      %v2648 = vsub.f32 %v1363, %v2568
      %v2649 = vsub.f32 %v1412, %v2571
      %v2650 = vsub.f32 %v1461, %v2574
      %v2651 = vsub.f32 %v1510, %v2577
      %v2652 = vsub.f32 %v1559, %v2580
      %v2653 = vsub.f32 %v1608, %v2583
      %v2654 = vsub.f32 %v1657, %v2586
      %v2655 = vsub.f32 %v1706, %v2589
      %v2656 = vsub.f32 %v1755, %v2592
      %v2657 = vsub.f32 %v1804, %v2595
      %v2658 = vsub.f32 %v1853, %v2598
      %v2659 = vsub.f32 %v1902, %v2601
      %v2660 = vsub.f32 %v1951, %v2604
      %v2661 = vsub.f32 %v2000, %v2607
      %v2662 = vsub.f32 %v2049, %v2610
      %v2663 = vsub.f32 %v2098, %v2613
      %v2664 = vsub.f32 %v2147, %v2616
      %v2665 = vsub.f32 %v2196, %v2619
      %v2666 = vsub.f32 %v2245, %v2622
      %v2667 = vsub.f32 %v2294, %v2625
      %v2668 = vsub.f32 %v2343, %v2628
      %v2669 = vsub.f32 %v2392, %v2631
      %v2670 = vsub.f32 %v2441, %v2634
      %v2671 = vsub.f32 %v2490, %v2637
      %v2672 = vsub.f32 %v2539, %v2640
      %v2673 = vmul.f32 %v2641, 1.442695
      %v2674 = vpow.pop %v2673
      %v2675 = vmul.f32 %v2642, 1.442695
      %v2676 = vpow.pop %v2675
      %v2677 = vmul.f32 %v2643, 1.442695
      %v2678 = vpow.pop %v2677
      %v2679 = vmul.f32 %v2644, 1.442695
      %v2680 = vpow.pop %v2679
      %v2681 = vmul.f32 %v2645, 1.442695
      %v2682 = vpow.pop %v2681
      %v2683 = vmul.f32 %v2646, 1.442695
      %v2684 = vpow.pop %v2683
      %v2685 = vmul.f32 %v2647, 1.442695
      %v2686 = vpow.pop %v2685
      %v2687 = vmul.f32 %v2648, 1.442695
      %v2688 = vpow.pop %v2687
      %v2689 = vmul.f32 %v2649, 1.442695
      %v2690 = vpow.pop %v2689
      %v2691 = vmul.f32 %v2650, 1.442695
      %v2692 = vpow.pop %v2691
      %v2693 = vmul.f32 %v2651, 1.442695
      %v2694 = vpow.pop %v2693
      %v2695 = vmul.f32 %v2652, 1.442695
      %v2696 = vpow.pop %v2695
      %v2697 = vmul.f32 %v2653, 1.442695
      %v2698 = vpow.pop %v2697
      %v2699 = vmul.f32 %v2654, 1.442695
      %v2700 = vpow.pop %v2699
      %v2701 = vmul.f32 %v2655, 1.442695
      %v2702 = vpow.pop %v2701
      %v2703 = vmul.f32 %v2656, 1.442695
      %v2704 = vpow.pop %v2703
      %v2705 = vmul.f32 %v2657, 1.442695
      %v2706 = vpow.pop %v2705
      %v2707 = vmul.f32 %v2658, 1.442695
      %v2708 = vpow.pop %v2707
      %v2709 = vmul.f32 %v2659, 1.442695
      %v2710 = vpow.pop %v2709
      %v2711 = vmul.f32 %v2660, 1.442695
      %v2712 = vpow.pop %v2711
      %v2713 = vmul.f32 %v2661, 1.442695
      %v2714 = vpow.pop %v2713
      %v2715 = vmul.f32 %v2662, 1.442695
      %v2716 = vpow.pop %v2715
      %v2717 = vmul.f32 %v2663, 1.442695
      %v2718 = vpow.pop %v2717
      %v2719 = vmul.f32 %v2664, 1.442695
      %v2720 = vpow.pop %v2719
      %v2721 = vmul.f32 %v2665, 1.442695
      %v2722 = vpow.pop %v2721
      %v2723 = vmul.f32 %v2666, 1.442695
      %v2724 = vpow.pop %v2723
      %v2725 = vmul.f32 %v2667, 1.442695
      %v2726 = vpow.pop %v2725
      %v2727 = vmul.f32 %v2668, 1.442695
      %v2728 = vpow.pop %v2727
      %v2729 = vmul.f32 %v2669, 1.442695
      %v2730 = vpow.pop %v2729
      %v2731 = vmul.f32 %v2670, 1.442695
      %v2732 = vpow.pop %v2731
      %v2733 = vmul.f32 %v2671, 1.442695
      %v2734 = vpow.pop %v2733
      %v2735 = vmul.f32 %v2672, 1.442695
      %v2736 = vpow.pop %v2735
      %v2737 = vsel %vm2544, %v2674, 0.0
      %2738 = vadd.xlane.f32.xlu0 %v2737
      %v2739 = vpop.xlane.xlu0 %2738
      %v2740 = vsel %vm2544, %v2676, 0.0
      %2741 = vadd.xlane.f32.xlu0 %v2740
      %v2742 = vpop.xlane.xlu0 %2741
      %v2743 = vsel %vm2544, %v2678, 0.0
      %2744 = vadd.xlane.f32.xlu0 %v2743
      %v2745 = vpop.xlane.xlu0 %2744
      %v2746 = vsel %vm2544, %v2680, 0.0
      %2747 = vadd.xlane.f32.xlu0 %v2746
      %v2748 = vpop.xlane.xlu0 %2747
      %v2749 = vsel %vm2544, %v2682, 0.0
      %2750 = vadd.xlane.f32.xlu0 %v2749
      %v2751 = vpop.xlane.xlu0 %2750
      %v2752 = vsel %vm2544, %v2684, 0.0
      %2753 = vadd.xlane.f32.xlu0 %v2752
      %v2754 = vpop.xlane.xlu0 %2753
      %v2755 = vsel %vm2544, %v2686, 0.0
      %2756 = vadd.xlane.f32.xlu0 %v2755
      %v2757 = vpop.xlane.xlu0 %2756
      %v2758 = vsel %vm2544, %v2688, 0.0
      %2759 = vadd.xlane.f32.xlu0 %v2758
      %v2760 = vpop.xlane.xlu0 %2759
      %v2761 = vsel %vm2544, %v2690, 0.0
      %2762 = vadd.xlane.f32.xlu0 %v2761
      %v2763 = vpop.xlane.xlu0 %2762
      %v2764 = vsel %vm2544, %v2692, 0.0
      %2765 = vadd.xlane.f32.xlu0 %v2764
      %v2766 = vpop.xlane.xlu0 %2765
      %v2767 = vsel %vm2544, %v2694, 0.0
      %2768 = vadd.xlane.f32.xlu0 %v2767
      %v2769 = vpop.xlane.xlu0 %2768
      %v2770 = vsel %vm2544, %v2696, 0.0
      %2771 = vadd.xlane.f32.xlu0 %v2770
      %v2772 = vpop.xlane.xlu0 %2771
      %v2773 = vsel %vm2544, %v2698, 0.0
      %2774 = vadd.xlane.f32.xlu0 %v2773
      %v2775 = vpop.xlane.xlu0 %2774
      %v2776 = vsel %vm2544, %v2700, 0.0
      %2777 = vadd.xlane.f32.xlu0 %v2776
      %v2778 = vpop.xlane.xlu0 %2777
      %v2779 = vsel %vm2544, %v2702, 0.0
      %2780 = vadd.xlane.f32.xlu0 %v2779
      %v2781 = vpop.xlane.xlu0 %2780
      %v2782 = vsel %vm2544, %v2704, 0.0
      %2783 = vadd.xlane.f32.xlu0 %v2782
      %v2784 = vpop.xlane.xlu0 %2783
      %v2785 = vsel %vm2544, %v2706, 0.0
      %2786 = vadd.xlane.f32.xlu0 %v2785
      %v2787 = vpop.xlane.xlu0 %2786
      %v2788 = vsel %vm2544, %v2708, 0.0
      %2789 = vadd.xlane.f32.xlu0 %v2788
      %v2790 = vpop.xlane.xlu0 %2789
      %v2791 = vsel %vm2544, %v2710, 0.0
      %2792 = vadd.xlane.f32.xlu0 %v2791
      %v2793 = vpop.xlane.xlu0 %2792
      %v2794 = vsel %vm2544, %v2712, 0.0
      %2795 = vadd.xlane.f32.xlu0 %v2794
      %v2796 = vpop.xlane.xlu0 %2795
      %v2797 = vsel %vm2544, %v2714, 0.0
      %2798 = vadd.xlane.f32.xlu0 %v2797
      %v2799 = vpop.xlane.xlu0 %2798
      %v2800 = vsel %vm2544, %v2716, 0.0
      %2801 = vadd.xlane.f32.xlu0 %v2800
      %v2802 = vpop.xlane.xlu0 %2801
      %v2803 = vsel %vm2544, %v2718, 0.0
      %2804 = vadd.xlane.f32.xlu0 %v2803
      %v2805 = vpop.xlane.xlu0 %2804
      %v2806 = vsel %vm2544, %v2720, 0.0
      %2807 = vadd.xlane.f32.xlu0 %v2806
      %v2808 = vpop.xlane.xlu0 %2807
      %v2809 = vsel %vm2544, %v2722, 0.0
      %2810 = vadd.xlane.f32.xlu0 %v2809
      %v2811 = vpop.xlane.xlu0 %2810
      %v2812 = vsel %vm2544, %v2724, 0.0
      %2813 = vadd.xlane.f32.xlu0 %v2812
      %v2814 = vpop.xlane.xlu0 %2813
      %v2815 = vsel %vm2544, %v2726, 0.0
      %2816 = vadd.xlane.f32.xlu0 %v2815
      %v2817 = vpop.xlane.xlu0 %2816
      %v2818 = vsel %vm2544, %v2728, 0.0
      %2819 = vadd.xlane.f32.xlu0 %v2818
      %v2820 = vpop.xlane.xlu0 %2819
      %v2821 = vsel %vm2544, %v2730, 0.0
      %2822 = vadd.xlane.f32.xlu0 %v2821
      %v2823 = vpop.xlane.xlu0 %2822
      %v2824 = vsel %vm2544, %v2732, 0.0
      %2825 = vadd.xlane.f32.xlu0 %v2824
      %v2826 = vpop.xlane.xlu0 %2825
      %v2827 = vsel %vm2544, %v2734, 0.0
      %2828 = vadd.xlane.f32.xlu0 %v2827
      %v2829 = vpop.xlane.xlu0 %2828
      %v2830 = vsel %vm2544, %v2736, 0.0
      %2831 = vadd.xlane.f32.xlu0 %v2830
      %v2832 = vpop.xlane.xlu0 %2831
      %v2833 = vrcp.pop %v2739
      %v2834 = vrcp.pop %v2742
      %v2835 = vrcp.pop %v2745
      %v2836 = vrcp.pop %v2748
      %v2837 = vrcp.pop %v2751
      %v2838 = vrcp.pop %v2754
      %v2839 = vrcp.pop %v2757
      %v2840 = vrcp.pop %v2760
      %v2841 = vrcp.pop %v2763
      %v2842 = vrcp.pop %v2766
      %v2843 = vrcp.pop %v2769
      %v2844 = vrcp.pop %v2772
      %v2845 = vrcp.pop %v2775
      %v2846 = vrcp.pop %v2778
      %v2847 = vrcp.pop %v2781
      %v2848 = vrcp.pop %v2784
      %v2849 = vrcp.pop %v2787
      %v2850 = vrcp.pop %v2790
      %v2851 = vrcp.pop %v2793
      %v2852 = vrcp.pop %v2796
      %v2853 = vrcp.pop %v2799
      %v2854 = vrcp.pop %v2802
      %v2855 = vrcp.pop %v2805
      %v2856 = vrcp.pop %v2808
      %v2857 = vrcp.pop %v2811
      %v2858 = vrcp.pop %v2814
      %v2859 = vrcp.pop %v2817
      %v2860 = vrcp.pop %v2820
      %v2861 = vrcp.pop %v2823
      %v2862 = vrcp.pop %v2826
      %v2863 = vrcp.pop %v2829
      %v2864 = vrcp.pop %v2832
      %v2865 = vmul.f32 %v2674, %v2833
      %v2866 = vmul.f32 %v2676, %v2834
      %v2867 = vmul.f32 %v2678, %v2835
      %v2868 = vmul.f32 %v2680, %v2836
      %v2869 = vmul.f32 %v2682, %v2837
      %v2870 = vmul.f32 %v2684, %v2838
      %v2871 = vmul.f32 %v2686, %v2839
      %v2872 = vmul.f32 %v2688, %v2840
      %v2873 = vmul.f32 %v2690, %v2841
      %v2874 = vmul.f32 %v2692, %v2842
      %v2875 = vmul.f32 %v2694, %v2843
      %v2876 = vmul.f32 %v2696, %v2844
      %v2877 = vmul.f32 %v2698, %v2845
      %v2878 = vmul.f32 %v2700, %v2846
      %v2879 = vmul.f32 %v2702, %v2847
      %v2880 = vmul.f32 %v2704, %v2848
      %v2881 = vmul.f32 %v2706, %v2849
      %v2882 = vmul.f32 %v2708, %v2850
      %v2883 = vmul.f32 %v2710, %v2851
      %v2884 = vmul.f32 %v2712, %v2852
      %v2885 = vmul.f32 %v2714, %v2853
      %v2886 = vmul.f32 %v2716, %v2854
      %v2887 = vmul.f32 %v2718, %v2855
      %v2888 = vmul.f32 %v2720, %v2856
      %v2889 = vmul.f32 %v2722, %v2857
      %v2890 = vmul.f32 %v2724, %v2858
      %v2891 = vmul.f32 %v2726, %v2859
      %v2892 = vmul.f32 %v2728, %v2860
      %v2893 = vmul.f32 %v2730, %v2861
      %v2894 = vmul.f32 %v2732, %v2862
      %v2895 = vmul.f32 %v2734, %v2863
      %v2896 = vmul.f32 %v2736, %v2864
      %v2897 = vpack.c.bf16 %v2865, %v2865
      %v2898 = vpack.c.bf16 %v2866, %v2866
      %v2899 = vpack.c.bf16 %v2867, %v2867
      %v2900 = vpack.c.bf16 %v2868, %v2868
      %v2901 = vpack.c.bf16 %v2869, %v2869
      %v2902 = vpack.c.bf16 %v2870, %v2870
      %v2903 = vpack.c.bf16 %v2871, %v2871
      %v2904 = vpack.c.bf16 %v2872, %v2872
      %v2905 = vpack.c.bf16 %v2873, %v2873
      %v2906 = vpack.c.bf16 %v2874, %v2874
      %v2907 = vpack.c.bf16 %v2875, %v2875
      %v2908 = vpack.c.bf16 %v2876, %v2876
      %v2909 = vpack.c.bf16 %v2877, %v2877
      %v2910 = vpack.c.bf16 %v2878, %v2878
      %v2911 = vpack.c.bf16 %v2879, %v2879
      %v2912 = vpack.c.bf16 %v2880, %v2880
      %v2913 = vpack.c.bf16 %v2881, %v2881
      %v2914 = vpack.c.bf16 %v2882, %v2882
      %v2915 = vpack.c.bf16 %v2883, %v2883
      %v2916 = vpack.c.bf16 %v2884, %v2884
      %v2917 = vpack.c.bf16 %v2885, %v2885
      %v2918 = vpack.c.bf16 %v2886, %v2886
      %v2919 = vpack.c.bf16 %v2887, %v2887
      %v2920 = vpack.c.bf16 %v2888, %v2888
      %v2921 = vpack.c.bf16 %v2889, %v2889
      %v2922 = vpack.c.bf16 %v2890, %v2890
      %v2923 = vpack.c.bf16 %v2891, %v2891
      %v2924 = vpack.c.bf16 %v2892, %v2892
      %v2925 = vpack.c.bf16 %v2893, %v2893
      %v2926 = vpack.c.bf16 %v2894, %v2894
      %v2927 = vpack.c.bf16 %v2895, %v2895
      %v2928 = vpack.c.bf16 %v2896, %v2896
      %2929 = vrot.lane.b32.xlu0 %v944, 64
      %v2930 = vpop.permute.xlu0 %2929
      %vm2931 = vcmask 15360
      %v2933 = vsel %vm2931, %v2897, 0
      %vm2935 = vcmask 1040384
      %v2937 = vsel %vm2935, %v2930, 0
      %2939 = vmatprep.subr.bf16.mxu0 0
      %2940 = vmatpush1.bf16.msra.mxu0 %v2937
      %2941 = vmatprep.subr.bf16.mxu0 0
      %2942 = vmatpush1.bf16.msra.mxu0 0
      %2943 = vmatprep.subr.bf16.mxu0 0
      %2944 = vmatpush1.bf16.msra.mxu0 0
      %2945 = vmatprep.subr.bf16.mxu0 0
      %2946 = vmatpush1.bf16.msra.mxu0 0
      %2947 = vmatprep.subr.bf16.mxu0 0
      %2948 = vmatpush1.bf16.msra.mxu0 0
      %2949 = vmatprep.subr.bf16.mxu0 0
      %2950 = vmatpush1.bf16.msra.mxu0 0
      %2951 = vmatprep.subr.bf16.mxu0 0
      %2952 = vmatpush1.bf16.msra.mxu0 0
      %2953 = vmatprep.subr.bf16.mxu0 0
      %2954 = vmatpush1.bf16.msra.mxu0 0
      %2955 = vmatprep.subr.bf16.mxu0 0
      %2956 = vmatpush1.bf16.msra.mxu0 0
      %2957 = vmatprep.subr.bf16.mxu0 0
      %2958 = vmatpush1.bf16.msra.mxu0 0
      %2959 = vmatprep.subr.bf16.mxu0 0
      %2960 = vmatpush1.bf16.msra.mxu0 0
      %2961 = vmatprep.subr.bf16.mxu0 0
      %2962 = vmatpush1.bf16.msra.mxu0 0
      %2963 = vmatprep.subr.bf16.mxu0 0
      %2964 = vmatpush1.bf16.msra.mxu0 0
      %2965 = vmatprep.subr.bf16.mxu0 0
      %2966 = vmatpush1.bf16.msra.mxu0 0
      %2967 = vmatprep.subr.bf16.mxu0 0
      %2968 = vmatpush1.bf16.msra.mxu0 0
      %2969 = vmatprep.subr.bf16.mxu0 0
      %2970 = vmatpush1.bf16.msra.mxu0 0
      %2971 = vmatprep.mubr.bf16.mxu0 0
      %2972 = vmatmul.mubr.bf16.gmra.mrb[0].mxu0 %v2933
      %v2973 = vpop.f32.mrb[0].mxu0
      %v2974 = vadd.f32 0.0, %v2973
      %v2975 = vpop.f32.mrb[0].mxu0
      %v2976 = vpop.f32.mrb[0].mxu0
      %v2977 = vpop.f32.mrb[0].mxu0
      %2978 = vdwg.mxu0
      %2979 = vrot.lane.b32.xlu0 %v945, 64
      %v2980 = vpop.permute.xlu0 %2979
      %v2982 = vsel %vm2931, %v2898, 0
      %v2985 = vsel %vm2935, %v2980, 0
      %2987 = vmatprep.subr.bf16.mxu0 0
      %2988 = vmatpush1.bf16.msra.mxu0 %v2985
      %2989 = vmatprep.subr.bf16.mxu0 0
      %2990 = vmatpush1.bf16.msra.mxu0 0
      %2991 = vmatprep.subr.bf16.mxu0 0
      %2992 = vmatpush1.bf16.msra.mxu0 0
      %2993 = vmatprep.subr.bf16.mxu0 0
      %2994 = vmatpush1.bf16.msra.mxu0 0
      %2995 = vmatprep.subr.bf16.mxu0 0
      %2996 = vmatpush1.bf16.msra.mxu0 0
      %2997 = vmatprep.subr.bf16.mxu0 0
      %2998 = vmatpush1.bf16.msra.mxu0 0
      %2999 = vmatprep.subr.bf16.mxu0 0
      %3000 = vmatpush1.bf16.msra.mxu0 0
      %3001 = vmatprep.subr.bf16.mxu0 0
      %3002 = vmatpush1.bf16.msra.mxu0 0
      %3003 = vmatprep.subr.bf16.mxu0 0
      %3004 = vmatpush1.bf16.msra.mxu0 0
      %3005 = vmatprep.subr.bf16.mxu0 0
      %3006 = vmatpush1.bf16.msra.mxu0 0
      %3007 = vmatprep.subr.bf16.mxu0 0
      %3008 = vmatpush1.bf16.msra.mxu0 0
      %3009 = vmatprep.subr.bf16.mxu0 0
      %3010 = vmatpush1.bf16.msra.mxu0 0
      %3011 = vmatprep.subr.bf16.mxu0 0
      %3012 = vmatpush1.bf16.msra.mxu0 0
      %3013 = vmatprep.subr.bf16.mxu0 0
      %3014 = vmatpush1.bf16.msra.mxu0 0
      %3015 = vmatprep.subr.bf16.mxu0 0
      %3016 = vmatpush1.bf16.msra.mxu0 0
      %3017 = vmatprep.subr.bf16.mxu0 0
      %3018 = vmatpush1.bf16.msra.mxu0 0
      %3019 = vmatprep.mubr.bf16.mxu0 0
      %3020 = vmatmul.mubr.bf16.gmra.mrb[0].mxu0 %v2982
      %v3021 = vpop.f32.mrb[0].mxu0
      %v3022 = vadd.f32 0.0, %v3021
      %v3023 = vpop.f32.mrb[0].mxu0
      %v3024 = vpop.f32.mrb[0].mxu0
      %v3025 = vpop.f32.mrb[0].mxu0
      %3026 = vdwg.mxu0
      %3027 = vrot.lane.b32.xlu0 %v946, 64
      %v3028 = vpop.permute.xlu0 %3027
      %v3030 = vsel %vm2931, %v2899, 0
      %v3033 = vsel %vm2935, %v3028, 0
      %3035 = vmatprep.subr.bf16.mxu0 0
      %3036 = vmatpush1.bf16.msra.mxu0 %v3033
      %3037 = vmatprep.subr.bf16.mxu0 0
      %3038 = vmatpush1.bf16.msra.mxu0 0
      %3039 = vmatprep.subr.bf16.mxu0 0
      %3040 = vmatpush1.bf16.msra.mxu0 0
      %3041 = vmatprep.subr.bf16.mxu0 0
      %3042 = vmatpush1.bf16.msra.mxu0 0
      %3043 = vmatprep.subr.bf16.mxu0 0
      %3044 = vmatpush1.bf16.msra.mxu0 0
      %3045 = vmatprep.subr.bf16.mxu0 0
      %3046 = vmatpush1.bf16.msra.mxu0 0
      %3047 = vmatprep.subr.bf16.mxu0 0
      %3048 = vmatpush1.bf16.msra.mxu0 0
      %3049 = vmatprep.subr.bf16.mxu0 0
      %3050 = vmatpush1.bf16.msra.mxu0 0
      %3051 = vmatprep.subr.bf16.mxu0 0
      %3052 = vmatpush1.bf16.msra.mxu0 0
      %3053 = vmatprep.subr.bf16.mxu0 0
      %3054 = vmatpush1.bf16.msra.mxu0 0
      %3055 = vmatprep.subr.bf16.mxu0 0
      %3056 = vmatpush1.bf16.msra.mxu0 0
      %3057 = vmatprep.subr.bf16.mxu0 0
      %3058 = vmatpush1.bf16.msra.mxu0 0
      %3059 = vmatprep.subr.bf16.mxu0 0
      %3060 = vmatpush1.bf16.msra.mxu0 0
      %3061 = vmatprep.subr.bf16.mxu0 0
      %3062 = vmatpush1.bf16.msra.mxu0 0
      %3063 = vmatprep.subr.bf16.mxu0 0
      %3064 = vmatpush1.bf16.msra.mxu0 0
      %3065 = vmatprep.subr.bf16.mxu0 0
      %3066 = vmatpush1.bf16.msra.mxu0 0
      %3067 = vmatprep.mubr.bf16.mxu0 0
      %3068 = vmatmul.mubr.bf16.gmra.mrb[0].mxu0 %v3030
      %v3069 = vpop.f32.mrb[0].mxu0
      %v3070 = vadd.f32 0.0, %v3069
      %v3071 = vpop.f32.mrb[0].mxu0
      %v3072 = vpop.f32.mrb[0].mxu0
      %v3073 = vpop.f32.mrb[0].mxu0
      %3074 = vdwg.mxu0
      %3075 = vrot.lane.b32.xlu0 %v947, 64
      %v3076 = vpop.permute.xlu0 %3075
      %v3078 = vsel %vm2931, %v2900, 0
      %v3081 = vsel %vm2935, %v3076, 0
      %3083 = vmatprep.subr.bf16.mxu0 0
      %3084 = vmatpush1.bf16.msra.mxu0 %v3081
      %3085 = vmatprep.subr.bf16.mxu0 0
      %3086 = vmatpush1.bf16.msra.mxu0 0
      %3087 = vmatprep.subr.bf16.mxu0 0
      %3088 = vmatpush1.bf16.msra.mxu0 0
      %3089 = vmatprep.subr.bf16.mxu0 0
      %3090 = vmatpush1.bf16.msra.mxu0 0
      %3091 = vmatprep.subr.bf16.mxu0 0
      %3092 = vmatpush1.bf16.msra.mxu0 0
      %3093 = vmatprep.subr.bf16.mxu0 0
      %3094 = vmatpush1.bf16.msra.mxu0 0
      %3095 = vmatprep.subr.bf16.mxu0 0
      %3096 = vmatpush1.bf16.msra.mxu0 0
      %3097 = vmatprep.subr.bf16.mxu0 0
      %3098 = vmatpush1.bf16.msra.mxu0 0
      %3099 = vmatprep.subr.bf16.mxu0 0
      %3100 = vmatpush1.bf16.msra.mxu0 0
      %3101 = vmatprep.subr.bf16.mxu0 0
      %3102 = vmatpush1.bf16.msra.mxu0 0
      %3103 = vmatprep.subr.bf16.mxu0 0
      %3104 = vmatpush1.bf16.msra.mxu0 0
      %3105 = vmatprep.subr.bf16.mxu0 0
      %3106 = vmatpush1.bf16.msra.mxu0 0
      %3107 = vmatprep.subr.bf16.mxu0 0
      %3108 = vmatpush1.bf16.msra.mxu0 0
      %3109 = vmatprep.subr.bf16.mxu0 0
      %3110 = vmatpush1.bf16.msra.mxu0 0
      %3111 = vmatprep.subr.bf16.mxu0 0
      %3112 = vmatpush1.bf16.msra.mxu0 0
      %3113 = vmatprep.subr.bf16.mxu0 0
      %3114 = vmatpush1.bf16.msra.mxu0 0
      %3115 = vmatprep.mubr.bf16.mxu0 0
      %3116 = vmatmul.mubr.bf16.gmra.mrb[0].mxu0 %v3078
      %v3117 = vpop.f32.mrb[0].mxu0
      %v3118 = vadd.f32 0.0, %v3117
      %v3119 = vpop.f32.mrb[0].mxu0
      %v3120 = vpop.f32.mrb[0].mxu0
      %v3121 = vpop.f32.mrb[0].mxu0
      %3122 = vdwg.mxu0
      %3123 = vrot.lane.b32.xlu0 %v948, 64
      %v3124 = vpop.permute.xlu0 %3123
      %v3126 = vsel %vm2931, %v2901, 0
      %v3129 = vsel %vm2935, %v3124, 0
      %3131 = vmatprep.subr.bf16.mxu0 0
      %3132 = vmatpush1.bf16.msra.mxu0 %v3129
      %3133 = vmatprep.subr.bf16.mxu0 0
      %3134 = vmatpush1.bf16.msra.mxu0 0
      %3135 = vmatprep.subr.bf16.mxu0 0
      %3136 = vmatpush1.bf16.msra.mxu0 0
      %3137 = vmatprep.subr.bf16.mxu0 0
      %3138 = vmatpush1.bf16.msra.mxu0 0
      %3139 = vmatprep.subr.bf16.mxu0 0
      %3140 = vmatpush1.bf16.msra.mxu0 0
      %3141 = vmatprep.subr.bf16.mxu0 0
      %3142 = vmatpush1.bf16.msra.mxu0 0
      %3143 = vmatprep.subr.bf16.mxu0 0
      %3144 = vmatpush1.bf16.msra.mxu0 0
      %3145 = vmatprep.subr.bf16.mxu0 0
      %3146 = vmatpush1.bf16.msra.mxu0 0
      %3147 = vmatprep.subr.bf16.mxu0 0
      %3148 = vmatpush1.bf16.msra.mxu0 0
      %3149 = vmatprep.subr.bf16.mxu0 0
      %3150 = vmatpush1.bf16.msra.mxu0 0
      %3151 = vmatprep.subr.bf16.mxu0 0
      %3152 = vmatpush1.bf16.msra.mxu0 0
      %3153 = vmatprep.subr.bf16.mxu0 0
      %3154 = vmatpush1.bf16.msra.mxu0 0
      %3155 = vmatprep.subr.bf16.mxu0 0
      %3156 = vmatpush1.bf16.msra.mxu0 0
      %3157 = vmatprep.subr.bf16.mxu0 0
      %3158 = vmatpush1.bf16.msra.mxu0 0
      %3159 = vmatprep.subr.bf16.mxu0 0
      %3160 = vmatpush1.bf16.msra.mxu0 0
      %3161 = vmatprep.subr.bf16.mxu0 0
      %3162 = vmatpush1.bf16.msra.mxu0 0
      %3163 = vmatprep.mubr.bf16.mxu0 0
      %3164 = vmatmul.mubr.bf16.gmra.mrb[0].mxu0 %v3126
      %v3165 = vpop.f32.mrb[0].mxu0
      %v3166 = vadd.f32 0.0, %v3165
      %v3167 = vpop.f32.mrb[0].mxu0
      %v3168 = vpop.f32.mrb[0].mxu0
      %v3169 = vpop.f32.mrb[0].mxu0
      %3170 = vdwg.mxu0
      %3171 = vrot.lane.b32.xlu0 %v949, 64
      %v3172 = vpop.permute.xlu0 %3171
      %v3174 = vsel %vm2931, %v2902, 0
      %v3177 = vsel %vm2935, %v3172, 0
      %3179 = vmatprep.subr.bf16.mxu0 0
      %3180 = vmatpush1.bf16.msra.mxu0 %v3177
      %3181 = vmatprep.subr.bf16.mxu0 0
      %3182 = vmatpush1.bf16.msra.mxu0 0
      %3183 = vmatprep.subr.bf16.mxu0 0
      %3184 = vmatpush1.bf16.msra.mxu0 0
      %3185 = vmatprep.subr.bf16.mxu0 0
      %3186 = vmatpush1.bf16.msra.mxu0 0
      %3187 = vmatprep.subr.bf16.mxu0 0
      %3188 = vmatpush1.bf16.msra.mxu0 0
      %3189 = vmatprep.subr.bf16.mxu0 0
      %3190 = vmatpush1.bf16.msra.mxu0 0
      %3191 = vmatprep.subr.bf16.mxu0 0
      %3192 = vmatpush1.bf16.msra.mxu0 0
      %3193 = vmatprep.subr.bf16.mxu0 0
      %3194 = vmatpush1.bf16.msra.mxu0 0
      %3195 = vmatprep.subr.bf16.mxu0 0
      %3196 = vmatpush1.bf16.msra.mxu0 0
      %3197 = vmatprep.subr.bf16.mxu0 0
      %3198 = vmatpush1.bf16.msra.mxu0 0
      %3199 = vmatprep.subr.bf16.mxu0 0
      %3200 = vmatpush1.bf16.msra.mxu0 0
      %3201 = vmatprep.subr.bf16.mxu0 0
      %3202 = vmatpush1.bf16.msra.mxu0 0
      %3203 = vmatprep.subr.bf16.mxu0 0
      %3204 = vmatpush1.bf16.msra.mxu0 0
      %3205 = vmatprep.subr.bf16.mxu0 0
      %3206 = vmatpush1.bf16.msra.mxu0 0
      %3207 = vmatprep.subr.bf16.mxu0 0
      %3208 = vmatpush1.bf16.msra.mxu0 0
      %3209 = vmatprep.subr.bf16.mxu0 0
      %3210 = vmatpush1.bf16.msra.mxu0 0
      %3211 = vmatprep.mubr.bf16.mxu0 0
      %3212 = vmatmul.mubr.bf16.gmra.mrb[0].mxu0 %v3174
      %v3213 = vpop.f32.mrb[0].mxu0
      %v3214 = vadd.f32 0.0, %v3213
      %v3215 = vpop.f32.mrb[0].mxu0
      %v3216 = vpop.f32.mrb[0].mxu0
      %v3217 = vpop.f32.mrb[0].mxu0
      %3218 = vdwg.mxu0
      %3219 = vrot.lane.b32.xlu0 %v950, 64
      %v3220 = vpop.permute.xlu0 %3219
      %v3222 = vsel %vm2931, %v2903, 0
      %v3225 = vsel %vm2935, %v3220, 0
      %3227 = vmatprep.subr.bf16.mxu0 0
      %3228 = vmatpush1.bf16.msra.mxu0 %v3225
      %3229 = vmatprep.subr.bf16.mxu0 0
      %3230 = vmatpush1.bf16.msra.mxu0 0
      %3231 = vmatprep.subr.bf16.mxu0 0
      %3232 = vmatpush1.bf16.msra.mxu0 0
      %3233 = vmatprep.subr.bf16.mxu0 0
      %3234 = vmatpush1.bf16.msra.mxu0 0
      %3235 = vmatprep.subr.bf16.mxu0 0
      %3236 = vmatpush1.bf16.msra.mxu0 0
      %3237 = vmatprep.subr.bf16.mxu0 0
      %3238 = vmatpush1.bf16.msra.mxu0 0
      %3239 = vmatprep.subr.bf16.mxu0 0
      %3240 = vmatpush1.bf16.msra.mxu0 0
      %3241 = vmatprep.subr.bf16.mxu0 0
      %3242 = vmatpush1.bf16.msra.mxu0 0
      %3243 = vmatprep.subr.bf16.mxu0 0
      %3244 = vmatpush1.bf16.msra.mxu0 0
      %3245 = vmatprep.subr.bf16.mxu0 0
      %3246 = vmatpush1.bf16.msra.mxu0 0
      %3247 = vmatprep.subr.bf16.mxu0 0
      %3248 = vmatpush1.bf16.msra.mxu0 0
      %3249 = vmatprep.subr.bf16.mxu0 0
      %3250 = vmatpush1.bf16.msra.mxu0 0
      %3251 = vmatprep.subr.bf16.mxu0 0
      %3252 = vmatpush1.bf16.msra.mxu0 0
      %3253 = vmatprep.subr.bf16.mxu0 0
      %3254 = vmatpush1.bf16.msra.mxu0 0
      %3255 = vmatprep.subr.bf16.mxu0 0
      %3256 = vmatpush1.bf16.msra.mxu0 0
      %3257 = vmatprep.subr.bf16.mxu0 0
      %3258 = vmatpush1.bf16.msra.mxu0 0
      %3259 = vmatprep.mubr.bf16.mxu0 0
      %3260 = vmatmul.mubr.bf16.gmra.mrb[0].mxu0 %v3222
      %v3261 = vpop.f32.mrb[0].mxu0
      %v3262 = vadd.f32 0.0, %v3261
      %v3263 = vpop.f32.mrb[0].mxu0
      %v3264 = vpop.f32.mrb[0].mxu0
      %v3265 = vpop.f32.mrb[0].mxu0
      %3266 = vdwg.mxu0
      %3267 = vrot.lane.b32.xlu0 %v951, 64
      %v3268 = vpop.permute.xlu0 %3267
      %v3270 = vsel %vm2931, %v2904, 0
      %v3273 = vsel %vm2935, %v3268, 0
      %3275 = vmatprep.subr.bf16.mxu0 0
      %3276 = vmatpush1.bf16.msra.mxu0 %v3273
      %3277 = vmatprep.subr.bf16.mxu0 0
      %3278 = vmatpush1.bf16.msra.mxu0 0
      %3279 = vmatprep.subr.bf16.mxu0 0
      %3280 = vmatpush1.bf16.msra.mxu0 0
      %3281 = vmatprep.subr.bf16.mxu0 0
      %3282 = vmatpush1.bf16.msra.mxu0 0
      %3283 = vmatprep.subr.bf16.mxu0 0
      %3284 = vmatpush1.bf16.msra.mxu0 0
      %3285 = vmatprep.subr.bf16.mxu0 0
      %3286 = vmatpush1.bf16.msra.mxu0 0
      %3287 = vmatprep.subr.bf16.mxu0 0
      %3288 = vmatpush1.bf16.msra.mxu0 0
      %3289 = vmatprep.subr.bf16.mxu0 0
      %3290 = vmatpush1.bf16.msra.mxu0 0
      %3291 = vmatprep.subr.bf16.mxu0 0
      %3292 = vmatpush1.bf16.msra.mxu0 0
      %3293 = vmatprep.subr.bf16.mxu0 0
      %3294 = vmatpush1.bf16.msra.mxu0 0
      %3295 = vmatprep.subr.bf16.mxu0 0
      %3296 = vmatpush1.bf16.msra.mxu0 0
      %3297 = vmatprep.subr.bf16.mxu0 0
      %3298 = vmatpush1.bf16.msra.mxu0 0
      %3299 = vmatprep.subr.bf16.mxu0 0
      %3300 = vmatpush1.bf16.msra.mxu0 0
      %3301 = vmatprep.subr.bf16.mxu0 0
      %3302 = vmatpush1.bf16.msra.mxu0 0
      %3303 = vmatprep.subr.bf16.mxu0 0
      %3304 = vmatpush1.bf16.msra.mxu0 0
      %3305 = vmatprep.subr.bf16.mxu0 0
      %3306 = vmatpush1.bf16.msra.mxu0 0
      %3307 = vmatprep.mubr.bf16.mxu0 0
      %3308 = vmatmul.mubr.bf16.gmra.mrb[0].mxu0 %v3270
      %v3309 = vpop.f32.mrb[0].mxu0
      %v3310 = vadd.f32 0.0, %v3309
      %v3311 = vpop.f32.mrb[0].mxu0
      %v3312 = vpop.f32.mrb[0].mxu0
      %v3313 = vpop.f32.mrb[0].mxu0
      %3314 = vdwg.mxu0
      %3315 = vrot.lane.b32.xlu0 %v952, 64
      %v3316 = vpop.permute.xlu0 %3315
      %v3318 = vsel %vm2931, %v2905, 0
      %v3321 = vsel %vm2935, %v3316, 0
      %3323 = vmatprep.subr.bf16.mxu0 0
      %3324 = vmatpush1.bf16.msra.mxu0 %v3321
      %3325 = vmatprep.subr.bf16.mxu0 0
      %3326 = vmatpush1.bf16.msra.mxu0 0
      %3327 = vmatprep.subr.bf16.mxu0 0
      %3328 = vmatpush1.bf16.msra.mxu0 0
      %3329 = vmatprep.subr.bf16.mxu0 0
      %3330 = vmatpush1.bf16.msra.mxu0 0
      %3331 = vmatprep.subr.bf16.mxu0 0
      %3332 = vmatpush1.bf16.msra.mxu0 0
      %3333 = vmatprep.subr.bf16.mxu0 0
      %3334 = vmatpush1.bf16.msra.mxu0 0
      %3335 = vmatprep.subr.bf16.mxu0 0
      %3336 = vmatpush1.bf16.msra.mxu0 0
      %3337 = vmatprep.subr.bf16.mxu0 0
      %3338 = vmatpush1.bf16.msra.mxu0 0
      %3339 = vmatprep.subr.bf16.mxu0 0
      %3340 = vmatpush1.bf16.msra.mxu0 0
      %3341 = vmatprep.subr.bf16.mxu0 0
      %3342 = vmatpush1.bf16.msra.mxu0 0
      %3343 = vmatprep.subr.bf16.mxu0 0
      %3344 = vmatpush1.bf16.msra.mxu0 0
      %3345 = vmatprep.subr.bf16.mxu0 0
      %3346 = vmatpush1.bf16.msra.mxu0 0
      %3347 = vmatprep.subr.bf16.mxu0 0
      %3348 = vmatpush1.bf16.msra.mxu0 0
      %3349 = vmatprep.subr.bf16.mxu0 0
      %3350 = vmatpush1.bf16.msra.mxu0 0
      %3351 = vmatprep.subr.bf16.mxu0 0
      %3352 = vmatpush1.bf16.msra.mxu0 0
      %3353 = vmatprep.subr.bf16.mxu0 0
      %3354 = vmatpush1.bf16.msra.mxu0 0
      %3355 = vmatprep.mubr.bf16.mxu0 0
      %3356 = vmatmul.mubr.bf16.gmra.mrb[0].mxu0 %v3318
      %v3357 = vpop.f32.mrb[0].mxu0
      %v3358 = vadd.f32 0.0, %v3357
      %v3359 = vpop.f32.mrb[0].mxu0
      %v3360 = vpop.f32.mrb[0].mxu0
      %v3361 = vpop.f32.mrb[0].mxu0
      %3362 = vdwg.mxu0
      %3363 = vrot.lane.b32.xlu0 %v953, 64
      %v3364 = vpop.permute.xlu0 %3363
      %v3366 = vsel %vm2931, %v2906, 0
      %v3369 = vsel %vm2935, %v3364, 0
      %3371 = vmatprep.subr.bf16.mxu0 0
      %3372 = vmatpush1.bf16.msra.mxu0 %v3369
      %3373 = vmatprep.subr.bf16.mxu0 0
      %3374 = vmatpush1.bf16.msra.mxu0 0
      %3375 = vmatprep.subr.bf16.mxu0 0
      %3376 = vmatpush1.bf16.msra.mxu0 0
      %3377 = vmatprep.subr.bf16.mxu0 0
      %3378 = vmatpush1.bf16.msra.mxu0 0
      %3379 = vmatprep.subr.bf16.mxu0 0
      %3380 = vmatpush1.bf16.msra.mxu0 0
      %3381 = vmatprep.subr.bf16.mxu0 0
      %3382 = vmatpush1.bf16.msra.mxu0 0
      %3383 = vmatprep.subr.bf16.mxu0 0
      %3384 = vmatpush1.bf16.msra.mxu0 0
      %3385 = vmatprep.subr.bf16.mxu0 0
      %3386 = vmatpush1.bf16.msra.mxu0 0
      %3387 = vmatprep.subr.bf16.mxu0 0
      %3388 = vmatpush1.bf16.msra.mxu0 0
      %3389 = vmatprep.subr.bf16.mxu0 0
      %3390 = vmatpush1.bf16.msra.mxu0 0
      %3391 = vmatprep.subr.bf16.mxu0 0
      %3392 = vmatpush1.bf16.msra.mxu0 0
      %3393 = vmatprep.subr.bf16.mxu0 0
      %3394 = vmatpush1.bf16.msra.mxu0 0
      %3395 = vmatprep.subr.bf16.mxu0 0
      %3396 = vmatpush1.bf16.msra.mxu0 0
      %3397 = vmatprep.subr.bf16.mxu0 0
      %3398 = vmatpush1.bf16.msra.mxu0 0
      %3399 = vmatprep.subr.bf16.mxu0 0
      %3400 = vmatpush1.bf16.msra.mxu0 0
      %3401 = vmatprep.subr.bf16.mxu0 0
      %3402 = vmatpush1.bf16.msra.mxu0 0
      %3403 = vmatprep.mubr.bf16.mxu0 0
      %3404 = vmatmul.mubr.bf16.gmra.mrb[0].mxu0 %v3366
      %v3405 = vpop.f32.mrb[0].mxu0
      %v3406 = vadd.f32 0.0, %v3405
      %v3407 = vpop.f32.mrb[0].mxu0
      %v3408 = vpop.f32.mrb[0].mxu0
      %v3409 = vpop.f32.mrb[0].mxu0
      %3410 = vdwg.mxu0
      %3411 = vrot.lane.b32.xlu0 %v954, 64
      %v3412 = vpop.permute.xlu0 %3411
      %v3414 = vsel %vm2931, %v2907, 0
      %v3417 = vsel %vm2935, %v3412, 0
      %3419 = vmatprep.subr.bf16.mxu0 0
      %3420 = vmatpush1.bf16.msra.mxu0 %v3417
      %3421 = vmatprep.subr.bf16.mxu0 0
      %3422 = vmatpush1.bf16.msra.mxu0 0
      %3423 = vmatprep.subr.bf16.mxu0 0
      %3424 = vmatpush1.bf16.msra.mxu0 0
      %3425 = vmatprep.subr.bf16.mxu0 0
      %3426 = vmatpush1.bf16.msra.mxu0 0
      %3427 = vmatprep.subr.bf16.mxu0 0
      %3428 = vmatpush1.bf16.msra.mxu0 0
      %3429 = vmatprep.subr.bf16.mxu0 0
      %3430 = vmatpush1.bf16.msra.mxu0 0
      %3431 = vmatprep.subr.bf16.mxu0 0
      %3432 = vmatpush1.bf16.msra.mxu0 0
      %3433 = vmatprep.subr.bf16.mxu0 0
      %3434 = vmatpush1.bf16.msra.mxu0 0
      %3435 = vmatprep.subr.bf16.mxu0 0
      %3436 = vmatpush1.bf16.msra.mxu0 0
      %3437 = vmatprep.subr.bf16.mxu0 0
      %3438 = vmatpush1.bf16.msra.mxu0 0
      %3439 = vmatprep.subr.bf16.mxu0 0
      %3440 = vmatpush1.bf16.msra.mxu0 0
      %3441 = vmatprep.subr.bf16.mxu0 0
      %3442 = vmatpush1.bf16.msra.mxu0 0
      %3443 = vmatprep.subr.bf16.mxu0 0
      %3444 = vmatpush1.bf16.msra.mxu0 0
      %3445 = vmatprep.subr.bf16.mxu0 0
      %3446 = vmatpush1.bf16.msra.mxu0 0
      %3447 = vmatprep.subr.bf16.mxu0 0
      %3448 = vmatpush1.bf16.msra.mxu0 0
      %3449 = vmatprep.subr.bf16.mxu0 0
      %3450 = vmatpush1.bf16.msra.mxu0 0
      %3451 = vmatprep.mubr.bf16.mxu0 0
      %3452 = vmatmul.mubr.bf16.gmra.mrb[0].mxu0 %v3414
      %v3453 = vpop.f32.mrb[0].mxu0
      %v3454 = vadd.f32 0.0, %v3453
      %v3455 = vpop.f32.mrb[0].mxu0
      %v3456 = vpop.f32.mrb[0].mxu0
      %v3457 = vpop.f32.mrb[0].mxu0
      %3458 = vdwg.mxu0
      %3459 = vrot.lane.b32.xlu0 %v955, 64
      %v3460 = vpop.permute.xlu0 %3459
      %v3462 = vsel %vm2931, %v2908, 0
      %v3465 = vsel %vm2935, %v3460, 0
      %3467 = vmatprep.subr.bf16.mxu0 0
      %3468 = vmatpush1.bf16.msra.mxu0 %v3465
      %3469 = vmatprep.subr.bf16.mxu0 0
      %3470 = vmatpush1.bf16.msra.mxu0 0
      %3471 = vmatprep.subr.bf16.mxu0 0
      %3472 = vmatpush1.bf16.msra.mxu0 0
      %3473 = vmatprep.subr.bf16.mxu0 0
      %3474 = vmatpush1.bf16.msra.mxu0 0
      %3475 = vmatprep.subr.bf16.mxu0 0
      %3476 = vmatpush1.bf16.msra.mxu0 0
      %3477 = vmatprep.subr.bf16.mxu0 0
      %3478 = vmatpush1.bf16.msra.mxu0 0
      %3479 = vmatprep.subr.bf16.mxu0 0
      %3480 = vmatpush1.bf16.msra.mxu0 0
      %3481 = vmatprep.subr.bf16.mxu0 0
      %3482 = vmatpush1.bf16.msra.mxu0 0
      %3483 = vmatprep.subr.bf16.mxu0 0
      %3484 = vmatpush1.bf16.msra.mxu0 0
      %3485 = vmatprep.subr.bf16.mxu0 0
      %3486 = vmatpush1.bf16.msra.mxu0 0
      %3487 = vmatprep.subr.bf16.mxu0 0
      %3488 = vmatpush1.bf16.msra.mxu0 0
      %3489 = vmatprep.subr.bf16.mxu0 0
      %3490 = vmatpush1.bf16.msra.mxu0 0
      %3491 = vmatprep.subr.bf16.mxu0 0
      %3492 = vmatpush1.bf16.msra.mxu0 0
      %3493 = vmatprep.subr.bf16.mxu0 0
      %3494 = vmatpush1.bf16.msra.mxu0 0
      %3495 = vmatprep.subr.bf16.mxu0 0
      %3496 = vmatpush1.bf16.msra.mxu0 0
      %3497 = vmatprep.subr.bf16.mxu0 0
      %3498 = vmatpush1.bf16.msra.mxu0 0
      %3499 = vmatprep.mubr.bf16.mxu0 0
      %3500 = vmatmul.mubr.bf16.gmra.mrb[0].mxu0 %v3462
      %v3501 = vpop.f32.mrb[0].mxu0
      %v3502 = vadd.f32 0.0, %v3501
      %v3503 = vpop.f32.mrb[0].mxu0
      %v3504 = vpop.f32.mrb[0].mxu0
      %v3505 = vpop.f32.mrb[0].mxu0
      %3506 = vdwg.mxu0
      %3507 = vrot.lane.b32.xlu0 %v956, 64
      %v3508 = vpop.permute.xlu0 %3507
      %v3510 = vsel %vm2931, %v2909, 0
      %v3513 = vsel %vm2935, %v3508, 0
      %3515 = vmatprep.subr.bf16.mxu0 0
      %3516 = vmatpush1.bf16.msra.mxu0 %v3513
      %3517 = vmatprep.subr.bf16.mxu0 0
      %3518 = vmatpush1.bf16.msra.mxu0 0
      %3519 = vmatprep.subr.bf16.mxu0 0
      %3520 = vmatpush1.bf16.msra.mxu0 0
      %3521 = vmatprep.subr.bf16.mxu0 0
      %3522 = vmatpush1.bf16.msra.mxu0 0
      %3523 = vmatprep.subr.bf16.mxu0 0
      %3524 = vmatpush1.bf16.msra.mxu0 0
      %3525 = vmatprep.subr.bf16.mxu0 0
      %3526 = vmatpush1.bf16.msra.mxu0 0
      %3527 = vmatprep.subr.bf16.mxu0 0
      %3528 = vmatpush1.bf16.msra.mxu0 0
      %3529 = vmatprep.subr.bf16.mxu0 0
      %3530 = vmatpush1.bf16.msra.mxu0 0
      %3531 = vmatprep.subr.bf16.mxu0 0
      %3532 = vmatpush1.bf16.msra.mxu0 0
      %3533 = vmatprep.subr.bf16.mxu0 0
      %3534 = vmatpush1.bf16.msra.mxu0 0
      %3535 = vmatprep.subr.bf16.mxu0 0
      %3536 = vmatpush1.bf16.msra.mxu0 0
      %3537 = vmatprep.subr.bf16.mxu0 0
      %3538 = vmatpush1.bf16.msra.mxu0 0
      %3539 = vmatprep.subr.bf16.mxu0 0
      %3540 = vmatpush1.bf16.msra.mxu0 0
      %3541 = vmatprep.subr.bf16.mxu0 0
      %3542 = vmatpush1.bf16.msra.mxu0 0
      %3543 = vmatprep.subr.bf16.mxu0 0
      %3544 = vmatpush1.bf16.msra.mxu0 0
      %3545 = vmatprep.subr.bf16.mxu0 0
      %3546 = vmatpush1.bf16.msra.mxu0 0
      %3547 = vmatprep.mubr.bf16.mxu0 0
      %3548 = vmatmul.mubr.bf16.gmra.mrb[0].mxu0 %v3510
      %v3549 = vpop.f32.mrb[0].mxu0
      %v3550 = vadd.f32 0.0, %v3549
      %v3551 = vpop.f32.mrb[0].mxu0
      %v3552 = vpop.f32.mrb[0].mxu0
      %v3553 = vpop.f32.mrb[0].mxu0
      %3554 = vdwg.mxu0
      %3555 = vrot.lane.b32.xlu0 %v957, 64
      %v3556 = vpop.permute.xlu0 %3555
      %v3558 = vsel %vm2931, %v2910, 0
      %v3561 = vsel %vm2935, %v3556, 0
      %3563 = vmatprep.subr.bf16.mxu0 0
      %3564 = vmatpush1.bf16.msra.mxu0 %v3561
      %3565 = vmatprep.subr.bf16.mxu0 0
      %3566 = vmatpush1.bf16.msra.mxu0 0
      %3567 = vmatprep.subr.bf16.mxu0 0
      %3568 = vmatpush1.bf16.msra.mxu0 0
      %3569 = vmatprep.subr.bf16.mxu0 0
      %3570 = vmatpush1.bf16.msra.mxu0 0
      %3571 = vmatprep.subr.bf16.mxu0 0
      %3572 = vmatpush1.bf16.msra.mxu0 0
      %3573 = vmatprep.subr.bf16.mxu0 0
      %3574 = vmatpush1.bf16.msra.mxu0 0
      %3575 = vmatprep.subr.bf16.mxu0 0
      %3576 = vmatpush1.bf16.msra.mxu0 0
      %3577 = vmatprep.subr.bf16.mxu0 0
      %3578 = vmatpush1.bf16.msra.mxu0 0
      %3579 = vmatprep.subr.bf16.mxu0 0
      %3580 = vmatpush1.bf16.msra.mxu0 0
      %3581 = vmatprep.subr.bf16.mxu0 0
      %3582 = vmatpush1.bf16.msra.mxu0 0
      %3583 = vmatprep.subr.bf16.mxu0 0
      %3584 = vmatpush1.bf16.msra.mxu0 0
      %3585 = vmatprep.subr.bf16.mxu0 0
      %3586 = vmatpush1.bf16.msra.mxu0 0
      %3587 = vmatprep.subr.bf16.mxu0 0
      %3588 = vmatpush1.bf16.msra.mxu0 0
      %3589 = vmatprep.subr.bf16.mxu0 0
      %3590 = vmatpush1.bf16.msra.mxu0 0
      %3591 = vmatprep.subr.bf16.mxu0 0
      %3592 = vmatpush1.bf16.msra.mxu0 0
      %3593 = vmatprep.subr.bf16.mxu0 0
      %3594 = vmatpush1.bf16.msra.mxu0 0
      %3595 = vmatprep.mubr.bf16.mxu0 0
      %3596 = vmatmul.mubr.bf16.gmra.mrb[0].mxu0 %v3558
      %v3597 = vpop.f32.mrb[0].mxu0
      %v3598 = vadd.f32 0.0, %v3597
      %v3599 = vpop.f32.mrb[0].mxu0
      %v3600 = vpop.f32.mrb[0].mxu0
      %v3601 = vpop.f32.mrb[0].mxu0
      %3602 = vdwg.mxu0
      %3603 = vrot.lane.b32.xlu0 %v958, 64
      %v3604 = vpop.permute.xlu0 %3603
      %v3606 = vsel %vm2931, %v2911, 0
      %v3609 = vsel %vm2935, %v3604, 0
      %3611 = vmatprep.subr.bf16.mxu0 0
      %3612 = vmatpush1.bf16.msra.mxu0 %v3609
      %3613 = vmatprep.subr.bf16.mxu0 0
      %3614 = vmatpush1.bf16.msra.mxu0 0
      %3615 = vmatprep.subr.bf16.mxu0 0
      %3616 = vmatpush1.bf16.msra.mxu0 0
      %3617 = vmatprep.subr.bf16.mxu0 0
      %3618 = vmatpush1.bf16.msra.mxu0 0
      %3619 = vmatprep.subr.bf16.mxu0 0
      %3620 = vmatpush1.bf16.msra.mxu0 0
      %3621 = vmatprep.subr.bf16.mxu0 0
      %3622 = vmatpush1.bf16.msra.mxu0 0
      %3623 = vmatprep.subr.bf16.mxu0 0
      %3624 = vmatpush1.bf16.msra.mxu0 0
      %3625 = vmatprep.subr.bf16.mxu0 0
      %3626 = vmatpush1.bf16.msra.mxu0 0
      %3627 = vmatprep.subr.bf16.mxu0 0
      %3628 = vmatpush1.bf16.msra.mxu0 0
      %3629 = vmatprep.subr.bf16.mxu0 0
      %3630 = vmatpush1.bf16.msra.mxu0 0
      %3631 = vmatprep.subr.bf16.mxu0 0
      %3632 = vmatpush1.bf16.msra.mxu0 0
      %3633 = vmatprep.subr.bf16.mxu0 0
      %3634 = vmatpush1.bf16.msra.mxu0 0
      %3635 = vmatprep.subr.bf16.mxu0 0
      %3636 = vmatpush1.bf16.msra.mxu0 0
      %3637 = vmatprep.subr.bf16.mxu0 0
      %3638 = vmatpush1.bf16.msra.mxu0 0
      %3639 = vmatprep.subr.bf16.mxu0 0
      %3640 = vmatpush1.bf16.msra.mxu0 0
      %3641 = vmatprep.subr.bf16.mxu0 0
      %3642 = vmatpush1.bf16.msra.mxu0 0
      %3643 = vmatprep.mubr.bf16.mxu0 0
      %3644 = vmatmul.mubr.bf16.gmra.mrb[0].mxu0 %v3606
      %v3645 = vpop.f32.mrb[0].mxu0
      %v3646 = vadd.f32 0.0, %v3645
      %v3647 = vpop.f32.mrb[0].mxu0
      %v3648 = vpop.f32.mrb[0].mxu0
      %v3649 = vpop.f32.mrb[0].mxu0
      %3650 = vdwg.mxu0
      %3651 = vrot.lane.b32.xlu0 %v959, 64
      %v3652 = vpop.permute.xlu0 %3651
      %v3654 = vsel %vm2931, %v2912, 0
      %v3657 = vsel %vm2935, %v3652, 0
      %3659 = vmatprep.subr.bf16.mxu0 0
      %3660 = vmatpush1.bf16.msra.mxu0 %v3657
      %3661 = vmatprep.subr.bf16.mxu0 0
      %3662 = vmatpush1.bf16.msra.mxu0 0
      %3663 = vmatprep.subr.bf16.mxu0 0
      %3664 = vmatpush1.bf16.msra.mxu0 0
      %3665 = vmatprep.subr.bf16.mxu0 0
      %3666 = vmatpush1.bf16.msra.mxu0 0
      %3667 = vmatprep.subr.bf16.mxu0 0
      %3668 = vmatpush1.bf16.msra.mxu0 0
      %3669 = vmatprep.subr.bf16.mxu0 0
      %3670 = vmatpush1.bf16.msra.mxu0 0
      %3671 = vmatprep.subr.bf16.mxu0 0
      %3672 = vmatpush1.bf16.msra.mxu0 0
      %3673 = vmatprep.subr.bf16.mxu0 0
      %3674 = vmatpush1.bf16.msra.mxu0 0
      %3675 = vmatprep.subr.bf16.mxu0 0
      %3676 = vmatpush1.bf16.msra.mxu0 0
      %3677 = vmatprep.subr.bf16.mxu0 0
      %3678 = vmatpush1.bf16.msra.mxu0 0
      %3679 = vmatprep.subr.bf16.mxu0 0
      %3680 = vmatpush1.bf16.msra.mxu0 0
      %3681 = vmatprep.subr.bf16.mxu0 0
      %3682 = vmatpush1.bf16.msra.mxu0 0
      %3683 = vmatprep.subr.bf16.mxu0 0
      %3684 = vmatpush1.bf16.msra.mxu0 0
      %3685 = vmatprep.subr.bf16.mxu0 0
      %3686 = vmatpush1.bf16.msra.mxu0 0
      %3687 = vmatprep.subr.bf16.mxu0 0
      %3688 = vmatpush1.bf16.msra.mxu0 0
      %3689 = vmatprep.subr.bf16.mxu0 0
      %3690 = vmatpush1.bf16.msra.mxu0 0
      %3691 = vmatprep.mubr.bf16.mxu0 0
      %3692 = vmatmul.mubr.bf16.gmra.mrb[0].mxu0 %v3654
      %v3693 = vpop.f32.mrb[0].mxu0
      %v3694 = vadd.f32 0.0, %v3693
      %v3695 = vpop.f32.mrb[0].mxu0
      %v3696 = vpop.f32.mrb[0].mxu0
      %v3697 = vpop.f32.mrb[0].mxu0
      %3698 = vdwg.mxu0
      %3699 = vrot.lane.b32.xlu0 %v960, 64
      %v3700 = vpop.permute.xlu0 %3699
      %v3702 = vsel %vm2931, %v2913, 0
      %v3705 = vsel %vm2935, %v3700, 0
      %3707 = vmatprep.subr.bf16.mxu0 0
      %3708 = vmatpush1.bf16.msra.mxu0 %v3705
      %3709 = vmatprep.subr.bf16.mxu0 0
      %3710 = vmatpush1.bf16.msra.mxu0 0
      %3711 = vmatprep.subr.bf16.mxu0 0
      %3712 = vmatpush1.bf16.msra.mxu0 0
      %3713 = vmatprep.subr.bf16.mxu0 0
      %3714 = vmatpush1.bf16.msra.mxu0 0
      %3715 = vmatprep.subr.bf16.mxu0 0
      %3716 = vmatpush1.bf16.msra.mxu0 0
      %3717 = vmatprep.subr.bf16.mxu0 0
      %3718 = vmatpush1.bf16.msra.mxu0 0
      %3719 = vmatprep.subr.bf16.mxu0 0
      %3720 = vmatpush1.bf16.msra.mxu0 0
      %3721 = vmatprep.subr.bf16.mxu0 0
      %3722 = vmatpush1.bf16.msra.mxu0 0
      %3723 = vmatprep.subr.bf16.mxu0 0
      %3724 = vmatpush1.bf16.msra.mxu0 0
      %3725 = vmatprep.subr.bf16.mxu0 0
      %3726 = vmatpush1.bf16.msra.mxu0 0
      %3727 = vmatprep.subr.bf16.mxu0 0
      %3728 = vmatpush1.bf16.msra.mxu0 0
      %3729 = vmatprep.subr.bf16.mxu0 0
      %3730 = vmatpush1.bf16.msra.mxu0 0
      %3731 = vmatprep.subr.bf16.mxu0 0
      %3732 = vmatpush1.bf16.msra.mxu0 0
      %3733 = vmatprep.subr.bf16.mxu0 0
      %3734 = vmatpush1.bf16.msra.mxu0 0
      %3735 = vmatprep.subr.bf16.mxu0 0
      %3736 = vmatpush1.bf16.msra.mxu0 0
      %3737 = vmatprep.subr.bf16.mxu0 0
      %3738 = vmatpush1.bf16.msra.mxu0 0
      %3739 = vmatprep.mubr.bf16.mxu0 0
      %3740 = vmatmul.mubr.bf16.gmra.mrb[0].mxu0 %v3702
      %v3741 = vpop.f32.mrb[0].mxu0
      %v3742 = vadd.f32 0.0, %v3741
      %v3743 = vpop.f32.mrb[0].mxu0
      %v3744 = vpop.f32.mrb[0].mxu0
      %v3745 = vpop.f32.mrb[0].mxu0
      %3746 = vdwg.mxu0
      %3747 = vrot.lane.b32.xlu0 %v961, 64
      %v3748 = vpop.permute.xlu0 %3747
      %v3750 = vsel %vm2931, %v2914, 0
      %v3753 = vsel %vm2935, %v3748, 0
      %3755 = vmatprep.subr.bf16.mxu0 0
      %3756 = vmatpush1.bf16.msra.mxu0 %v3753
      %3757 = vmatprep.subr.bf16.mxu0 0
      %3758 = vmatpush1.bf16.msra.mxu0 0
      %3759 = vmatprep.subr.bf16.mxu0 0
      %3760 = vmatpush1.bf16.msra.mxu0 0
      %3761 = vmatprep.subr.bf16.mxu0 0
      %3762 = vmatpush1.bf16.msra.mxu0 0
      %3763 = vmatprep.subr.bf16.mxu0 0
      %3764 = vmatpush1.bf16.msra.mxu0 0
      %3765 = vmatprep.subr.bf16.mxu0 0
      %3766 = vmatpush1.bf16.msra.mxu0 0
      %3767 = vmatprep.subr.bf16.mxu0 0
      %3768 = vmatpush1.bf16.msra.mxu0 0
      %3769 = vmatprep.subr.bf16.mxu0 0
      %3770 = vmatpush1.bf16.msra.mxu0 0
      %3771 = vmatprep.subr.bf16.mxu0 0
      %3772 = vmatpush1.bf16.msra.mxu0 0
      %3773 = vmatprep.subr.bf16.mxu0 0
      %3774 = vmatpush1.bf16.msra.mxu0 0
      %3775 = vmatprep.subr.bf16.mxu0 0
      %3776 = vmatpush1.bf16.msra.mxu0 0
      %3777 = vmatprep.subr.bf16.mxu0 0
      %3778 = vmatpush1.bf16.msra.mxu0 0
      %3779 = vmatprep.subr.bf16.mxu0 0
      %3780 = vmatpush1.bf16.msra.mxu0 0
      %3781 = vmatprep.subr.bf16.mxu0 0
      %3782 = vmatpush1.bf16.msra.mxu0 0
      %3783 = vmatprep.subr.bf16.mxu0 0
      %3784 = vmatpush1.bf16.msra.mxu0 0
      %3785 = vmatprep.subr.bf16.mxu0 0
      %3786 = vmatpush1.bf16.msra.mxu0 0
      %3787 = vmatprep.mubr.bf16.mxu0 0
      %3788 = vmatmul.mubr.bf16.gmra.mrb[0].mxu0 %v3750
      %v3789 = vpop.f32.mrb[0].mxu0
      %v3790 = vadd.f32 0.0, %v3789
      %v3791 = vpop.f32.mrb[0].mxu0
      %v3792 = vpop.f32.mrb[0].mxu0
      %v3793 = vpop.f32.mrb[0].mxu0
      %3794 = vdwg.mxu0
      %3795 = vrot.lane.b32.xlu0 %v962, 64
      %v3796 = vpop.permute.xlu0 %3795
      %v3798 = vsel %vm2931, %v2915, 0
      %v3801 = vsel %vm2935, %v3796, 0
      %3803 = vmatprep.subr.bf16.mxu0 0
      %3804 = vmatpush1.bf16.msra.mxu0 %v3801
      %3805 = vmatprep.subr.bf16.mxu0 0
      %3806 = vmatpush1.bf16.msra.mxu0 0
      %3807 = vmatprep.subr.bf16.mxu0 0
      %3808 = vmatpush1.bf16.msra.mxu0 0
      %3809 = vmatprep.subr.bf16.mxu0 0
      %3810 = vmatpush1.bf16.msra.mxu0 0
      %3811 = vmatprep.subr.bf16.mxu0 0
      %3812 = vmatpush1.bf16.msra.mxu0 0
      %3813 = vmatprep.subr.bf16.mxu0 0
      %3814 = vmatpush1.bf16.msra.mxu0 0
      %3815 = vmatprep.subr.bf16.mxu0 0
      %3816 = vmatpush1.bf16.msra.mxu0 0
      %3817 = vmatprep.subr.bf16.mxu0 0
      %3818 = vmatpush1.bf16.msra.mxu0 0
      %3819 = vmatprep.subr.bf16.mxu0 0
      %3820 = vmatpush1.bf16.msra.mxu0 0
      %3821 = vmatprep.subr.bf16.mxu0 0
      %3822 = vmatpush1.bf16.msra.mxu0 0
      %3823 = vmatprep.subr.bf16.mxu0 0
      %3824 = vmatpush1.bf16.msra.mxu0 0
      %3825 = vmatprep.subr.bf16.mxu0 0
      %3826 = vmatpush1.bf16.msra.mxu0 0
      %3827 = vmatprep.subr.bf16.mxu0 0
      %3828 = vmatpush1.bf16.msra.mxu0 0
      %3829 = vmatprep.subr.bf16.mxu0 0
      %3830 = vmatpush1.bf16.msra.mxu0 0
      %3831 = vmatprep.subr.bf16.mxu0 0
      %3832 = vmatpush1.bf16.msra.mxu0 0
      %3833 = vmatprep.subr.bf16.mxu0 0
      %3834 = vmatpush1.bf16.msra.mxu0 0
      %3835 = vmatprep.mubr.bf16.mxu0 0
      %3836 = vmatmul.mubr.bf16.gmra.mrb[0].mxu0 %v3798
      %v3837 = vpop.f32.mrb[0].mxu0
      %v3838 = vadd.f32 0.0, %v3837
      %v3839 = vpop.f32.mrb[0].mxu0
      %v3840 = vpop.f32.mrb[0].mxu0
      %v3841 = vpop.f32.mrb[0].mxu0
      %3842 = vdwg.mxu0
      %3843 = vrot.lane.b32.xlu0 %v963, 64
      %v3844 = vpop.permute.xlu0 %3843
      %v3846 = vsel %vm2931, %v2916, 0
      %v3849 = vsel %vm2935, %v3844, 0
      %3851 = vmatprep.subr.bf16.mxu0 0
      %3852 = vmatpush1.bf16.msra.mxu0 %v3849
      %3853 = vmatprep.subr.bf16.mxu0 0
      %3854 = vmatpush1.bf16.msra.mxu0 0
      %3855 = vmatprep.subr.bf16.mxu0 0
      %3856 = vmatpush1.bf16.msra.mxu0 0
      %3857 = vmatprep.subr.bf16.mxu0 0
      %3858 = vmatpush1.bf16.msra.mxu0 0
      %3859 = vmatprep.subr.bf16.mxu0 0
      %3860 = vmatpush1.bf16.msra.mxu0 0
      %3861 = vmatprep.subr.bf16.mxu0 0
      %3862 = vmatpush1.bf16.msra.mxu0 0
      %3863 = vmatprep.subr.bf16.mxu0 0
      %3864 = vmatpush1.bf16.msra.mxu0 0
      %3865 = vmatprep.subr.bf16.mxu0 0
      %3866 = vmatpush1.bf16.msra.mxu0 0
      %3867 = vmatprep.subr.bf16.mxu0 0
      %3868 = vmatpush1.bf16.msra.mxu0 0
      %3869 = vmatprep.subr.bf16.mxu0 0
      %3870 = vmatpush1.bf16.msra.mxu0 0
      %3871 = vmatprep.subr.bf16.mxu0 0
      %3872 = vmatpush1.bf16.msra.mxu0 0
      %3873 = vmatprep.subr.bf16.mxu0 0
      %3874 = vmatpush1.bf16.msra.mxu0 0
      %3875 = vmatprep.subr.bf16.mxu0 0
      %3876 = vmatpush1.bf16.msra.mxu0 0
      %3877 = vmatprep.subr.bf16.mxu0 0
      %3878 = vmatpush1.bf16.msra.mxu0 0
      %3879 = vmatprep.subr.bf16.mxu0 0
      %3880 = vmatpush1.bf16.msra.mxu0 0
      %3881 = vmatprep.subr.bf16.mxu0 0
      %3882 = vmatpush1.bf16.msra.mxu0 0
      %3883 = vmatprep.mubr.bf16.mxu0 0
      %3884 = vmatmul.mubr.bf16.gmra.mrb[0].mxu0 %v3846
      %v3885 = vpop.f32.mrb[0].mxu0
      %v3886 = vadd.f32 0.0, %v3885
      %v3887 = vpop.f32.mrb[0].mxu0
      %v3888 = vpop.f32.mrb[0].mxu0
      %v3889 = vpop.f32.mrb[0].mxu0
      %3890 = vdwg.mxu0
      %3891 = vrot.lane.b32.xlu0 %v964, 64
      %v3892 = vpop.permute.xlu0 %3891
      %v3894 = vsel %vm2931, %v2917, 0
      %v3897 = vsel %vm2935, %v3892, 0
      %3899 = vmatprep.subr.bf16.mxu0 0
      %3900 = vmatpush1.bf16.msra.mxu0 %v3897
      %3901 = vmatprep.subr.bf16.mxu0 0
      %3902 = vmatpush1.bf16.msra.mxu0 0
      %3903 = vmatprep.subr.bf16.mxu0 0
      %3904 = vmatpush1.bf16.msra.mxu0 0
      %3905 = vmatprep.subr.bf16.mxu0 0
      %3906 = vmatpush1.bf16.msra.mxu0 0
      %3907 = vmatprep.subr.bf16.mxu0 0
      %3908 = vmatpush1.bf16.msra.mxu0 0
      %3909 = vmatprep.subr.bf16.mxu0 0
      %3910 = vmatpush1.bf16.msra.mxu0 0
      %3911 = vmatprep.subr.bf16.mxu0 0
      %3912 = vmatpush1.bf16.msra.mxu0 0
      %3913 = vmatprep.subr.bf16.mxu0 0
      %3914 = vmatpush1.bf16.msra.mxu0 0
      %3915 = vmatprep.subr.bf16.mxu0 0
      %3916 = vmatpush1.bf16.msra.mxu0 0
      %3917 = vmatprep.subr.bf16.mxu0 0
      %3918 = vmatpush1.bf16.msra.mxu0 0
      %3919 = vmatprep.subr.bf16.mxu0 0
      %3920 = vmatpush1.bf16.msra.mxu0 0
      %3921 = vmatprep.subr.bf16.mxu0 0
      %3922 = vmatpush1.bf16.msra.mxu0 0
      %3923 = vmatprep.subr.bf16.mxu0 0
      %3924 = vmatpush1.bf16.msra.mxu0 0
      %3925 = vmatprep.subr.bf16.mxu0 0
      %3926 = vmatpush1.bf16.msra.mxu0 0
      %3927 = vmatprep.subr.bf16.mxu0 0
      %3928 = vmatpush1.bf16.msra.mxu0 0
      %3929 = vmatprep.subr.bf16.mxu0 0
      %3930 = vmatpush1.bf16.msra.mxu0 0
      %3931 = vmatprep.mubr.bf16.mxu0 0
      %3932 = vmatmul.mubr.bf16.gmra.mrb[0].mxu0 %v3894
      %v3933 = vpop.f32.mrb[0].mxu0
      %v3934 = vadd.f32 0.0, %v3933
      %v3935 = vpop.f32.mrb[0].mxu0
      %v3936 = vpop.f32.mrb[0].mxu0
      %v3937 = vpop.f32.mrb[0].mxu0
      %3938 = vdwg.mxu0
      %3939 = vrot.lane.b32.xlu0 %v965, 64
      %v3940 = vpop.permute.xlu0 %3939
      %v3942 = vsel %vm2931, %v2918, 0
      %v3945 = vsel %vm2935, %v3940, 0
      %3947 = vmatprep.subr.bf16.mxu0 0
      %3948 = vmatpush1.bf16.msra.mxu0 %v3945
      %3949 = vmatprep.subr.bf16.mxu0 0
      %3950 = vmatpush1.bf16.msra.mxu0 0
      %3951 = vmatprep.subr.bf16.mxu0 0
      %3952 = vmatpush1.bf16.msra.mxu0 0
      %3953 = vmatprep.subr.bf16.mxu0 0
      %3954 = vmatpush1.bf16.msra.mxu0 0
      %3955 = vmatprep.subr.bf16.mxu0 0
      %3956 = vmatpush1.bf16.msra.mxu0 0
      %3957 = vmatprep.subr.bf16.mxu0 0
      %3958 = vmatpush1.bf16.msra.mxu0 0
      %3959 = vmatprep.subr.bf16.mxu0 0
      %3960 = vmatpush1.bf16.msra.mxu0 0
      %3961 = vmatprep.subr.bf16.mxu0 0
      %3962 = vmatpush1.bf16.msra.mxu0 0
      %3963 = vmatprep.subr.bf16.mxu0 0
      %3964 = vmatpush1.bf16.msra.mxu0 0
      %3965 = vmatprep.subr.bf16.mxu0 0
      %3966 = vmatpush1.bf16.msra.mxu0 0
      %3967 = vmatprep.subr.bf16.mxu0 0
      %3968 = vmatpush1.bf16.msra.mxu0 0
      %3969 = vmatprep.subr.bf16.mxu0 0
      %3970 = vmatpush1.bf16.msra.mxu0 0
      %3971 = vmatprep.subr.bf16.mxu0 0
      %3972 = vmatpush1.bf16.msra.mxu0 0
      %3973 = vmatprep.subr.bf16.mxu0 0
      %3974 = vmatpush1.bf16.msra.mxu0 0
      %3975 = vmatprep.subr.bf16.mxu0 0
      %3976 = vmatpush1.bf16.msra.mxu0 0
      %3977 = vmatprep.subr.bf16.mxu0 0
      %3978 = vmatpush1.bf16.msra.mxu0 0
      %3979 = vmatprep.mubr.bf16.mxu0 0
      %3980 = vmatmul.mubr.bf16.gmra.mrb[0].mxu0 %v3942
      %v3981 = vpop.f32.mrb[0].mxu0
      %v3982 = vadd.f32 0.0, %v3981
      %v3983 = vpop.f32.mrb[0].mxu0
      %v3984 = vpop.f32.mrb[0].mxu0
      %v3985 = vpop.f32.mrb[0].mxu0
      %3986 = vdwg.mxu0
      %3987 = vrot.lane.b32.xlu0 %v966, 64
      %v3988 = vpop.permute.xlu0 %3987
      %v3990 = vsel %vm2931, %v2919, 0
      %v3993 = vsel %vm2935, %v3988, 0
      %3995 = vmatprep.subr.bf16.mxu0 0
      %3996 = vmatpush1.bf16.msra.mxu0 %v3993
      %3997 = vmatprep.subr.bf16.mxu0 0
      %3998 = vmatpush1.bf16.msra.mxu0 0
      %3999 = vmatprep.subr.bf16.mxu0 0
      %4000 = vmatpush1.bf16.msra.mxu0 0
      %4001 = vmatprep.subr.bf16.mxu0 0
      %4002 = vmatpush1.bf16.msra.mxu0 0
      %4003 = vmatprep.subr.bf16.mxu0 0
      %4004 = vmatpush1.bf16.msra.mxu0 0
      %4005 = vmatprep.subr.bf16.mxu0 0
      %4006 = vmatpush1.bf16.msra.mxu0 0
      %4007 = vmatprep.subr.bf16.mxu0 0
      %4008 = vmatpush1.bf16.msra.mxu0 0
      %4009 = vmatprep.subr.bf16.mxu0 0
      %4010 = vmatpush1.bf16.msra.mxu0 0
      %4011 = vmatprep.subr.bf16.mxu0 0
      %4012 = vmatpush1.bf16.msra.mxu0 0
      %4013 = vmatprep.subr.bf16.mxu0 0
      %4014 = vmatpush1.bf16.msra.mxu0 0
      %4015 = vmatprep.subr.bf16.mxu0 0
      %4016 = vmatpush1.bf16.msra.mxu0 0
      %4017 = vmatprep.subr.bf16.mxu0 0
      %4018 = vmatpush1.bf16.msra.mxu0 0
      %4019 = vmatprep.subr.bf16.mxu0 0
      %4020 = vmatpush1.bf16.msra.mxu0 0
      %4021 = vmatprep.subr.bf16.mxu0 0
      %4022 = vmatpush1.bf16.msra.mxu0 0
      %4023 = vmatprep.subr.bf16.mxu0 0
      %4024 = vmatpush1.bf16.msra.mxu0 0
      %4025 = vmatprep.subr.bf16.mxu0 0
      %4026 = vmatpush1.bf16.msra.mxu0 0
      %4027 = vmatprep.mubr.bf16.mxu0 0
      %4028 = vmatmul.mubr.bf16.gmra.mrb[0].mxu0 %v3990
      %v4029 = vpop.f32.mrb[0].mxu0
      %v4030 = vadd.f32 0.0, %v4029
      %v4031 = vpop.f32.mrb[0].mxu0
      %v4032 = vpop.f32.mrb[0].mxu0
      %v4033 = vpop.f32.mrb[0].mxu0
      %4034 = vdwg.mxu0
      %4035 = vrot.lane.b32.xlu0 %v967, 64
      %v4036 = vpop.permute.xlu0 %4035
      %v4038 = vsel %vm2931, %v2920, 0
      %v4041 = vsel %vm2935, %v4036, 0
      %4043 = vmatprep.subr.bf16.mxu0 0
      %4044 = vmatpush1.bf16.msra.mxu0 %v4041
      %4045 = vmatprep.subr.bf16.mxu0 0
      %4046 = vmatpush1.bf16.msra.mxu0 0
      %4047 = vmatprep.subr.bf16.mxu0 0
      %4048 = vmatpush1.bf16.msra.mxu0 0
      %4049 = vmatprep.subr.bf16.mxu0 0
      %4050 = vmatpush1.bf16.msra.mxu0 0
      %4051 = vmatprep.subr.bf16.mxu0 0
      %4052 = vmatpush1.bf16.msra.mxu0 0
      %4053 = vmatprep.subr.bf16.mxu0 0
      %4054 = vmatpush1.bf16.msra.mxu0 0
      %4055 = vmatprep.subr.bf16.mxu0 0
      %4056 = vmatpush1.bf16.msra.mxu0 0
      %4057 = vmatprep.subr.bf16.mxu0 0
      %4058 = vmatpush1.bf16.msra.mxu0 0
      %4059 = vmatprep.subr.bf16.mxu0 0
      %4060 = vmatpush1.bf16.msra.mxu0 0
      %4061 = vmatprep.subr.bf16.mxu0 0
      %4062 = vmatpush1.bf16.msra.mxu0 0
      %4063 = vmatprep.subr.bf16.mxu0 0
      %4064 = vmatpush1.bf16.msra.mxu0 0
      %4065 = vmatprep.subr.bf16.mxu0 0
      %4066 = vmatpush1.bf16.msra.mxu0 0
      %4067 = vmatprep.subr.bf16.mxu0 0
      %4068 = vmatpush1.bf16.msra.mxu0 0
      %4069 = vmatprep.subr.bf16.mxu0 0
      %4070 = vmatpush1.bf16.msra.mxu0 0
      %4071 = vmatprep.subr.bf16.mxu0 0
      %4072 = vmatpush1.bf16.msra.mxu0 0
      %4073 = vmatprep.subr.bf16.mxu0 0
      %4074 = vmatpush1.bf16.msra.mxu0 0
      %4075 = vmatprep.mubr.bf16.mxu0 0
      %4076 = vmatmul.mubr.bf16.gmra.mrb[0].mxu0 %v4038
      %v4077 = vpop.f32.mrb[0].mxu0
      %v4078 = vadd.f32 0.0, %v4077
      %v4079 = vpop.f32.mrb[0].mxu0
      %v4080 = vpop.f32.mrb[0].mxu0
      %v4081 = vpop.f32.mrb[0].mxu0
      %4082 = vdwg.mxu0
      %4083 = vrot.lane.b32.xlu0 %v968, 64
      %v4084 = vpop.permute.xlu0 %4083
      %v4086 = vsel %vm2931, %v2921, 0
      %v4089 = vsel %vm2935, %v4084, 0
      %4091 = vmatprep.subr.bf16.mxu0 0
      %4092 = vmatpush1.bf16.msra.mxu0 %v4089
      %4093 = vmatprep.subr.bf16.mxu0 0
      %4094 = vmatpush1.bf16.msra.mxu0 0
      %4095 = vmatprep.subr.bf16.mxu0 0
      %4096 = vmatpush1.bf16.msra.mxu0 0
      %4097 = vmatprep.subr.bf16.mxu0 0
      %4098 = vmatpush1.bf16.msra.mxu0 0
      %4099 = vmatprep.subr.bf16.mxu0 0
      %4100 = vmatpush1.bf16.msra.mxu0 0
      %4101 = vmatprep.subr.bf16.mxu0 0
      %4102 = vmatpush1.bf16.msra.mxu0 0
      %4103 = vmatprep.subr.bf16.mxu0 0
      %4104 = vmatpush1.bf16.msra.mxu0 0
      %4105 = vmatprep.subr.bf16.mxu0 0
      %4106 = vmatpush1.bf16.msra.mxu0 0
      %4107 = vmatprep.subr.bf16.mxu0 0
      %4108 = vmatpush1.bf16.msra.mxu0 0
      %4109 = vmatprep.subr.bf16.mxu0 0
      %4110 = vmatpush1.bf16.msra.mxu0 0
      %4111 = vmatprep.subr.bf16.mxu0 0
      %4112 = vmatpush1.bf16.msra.mxu0 0
      %4113 = vmatprep.subr.bf16.mxu0 0
      %4114 = vmatpush1.bf16.msra.mxu0 0
      %4115 = vmatprep.subr.bf16.mxu0 0
      %4116 = vmatpush1.bf16.msra.mxu0 0
      %4117 = vmatprep.subr.bf16.mxu0 0
      %4118 = vmatpush1.bf16.msra.mxu0 0
      %4119 = vmatprep.subr.bf16.mxu0 0
      %4120 = vmatpush1.bf16.msra.mxu0 0
      %4121 = vmatprep.subr.bf16.mxu0 0
      %4122 = vmatpush1.bf16.msra.mxu0 0
      %4123 = vmatprep.mubr.bf16.mxu0 0
      %4124 = vmatmul.mubr.bf16.gmra.mrb[0].mxu0 %v4086
      %v4125 = vpop.f32.mrb[0].mxu0
      %v4126 = vadd.f32 0.0, %v4125
      %v4127 = vpop.f32.mrb[0].mxu0
      %v4128 = vpop.f32.mrb[0].mxu0
      %v4129 = vpop.f32.mrb[0].mxu0
      %4130 = vdwg.mxu0
      %4131 = vrot.lane.b32.xlu0 %v969, 64
      %v4132 = vpop.permute.xlu0 %4131
      %v4134 = vsel %vm2931, %v2922, 0
      %v4137 = vsel %vm2935, %v4132, 0
      %4139 = vmatprep.subr.bf16.mxu0 0
      %4140 = vmatpush1.bf16.msra.mxu0 %v4137
      %4141 = vmatprep.subr.bf16.mxu0 0
      %4142 = vmatpush1.bf16.msra.mxu0 0
      %4143 = vmatprep.subr.bf16.mxu0 0
      %4144 = vmatpush1.bf16.msra.mxu0 0
      %4145 = vmatprep.subr.bf16.mxu0 0
      %4146 = vmatpush1.bf16.msra.mxu0 0
      %4147 = vmatprep.subr.bf16.mxu0 0
      %4148 = vmatpush1.bf16.msra.mxu0 0
      %4149 = vmatprep.subr.bf16.mxu0 0
      %4150 = vmatpush1.bf16.msra.mxu0 0
      %4151 = vmatprep.subr.bf16.mxu0 0
      %4152 = vmatpush1.bf16.msra.mxu0 0
      %4153 = vmatprep.subr.bf16.mxu0 0
      %4154 = vmatpush1.bf16.msra.mxu0 0
      %4155 = vmatprep.subr.bf16.mxu0 0
      %4156 = vmatpush1.bf16.msra.mxu0 0
      %4157 = vmatprep.subr.bf16.mxu0 0
      %4158 = vmatpush1.bf16.msra.mxu0 0
      %4159 = vmatprep.subr.bf16.mxu0 0
      %4160 = vmatpush1.bf16.msra.mxu0 0
      %4161 = vmatprep.subr.bf16.mxu0 0
      %4162 = vmatpush1.bf16.msra.mxu0 0
      %4163 = vmatprep.subr.bf16.mxu0 0
      %4164 = vmatpush1.bf16.msra.mxu0 0
      %4165 = vmatprep.subr.bf16.mxu0 0
      %4166 = vmatpush1.bf16.msra.mxu0 0
      %4167 = vmatprep.subr.bf16.mxu0 0
      %4168 = vmatpush1.bf16.msra.mxu0 0
      %4169 = vmatprep.subr.bf16.mxu0 0
      %4170 = vmatpush1.bf16.msra.mxu0 0
      %4171 = vmatprep.mubr.bf16.mxu0 0
      %4172 = vmatmul.mubr.bf16.gmra.mrb[0].mxu0 %v4134
      %v4173 = vpop.f32.mrb[0].mxu0
      %v4174 = vadd.f32 0.0, %v4173
      %v4175 = vpop.f32.mrb[0].mxu0
      %v4176 = vpop.f32.mrb[0].mxu0
      %v4177 = vpop.f32.mrb[0].mxu0
      %4178 = vdwg.mxu0
      %4179 = vrot.lane.b32.xlu0 %v970, 64
      %v4180 = vpop.permute.xlu0 %4179
      %v4182 = vsel %vm2931, %v2923, 0
      %v4185 = vsel %vm2935, %v4180, 0
      %4187 = vmatprep.subr.bf16.mxu0 0
      %4188 = vmatpush1.bf16.msra.mxu0 %v4185
      %4189 = vmatprep.subr.bf16.mxu0 0
      %4190 = vmatpush1.bf16.msra.mxu0 0
      %4191 = vmatprep.subr.bf16.mxu0 0
      %4192 = vmatpush1.bf16.msra.mxu0 0
      %4193 = vmatprep.subr.bf16.mxu0 0
      %4194 = vmatpush1.bf16.msra.mxu0 0
      %4195 = vmatprep.subr.bf16.mxu0 0
      %4196 = vmatpush1.bf16.msra.mxu0 0
      %4197 = vmatprep.subr.bf16.mxu0 0
      %4198 = vmatpush1.bf16.msra.mxu0 0
      %4199 = vmatprep.subr.bf16.mxu0 0
      %4200 = vmatpush1.bf16.msra.mxu0 0
      %4201 = vmatprep.subr.bf16.mxu0 0
      %4202 = vmatpush1.bf16.msra.mxu0 0
      %4203 = vmatprep.subr.bf16.mxu0 0
      %4204 = vmatpush1.bf16.msra.mxu0 0
      %4205 = vmatprep.subr.bf16.mxu0 0
      %4206 = vmatpush1.bf16.msra.mxu0 0
      %4207 = vmatprep.subr.bf16.mxu0 0
      %4208 = vmatpush1.bf16.msra.mxu0 0
      %4209 = vmatprep.subr.bf16.mxu0 0
      %4210 = vmatpush1.bf16.msra.mxu0 0
      %4211 = vmatprep.subr.bf16.mxu0 0
      %4212 = vmatpush1.bf16.msra.mxu0 0
      %4213 = vmatprep.subr.bf16.mxu0 0
      %4214 = vmatpush1.bf16.msra.mxu0 0
      %4215 = vmatprep.subr.bf16.mxu0 0
      %4216 = vmatpush1.bf16.msra.mxu0 0
      %4217 = vmatprep.subr.bf16.mxu0 0
      %4218 = vmatpush1.bf16.msra.mxu0 0
      %4219 = vmatprep.mubr.bf16.mxu0 0
      %4220 = vmatmul.mubr.bf16.gmra.mrb[0].mxu0 %v4182
      %v4221 = vpop.f32.mrb[0].mxu0
      %v4222 = vadd.f32 0.0, %v4221
      %v4223 = vpop.f32.mrb[0].mxu0
      %v4224 = vpop.f32.mrb[0].mxu0
      %v4225 = vpop.f32.mrb[0].mxu0
      %4226 = vdwg.mxu0
      %4227 = vrot.lane.b32.xlu0 %v971, 64
      %v4228 = vpop.permute.xlu0 %4227
      %v4230 = vsel %vm2931, %v2924, 0
      %v4233 = vsel %vm2935, %v4228, 0
      %4235 = vmatprep.subr.bf16.mxu0 0
      %4236 = vmatpush1.bf16.msra.mxu0 %v4233
      %4237 = vmatprep.subr.bf16.mxu0 0
      %4238 = vmatpush1.bf16.msra.mxu0 0
      %4239 = vmatprep.subr.bf16.mxu0 0
      %4240 = vmatpush1.bf16.msra.mxu0 0
      %4241 = vmatprep.subr.bf16.mxu0 0
      %4242 = vmatpush1.bf16.msra.mxu0 0
      %4243 = vmatprep.subr.bf16.mxu0 0
      %4244 = vmatpush1.bf16.msra.mxu0 0
      %4245 = vmatprep.subr.bf16.mxu0 0
      %4246 = vmatpush1.bf16.msra.mxu0 0
      %4247 = vmatprep.subr.bf16.mxu0 0
      %4248 = vmatpush1.bf16.msra.mxu0 0
      %4249 = vmatprep.subr.bf16.mxu0 0
      %4250 = vmatpush1.bf16.msra.mxu0 0
      %4251 = vmatprep.subr.bf16.mxu0 0
      %4252 = vmatpush1.bf16.msra.mxu0 0
      %4253 = vmatprep.subr.bf16.mxu0 0
      %4254 = vmatpush1.bf16.msra.mxu0 0
      %4255 = vmatprep.subr.bf16.mxu0 0
      %4256 = vmatpush1.bf16.msra.mxu0 0
      %4257 = vmatprep.subr.bf16.mxu0 0
      %4258 = vmatpush1.bf16.msra.mxu0 0
      %4259 = vmatprep.subr.bf16.mxu0 0
      %4260 = vmatpush1.bf16.msra.mxu0 0
      %4261 = vmatprep.subr.bf16.mxu0 0
      %4262 = vmatpush1.bf16.msra.mxu0 0
      %4263 = vmatprep.subr.bf16.mxu0 0
      %4264 = vmatpush1.bf16.msra.mxu0 0
      %4265 = vmatprep.subr.bf16.mxu0 0
      %4266 = vmatpush1.bf16.msra.mxu0 0
      %4267 = vmatprep.mubr.bf16.mxu0 0
      %4268 = vmatmul.mubr.bf16.gmra.mrb[0].mxu0 %v4230
      %v4269 = vpop.f32.mrb[0].mxu0
      %v4270 = vadd.f32 0.0, %v4269
      %v4271 = vpop.f32.mrb[0].mxu0
      %v4272 = vpop.f32.mrb[0].mxu0
      %v4273 = vpop.f32.mrb[0].mxu0
      %4274 = vdwg.mxu0
      %4275 = vrot.lane.b32.xlu0 %v972, 64
      %v4276 = vpop.permute.xlu0 %4275
      %v4278 = vsel %vm2931, %v2925, 0
      %v4281 = vsel %vm2935, %v4276, 0
      %4283 = vmatprep.subr.bf16.mxu0 0
      %4284 = vmatpush1.bf16.msra.mxu0 %v4281
      %4285 = vmatprep.subr.bf16.mxu0 0
      %4286 = vmatpush1.bf16.msra.mxu0 0
      %4287 = vmatprep.subr.bf16.mxu0 0
      %4288 = vmatpush1.bf16.msra.mxu0 0
      %4289 = vmatprep.subr.bf16.mxu0 0
      %4290 = vmatpush1.bf16.msra.mxu0 0
      %4291 = vmatprep.subr.bf16.mxu0 0
      %4292 = vmatpush1.bf16.msra.mxu0 0
      %4293 = vmatprep.subr.bf16.mxu0 0
      %4294 = vmatpush1.bf16.msra.mxu0 0
      %4295 = vmatprep.subr.bf16.mxu0 0
      %4296 = vmatpush1.bf16.msra.mxu0 0
      %4297 = vmatprep.subr.bf16.mxu0 0
      %4298 = vmatpush1.bf16.msra.mxu0 0
      %4299 = vmatprep.subr.bf16.mxu0 0
      %4300 = vmatpush1.bf16.msra.mxu0 0
      %4301 = vmatprep.subr.bf16.mxu0 0
      %4302 = vmatpush1.bf16.msra.mxu0 0
      %4303 = vmatprep.subr.bf16.mxu0 0
      %4304 = vmatpush1.bf16.msra.mxu0 0
      %4305 = vmatprep.subr.bf16.mxu0 0
      %4306 = vmatpush1.bf16.msra.mxu0 0
      %4307 = vmatprep.subr.bf16.mxu0 0
      %4308 = vmatpush1.bf16.msra.mxu0 0
      %4309 = vmatprep.subr.bf16.mxu0 0
      %4310 = vmatpush1.bf16.msra.mxu0 0
      %4311 = vmatprep.subr.bf16.mxu0 0
      %4312 = vmatpush1.bf16.msra.mxu0 0
      %4313 = vmatprep.subr.bf16.mxu0 0
      %4314 = vmatpush1.bf16.msra.mxu0 0
      %4315 = vmatprep.mubr.bf16.mxu0 0
      %4316 = vmatmul.mubr.bf16.gmra.mrb[0].mxu0 %v4278
      %v4317 = vpop.f32.mrb[0].mxu0
      %v4318 = vadd.f32 0.0, %v4317
      %v4319 = vpop.f32.mrb[0].mxu0
      %v4320 = vpop.f32.mrb[0].mxu0
      %v4321 = vpop.f32.mrb[0].mxu0
      %4322 = vdwg.mxu0
      %4323 = vrot.lane.b32.xlu0 %v973, 64
      %v4324 = vpop.permute.xlu0 %4323
      %v4326 = vsel %vm2931, %v2926, 0
      %v4329 = vsel %vm2935, %v4324, 0
      %4331 = vmatprep.subr.bf16.mxu0 0
      %4332 = vmatpush1.bf16.msra.mxu0 %v4329
      %4333 = vmatprep.subr.bf16.mxu0 0
      %4334 = vmatpush1.bf16.msra.mxu0 0
      %4335 = vmatprep.subr.bf16.mxu0 0
      %4336 = vmatpush1.bf16.msra.mxu0 0
      %4337 = vmatprep.subr.bf16.mxu0 0
      %4338 = vmatpush1.bf16.msra.mxu0 0
      %4339 = vmatprep.subr.bf16.mxu0 0
      %4340 = vmatpush1.bf16.msra.mxu0 0
      %4341 = vmatprep.subr.bf16.mxu0 0
      %4342 = vmatpush1.bf16.msra.mxu0 0
      %4343 = vmatprep.subr.bf16.mxu0 0
      %4344 = vmatpush1.bf16.msra.mxu0 0
      %4345 = vmatprep.subr.bf16.mxu0 0
      %4346 = vmatpush1.bf16.msra.mxu0 0
      %4347 = vmatprep.subr.bf16.mxu0 0
      %4348 = vmatpush1.bf16.msra.mxu0 0
      %4349 = vmatprep.subr.bf16.mxu0 0
      %4350 = vmatpush1.bf16.msra.mxu0 0
      %4351 = vmatprep.subr.bf16.mxu0 0
      %4352 = vmatpush1.bf16.msra.mxu0 0
      %4353 = vmatprep.subr.bf16.mxu0 0
      %4354 = vmatpush1.bf16.msra.mxu0 0
      %4355 = vmatprep.subr.bf16.mxu0 0
      %4356 = vmatpush1.bf16.msra.mxu0 0
      %4357 = vmatprep.subr.bf16.mxu0 0
      %4358 = vmatpush1.bf16.msra.mxu0 0
      %4359 = vmatprep.subr.bf16.mxu0 0
      %4360 = vmatpush1.bf16.msra.mxu0 0
      %4361 = vmatprep.subr.bf16.mxu0 0
      %4362 = vmatpush1.bf16.msra.mxu0 0
      %4363 = vmatprep.mubr.bf16.mxu0 0
      %4364 = vmatmul.mubr.bf16.gmra.mrb[0].mxu0 %v4326
      %v4365 = vpop.f32.mrb[0].mxu0
      %v4366 = vadd.f32 0.0, %v4365
      %v4367 = vpop.f32.mrb[0].mxu0
      %v4368 = vpop.f32.mrb[0].mxu0
      %v4369 = vpop.f32.mrb[0].mxu0
      %4370 = vdwg.mxu0
      %4371 = vrot.lane.b32.xlu0 %v974, 64
      %v4372 = vpop.permute.xlu0 %4371
      %v4374 = vsel %vm2931, %v2927, 0
      %v4377 = vsel %vm2935, %v4372, 0
      %4379 = vmatprep.subr.bf16.mxu0 0
      %4380 = vmatpush1.bf16.msra.mxu0 %v4377
      %4381 = vmatprep.subr.bf16.mxu0 0
      %4382 = vmatpush1.bf16.msra.mxu0 0
      %4383 = vmatprep.subr.bf16.mxu0 0
      %4384 = vmatpush1.bf16.msra.mxu0 0
      %4385 = vmatprep.subr.bf16.mxu0 0
      %4386 = vmatpush1.bf16.msra.mxu0 0
      %4387 = vmatprep.subr.bf16.mxu0 0
      %4388 = vmatpush1.bf16.msra.mxu0 0
      %4389 = vmatprep.subr.bf16.mxu0 0
      %4390 = vmatpush1.bf16.msra.mxu0 0
      %4391 = vmatprep.subr.bf16.mxu0 0
      %4392 = vmatpush1.bf16.msra.mxu0 0
      %4393 = vmatprep.subr.bf16.mxu0 0
      %4394 = vmatpush1.bf16.msra.mxu0 0
      %4395 = vmatprep.subr.bf16.mxu0 0
      %4396 = vmatpush1.bf16.msra.mxu0 0
      %4397 = vmatprep.subr.bf16.mxu0 0
      %4398 = vmatpush1.bf16.msra.mxu0 0
      %4399 = vmatprep.subr.bf16.mxu0 0
      %4400 = vmatpush1.bf16.msra.mxu0 0
      %4401 = vmatprep.subr.bf16.mxu0 0
      %4402 = vmatpush1.bf16.msra.mxu0 0
      %4403 = vmatprep.subr.bf16.mxu0 0
      %4404 = vmatpush1.bf16.msra.mxu0 0
      %4405 = vmatprep.subr.bf16.mxu0 0
      %4406 = vmatpush1.bf16.msra.mxu0 0
      %4407 = vmatprep.subr.bf16.mxu0 0
      %4408 = vmatpush1.bf16.msra.mxu0 0
      %4409 = vmatprep.subr.bf16.mxu0 0
      %4410 = vmatpush1.bf16.msra.mxu0 0
      %4411 = vmatprep.mubr.bf16.mxu0 0
      %4412 = vmatmul.mubr.bf16.gmra.mrb[0].mxu0 %v4374
      %v4413 = vpop.f32.mrb[0].mxu0
      %v4414 = vadd.f32 0.0, %v4413
      %v4415 = vpop.f32.mrb[0].mxu0
      %v4416 = vpop.f32.mrb[0].mxu0
      %v4417 = vpop.f32.mrb[0].mxu0
      %4418 = vdwg.mxu0
      %4419 = vrot.lane.b32.xlu0 %v975, 64
      %v4420 = vpop.permute.xlu0 %4419
      %v4422 = vsel %vm2931, %v2928, 0
      %v4425 = vsel %vm2935, %v4420, 0
      %4427 = vmatprep.subr.bf16.mxu0 0
      %4428 = vmatpush1.bf16.msra.mxu0 %v4425
      %4429 = vmatprep.subr.bf16.mxu0 0
      %4430 = vmatpush1.bf16.msra.mxu0 0
      %4431 = vmatprep.subr.bf16.mxu0 0
      %4432 = vmatpush1.bf16.msra.mxu0 0
      %4433 = vmatprep.subr.bf16.mxu0 0
      %4434 = vmatpush1.bf16.msra.mxu0 0
      %4435 = vmatprep.subr.bf16.mxu0 0
      %4436 = vmatpush1.bf16.msra.mxu0 0
      %4437 = vmatprep.subr.bf16.mxu0 0
      %4438 = vmatpush1.bf16.msra.mxu0 0
      %4439 = vmatprep.subr.bf16.mxu0 0
      %4440 = vmatpush1.bf16.msra.mxu0 0
      %4441 = vmatprep.subr.bf16.mxu0 0
      %4442 = vmatpush1.bf16.msra.mxu0 0
      %4443 = vmatprep.subr.bf16.mxu0 0
      %4444 = vmatpush1.bf16.msra.mxu0 0
      %4445 = vmatprep.subr.bf16.mxu0 0
      %4446 = vmatpush1.bf16.msra.mxu0 0
      %4447 = vmatprep.subr.bf16.mxu0 0
      %4448 = vmatpush1.bf16.msra.mxu0 0
      %4449 = vmatprep.subr.bf16.mxu0 0
      %4450 = vmatpush1.bf16.msra.mxu0 0
      %4451 = vmatprep.subr.bf16.mxu0 0
      %4452 = vmatpush1.bf16.msra.mxu0 0
      %4453 = vmatprep.subr.bf16.mxu0 0
      %4454 = vmatpush1.bf16.msra.mxu0 0
      %4455 = vmatprep.subr.bf16.mxu0 0
      %4456 = vmatpush1.bf16.msra.mxu0 0
      %4457 = vmatprep.subr.bf16.mxu0 0
      %4458 = vmatpush1.bf16.msra.mxu0 0
      %4459 = vmatprep.mubr.bf16.mxu0 0
      %4460 = vmatmul.mubr.bf16.gmra.mrb[0].mxu0 %v4422
      %v4461 = vpop.f32.mrb[0].mxu0
      %v4462 = vadd.f32 0.0, %v4461
      %v4463 = vpop.f32.mrb[0].mxu0
      %v4464 = vpop.f32.mrb[0].mxu0
      %v4465 = vpop.f32.mrb[0].mxu0
      %4466 = vdwg.mxu0
      %v4475 = vcombine.low %v2974, %v3022
      %v4476 = vcombine.low %v3070, %v3118
      %v4478 = vunpack.c.l.s4 1983009808
      %v4479 = vunpack.c.0.s8 %v4478
      %v4480 = vlaneseq
      %v4481 = vshrl.u32 %v4480, 7
      %v4482 = vsub.s32 %v4479, %v4481
      %v4483 = vrot.slane %v4475, %v4482
      %v4485 = vunpack.c.l.s4 1983009808
      %v4486 = vunpack.c.0.s8 %v4485
      %v4487 = vlaneseq
      %v4488 = vshrl.u32 %v4487, 7
      %v4489 = vsub.s32 %v4486, %v4488
      %v4490 = vrot.slane %v4476, %v4489
      %v4491 = vcombine.low %v4483, %v4490
      %v4492 = vcombine.low %v3166, %v3214
      %v4493 = vcombine.low %v3262, %v3310
      %v4495 = vunpack.c.l.s4 1983009808
      %v4496 = vunpack.c.0.s8 %v4495
      %v4497 = vlaneseq
      %v4498 = vshrl.u32 %v4497, 7
      %v4499 = vsub.s32 %v4496, %v4498
      %v4500 = vrot.slane %v4492, %v4499
      %v4502 = vunpack.c.l.s4 1983009808
      %v4503 = vunpack.c.0.s8 %v4502
      %v4504 = vlaneseq
      %v4505 = vshrl.u32 %v4504, 7
      %v4506 = vsub.s32 %v4503, %v4505
      %v4507 = vrot.slane %v4493, %v4506
      %v4508 = vcombine.low %v4500, %v4507
      %v4519 = vcombine.low %v3358, %v3406
      %v4520 = vcombine.low %v3454, %v3502
      %v4522 = vunpack.c.l.s4 1983009808
      %v4523 = vunpack.c.0.s8 %v4522
      %v4524 = vlaneseq
      %v4525 = vshrl.u32 %v4524, 7
      %v4526 = vsub.s32 %v4523, %v4525
      %v4527 = vrot.slane %v4519, %v4526
      %v4529 = vunpack.c.l.s4 1983009808
      %v4530 = vunpack.c.0.s8 %v4529
      %v4531 = vlaneseq
      %v4532 = vshrl.u32 %v4531, 7
      %v4533 = vsub.s32 %v4530, %v4532
      %v4534 = vrot.slane %v4520, %v4533
      %v4535 = vcombine.low %v4527, %v4534
      %v4536 = vcombine.low %v3550, %v3598
      %v4537 = vcombine.low %v3646, %v3694
      %v4539 = vunpack.c.l.s4 1983009808
      %v4540 = vunpack.c.0.s8 %v4539
      %v4541 = vlaneseq
      %v4542 = vshrl.u32 %v4541, 7
      %v4543 = vsub.s32 %v4540, %v4542
      %v4544 = vrot.slane %v4536, %v4543
      %v4546 = vunpack.c.l.s4 1983009808
      %v4547 = vunpack.c.0.s8 %v4546
      %v4548 = vlaneseq
      %v4549 = vshrl.u32 %v4548, 7
      %v4550 = vsub.s32 %v4547, %v4549
      %v4551 = vrot.slane %v4537, %v4550
      %v4552 = vcombine.low %v4544, %v4551
      %4553 = vrot.lane.b32.xlu0 %v4535, 8
      %v4554 = vpop.permute.xlu0 %4553
      %4555 = vrot.lane.b32.xlu0 %v4552, 8
      %v4556 = vpop.permute.xlu0 %4555
      %v4567 = vcombine.low %v3742, %v3790
      %v4568 = vcombine.low %v3838, %v3886
      %v4570 = vunpack.c.l.s4 1983009808
      %v4571 = vunpack.c.0.s8 %v4570
      %v4572 = vlaneseq
      %v4573 = vshrl.u32 %v4572, 7
      %v4574 = vsub.s32 %v4571, %v4573
      %v4575 = vrot.slane %v4567, %v4574
      %v4577 = vunpack.c.l.s4 1983009808
      %v4578 = vunpack.c.0.s8 %v4577
      %v4579 = vlaneseq
      %v4580 = vshrl.u32 %v4579, 7
      %v4581 = vsub.s32 %v4578, %v4580
      %v4582 = vrot.slane %v4568, %v4581
      %v4583 = vcombine.low %v4575, %v4582
      %v4584 = vcombine.low %v3934, %v3982
      %v4585 = vcombine.low %v4030, %v4078
      %v4587 = vunpack.c.l.s4 1983009808
      %v4588 = vunpack.c.0.s8 %v4587
      %v4589 = vlaneseq
      %v4590 = vshrl.u32 %v4589, 7
      %v4591 = vsub.s32 %v4588, %v4590
      %v4592 = vrot.slane %v4584, %v4591
      %v4594 = vunpack.c.l.s4 1983009808
      %v4595 = vunpack.c.0.s8 %v4594
      %v4596 = vlaneseq
      %v4597 = vshrl.u32 %v4596, 7
      %v4598 = vsub.s32 %v4595, %v4597
      %v4599 = vrot.slane %v4585, %v4598
      %v4600 = vcombine.low %v4592, %v4599
      %4601 = vrot.lane.b32.xlu0 %v4583, 16
      %v4602 = vpop.permute.xlu0 %4601
      %4603 = vrot.lane.b32.xlu0 %v4600, 16
      %v4604 = vpop.permute.xlu0 %4603
      %v4615 = vcombine.low %v4126, %v4174
      %v4616 = vcombine.low %v4222, %v4270
      %v4618 = vunpack.c.l.s4 1983009808
      %v4619 = vunpack.c.0.s8 %v4618
      %v4620 = vlaneseq
      %v4621 = vshrl.u32 %v4620, 7
      %v4622 = vsub.s32 %v4619, %v4621
      %v4623 = vrot.slane %v4615, %v4622
      %v4625 = vunpack.c.l.s4 1983009808
      %v4626 = vunpack.c.0.s8 %v4625
      %v4627 = vlaneseq
      %v4628 = vshrl.u32 %v4627, 7
      %v4629 = vsub.s32 %v4626, %v4628
      %v4630 = vrot.slane %v4616, %v4629
      %v4631 = vcombine.low %v4623, %v4630
      %v4632 = vcombine.low %v4318, %v4366
      %v4633 = vcombine.low %v4414, %v4462
      %v4635 = vunpack.c.l.s4 1983009808
      %v4636 = vunpack.c.0.s8 %v4635
      %v4637 = vlaneseq
      %v4638 = vshrl.u32 %v4637, 7
      %v4639 = vsub.s32 %v4636, %v4638
      %v4640 = vrot.slane %v4632, %v4639
      %v4642 = vunpack.c.l.s4 1983009808
      %v4643 = vunpack.c.0.s8 %v4642
      %v4644 = vlaneseq
      %v4645 = vshrl.u32 %v4644, 7
      %v4646 = vsub.s32 %v4643, %v4645
      %v4647 = vrot.slane %v4633, %v4646
      %v4648 = vcombine.low %v4640, %v4647
      %4649 = vrot.lane.b32.xlu0 %v4631, 24
      %v4650 = vpop.permute.xlu0 %4649
      %4651 = vrot.lane.b32.xlu0 %v4648, 24
      %v4652 = vpop.permute.xlu0 %4651
      %v4655 = vsel %vm613, %v4491, %v4554
      %v4656 = vsel %vm613, %v4508, %v4556
      %vm4657 = vcmask 130048
      %v4658 = vsel %vm4657, %v4655, %v4602
      %v4659 = vsel %vm4657, %v4656, %v4604
      %vm4660 = vcmask 195584
      %v4661 = vsel %vm4660, %v4658, %v4650
      %v4662 = vsel %vm4660, %v4659, %v4652
      %v4663 = vld [vmem:[%s5] sm:$0xf]
      %v4664 = vld [vmem:[%s5 + $0x4] sm:$0xf]
      %v4665 = vld [vmem:[%s5 + $0x8] sm:$0xf]
      %v4666 = vld [vmem:[%s5 + $0xc] sm:$0xf]
      %v4667 = vpack.c.bf16 %v4662, %v4661
      %v4668 = vld [vmem:[%s6] sm:$0x1]
      %v4670 = vlaneseq
      %v4671 = vshrl.u32 %v4670, 7
      %v4672 = vsub.s32 0, %v4671
      %v4673 = vrot.slane %v4668, %v4672
      %v4679 = vunpack.c.l.b16 %v4663
      %v4680 = vunpack.c.l.b16 %v4664
      %v4681 = vunpack.c.l.b16 %v4665
      %v4682 = vunpack.c.l.b16 %v4666
      %v4683 = vpack.c.b16 %v4680, %v4679
      %v4684 = vpack.c.b16 %v4682, %v4681
      %v4688 = vsel %vm783, %v4667, 0
      %4690 = vmatprep.subr.bf16.mxu0 0
      %4691 = vmatpush1.bf16.msra.mxu0 %v4683
      %4692 = vmatprep.subr.bf16.mxu0 0
      %4693 = vmatpush1.bf16.msra.mxu0 %v4684
      %4694 = vmatprep.subr.bf16.mxu0 0
      %4695 = vmatpush1.bf16.msra.mxu0 0
      %4696 = vmatprep.subr.bf16.mxu0 0
      %4697 = vmatpush1.bf16.msra.mxu0 0
      %4698 = vmatprep.subr.bf16.mxu0 0
      %4699 = vmatpush1.bf16.msra.mxu0 0
      %4700 = vmatprep.subr.bf16.mxu0 0
      %4701 = vmatpush1.bf16.msra.mxu0 0
      %4702 = vmatprep.subr.bf16.mxu0 0
      %4703 = vmatpush1.bf16.msra.mxu0 0
      %4704 = vmatprep.subr.bf16.mxu0 0
      %4705 = vmatpush1.bf16.msra.mxu0 0
      %4706 = vmatprep.subr.bf16.mxu0 0
      %4707 = vmatpush1.bf16.msra.mxu0 0
      %4708 = vmatprep.subr.bf16.mxu0 0
      %4709 = vmatpush1.bf16.msra.mxu0 0
      %4710 = vmatprep.subr.bf16.mxu0 0
      %4711 = vmatpush1.bf16.msra.mxu0 0
      %4712 = vmatprep.subr.bf16.mxu0 0
      %4713 = vmatpush1.bf16.msra.mxu0 0
      %4714 = vmatprep.subr.bf16.mxu0 0
      %4715 = vmatpush1.bf16.msra.mxu0 0
      %4716 = vmatprep.subr.bf16.mxu0 0
      %4717 = vmatpush1.bf16.msra.mxu0 0
      %4718 = vmatprep.subr.bf16.mxu0 0
      %4719 = vmatpush1.bf16.msra.mxu0 0
      %4720 = vmatprep.subr.bf16.mxu0 0
      %4721 = vmatpush1.bf16.msra.mxu0 0
      %4722 = vmatprep.mubr.bf16.mxu0 0
      %4723 = vmatmul.mubr.bf16.gmra.mrb[0].mxu0 %v4688
      %v4724 = vpop.f32.mrb[0].mxu0
      %v4725 = vadd.f32 %v4673, %v4724
      %v4726 = vpop.f32.mrb[0].mxu0
      %v4727 = vpop.f32.mrb[0].mxu0
      %v4728 = vadd.f32 %v4673, %v4727
      %v4729 = vpop.f32.mrb[0].mxu0
      %4730 = vdwg.mxu0
      %v4733 = vcombine.high %v4725, %v4725
      %v4735 = vunpack.c.l.s4 1983009808
      %v4736 = vunpack.c.0.s8 %v4735
      %v4737 = vlaneseq
      %v4738 = vshrl.u32 %v4737, 7
      %v4739 = vsub.s32 %v4736, %v4738
      %v4740 = vrot.slane %v4725, %v4739
      %v4742 = vunpack.c.l.s4 1983009808
      %v4743 = vunpack.c.0.s8 %v4742
      %v4744 = vlaneseq
      %v4745 = vshrl.u32 %v4744, 7
      %v4746 = vsub.s32 %v4743, %v4745
      %v4747 = vrot.slane %v4733, %v4746
      %v4748 = vcombine.high %v4740, %v4740
      %v4749 = vcombine.high %v4747, %v4747
      %v4750 = vcombine.high %v4728, %v4728
      %v4752 = vunpack.c.l.s4 1983009808
      %v4753 = vunpack.c.0.s8 %v4752
      %v4754 = vlaneseq
      %v4755 = vshrl.u32 %v4754, 7
      %v4756 = vsub.s32 %v4753, %v4755
      %v4757 = vrot.slane %v4728, %v4756
      %v4759 = vunpack.c.l.s4 1983009808
      %v4760 = vunpack.c.0.s8 %v4759
      %v4761 = vlaneseq
      %v4762 = vshrl.u32 %v4761, 7
      %v4763 = vsub.s32 %v4760, %v4762
      %v4764 = vrot.slane %v4750, %v4763
      %v4765 = vcombine.high %v4757, %v4757
      %v4766 = vcombine.high %v4764, %v4764
      %v4775 = vadd.f32 %v707, %v4740
      %v4776 = vadd.f32 %v708, %v4748
      %v4777 = vadd.f32 %v709, %v4747
      %v4778 = vadd.f32 %v710, %v4749
      %v4779 = vadd.f32 %v711, %v4757
      %v4780 = vadd.f32 %v712, %v4765
      %v4781 = vadd.f32 %v713, %v4764
      %v4782 = vadd.f32 %v714, %v4766
      %v4783 = vld [vmem:[%s7] sm:$0x1]
      %v4784 = vld [vmem:[%s8] sm:$0x1]
      %v4793 = vcombine.low %v4775, %v4776
      %v4794 = vcombine.low %v4777, %v4778
      %v4796 = vunpack.c.l.s4 1983009808
      %v4797 = vunpack.c.0.s8 %v4796
      %v4798 = vlaneseq
      %v4799 = vshrl.u32 %v4798, 7
      %v4800 = vsub.s32 %v4797, %v4799
      %v4801 = vrot.slane %v4793, %v4800
      %v4803 = vunpack.c.l.s4 1983009808
      %v4804 = vunpack.c.0.s8 %v4803
      %v4805 = vlaneseq
      %v4806 = vshrl.u32 %v4805, 7
      %v4807 = vsub.s32 %v4804, %v4806
      %v4808 = vrot.slane %v4794, %v4807
      %v4809 = vcombine.low %v4801, %v4808
      %v4810 = vcombine.low %v4779, %v4780
      %v4811 = vcombine.low %v4781, %v4782
      %v4813 = vunpack.c.l.s4 1983009808
      %v4814 = vunpack.c.0.s8 %v4813
      %v4815 = vlaneseq
      %v4816 = vshrl.u32 %v4815, 7
      %v4817 = vsub.s32 %v4814, %v4816
      %v4818 = vrot.slane %v4810, %v4817
      %v4820 = vunpack.c.l.s4 1983009808
      %v4821 = vunpack.c.0.s8 %v4820
      %v4822 = vlaneseq
      %v4823 = vshrl.u32 %v4822, 7
      %v4824 = vsub.s32 %v4821, %v4823
      %v4825 = vrot.slane %v4811, %v4824
      %v4826 = vcombine.low %v4818, %v4825
      %v4829 = vsel %vm783, %v4809, 0.0
      %4830 = vadd.xlane.f32.xlu0 %v4829
      %v4831 = vpop.xlane.xlu0 %4830
      %v4832 = vsel %vm783, %v4826, 0.0
      %4833 = vadd.xlane.f32.xlu0 %v4832
      %v4834 = vpop.xlane.xlu0 %4833
      %v4835 = vrcp.pop 32.0
      %v4836 = vmul.f32 %v4831, %v4835
      %v4837 = vmul.f32 %v4834, %v4835
      %v4841 = vunpack.c.l.s4 269488144
      %v4842 = vunpack.c.0.s8 %v4841
      %v4843 = vlaneseq
      %v4844 = vshrl.u32 %v4843, 7
      %v4845 = vsub.s32 %v4842, %v4844
      %v4846 = vrot.slane %v4836, %v4845
      %v4848 = vunpack.c.l.s4 842150450
      %v4849 = vunpack.c.0.s8 %v4848
      %v4850 = vlaneseq
      %v4851 = vshrl.u32 %v4850, 7
      %v4852 = vsub.s32 %v4849, %v4851
      %v4853 = vrot.slane %v4836, %v4852
      %v4855 = vunpack.c.l.s4 1414812756
      %v4856 = vunpack.c.0.s8 %v4855
      %v4857 = vlaneseq
      %v4858 = vshrl.u32 %v4857, 7
      %v4859 = vsub.s32 %v4856, %v4858
      %v4860 = vrot.slane %v4836, %v4859
      %v4862 = vunpack.c.l.s4 1987475062
      %v4863 = vunpack.c.0.s8 %v4862
      %v4864 = vlaneseq
      %v4865 = vshrl.u32 %v4864, 7
      %v4866 = vsub.s32 %v4863, %v4865
      %v4867 = vrot.slane %v4836, %v4866
      %v4869 = vunpack.c.l.s4 269488144
      %v4870 = vunpack.c.0.s8 %v4869
      %v4871 = vlaneseq
      %v4872 = vshrl.u32 %v4871, 7
      %v4873 = vsub.s32 %v4870, %v4872
      %v4874 = vrot.slane %v4837, %v4873
      %v4876 = vunpack.c.l.s4 842150450
      %v4877 = vunpack.c.0.s8 %v4876
      %v4878 = vlaneseq
      %v4879 = vshrl.u32 %v4878, 7
      %v4880 = vsub.s32 %v4877, %v4879
      %v4881 = vrot.slane %v4837, %v4880
      %v4883 = vunpack.c.l.s4 1414812756
      %v4884 = vunpack.c.0.s8 %v4883
      %v4885 = vlaneseq
      %v4886 = vshrl.u32 %v4885, 7
      %v4887 = vsub.s32 %v4884, %v4886
      %v4888 = vrot.slane %v4837, %v4887
      %v4890 = vunpack.c.l.s4 1987475062
      %v4891 = vunpack.c.0.s8 %v4890
      %v4892 = vlaneseq
      %v4893 = vshrl.u32 %v4892, 7
      %v4894 = vsub.s32 %v4891, %v4893
      %v4895 = vrot.slane %v4837, %v4894
      %v4904 = vsub.f32 %v4775, %v4846
      %v4905 = vsub.f32 %v4776, %v4853
      %v4906 = vsub.f32 %v4777, %v4860
      %v4907 = vsub.f32 %v4778, %v4867
      %v4908 = vsub.f32 %v4779, %v4874
      %v4909 = vsub.f32 %v4780, %v4881
      %v4910 = vsub.f32 %v4781, %v4888
      %v4911 = vsub.f32 %v4782, %v4895
      %v4912 = vmul.f32 %v4904, %v4904
      %v4913 = vmul.f32 %v4905, %v4905
      %v4914 = vmul.f32 %v4906, %v4906
      %v4915 = vmul.f32 %v4907, %v4907
      %v4916 = vmul.f32 %v4908, %v4908
      %v4917 = vmul.f32 %v4909, %v4909
      %v4918 = vmul.f32 %v4910, %v4910
      %v4919 = vmul.f32 %v4911, %v4911
      %v4928 = vcombine.low %v4912, %v4913
      %v4929 = vcombine.low %v4914, %v4915
      %v4931 = vunpack.c.l.s4 1983009808
      %v4932 = vunpack.c.0.s8 %v4931
      %v4933 = vlaneseq
      %v4934 = vshrl.u32 %v4933, 7
      %v4935 = vsub.s32 %v4932, %v4934
      %v4936 = vrot.slane %v4928, %v4935
      %v4938 = vunpack.c.l.s4 1983009808
      %v4939 = vunpack.c.0.s8 %v4938
      %v4940 = vlaneseq
      %v4941 = vshrl.u32 %v4940, 7
      %v4942 = vsub.s32 %v4939, %v4941
      %v4943 = vrot.slane %v4929, %v4942
      %v4944 = vcombine.low %v4936, %v4943
      %v4945 = vcombine.low %v4916, %v4917
      %v4946 = vcombine.low %v4918, %v4919
      %v4948 = vunpack.c.l.s4 1983009808
      %v4949 = vunpack.c.0.s8 %v4948
      %v4950 = vlaneseq
      %v4951 = vshrl.u32 %v4950, 7
      %v4952 = vsub.s32 %v4949, %v4951
      %v4953 = vrot.slane %v4945, %v4952
      %v4955 = vunpack.c.l.s4 1983009808
      %v4956 = vunpack.c.0.s8 %v4955
      %v4957 = vlaneseq
      %v4958 = vshrl.u32 %v4957, 7
      %v4959 = vsub.s32 %v4956, %v4958
      %v4960 = vrot.slane %v4946, %v4959
      %v4961 = vcombine.low %v4953, %v4960
      %v4964 = vsel %vm783, %v4944, 0.0
      %4965 = vadd.xlane.f32.xlu0 %v4964
      %v4966 = vpop.xlane.xlu0 %4965
      %v4967 = vsel %vm783, %v4961, 0.0
      %4968 = vadd.xlane.f32.xlu0 %v4967
      %v4969 = vpop.xlane.xlu0 %4968
      %v4970 = vmul.f32 %v4966, %v4835
      %v4971 = vmul.f32 %v4969, %v4835
      %v4972 = vadd.f32 %v4970, 1e-05
      %v4973 = vadd.f32 %v4971, 1e-05
      %v4974 = vrsqrt.pop %v4972
      %v4975 = vrsqrt.pop %v4973
      %v4979 = vunpack.c.l.s4 269488144
      %v4980 = vunpack.c.0.s8 %v4979
      %v4981 = vlaneseq
      %v4982 = vshrl.u32 %v4981, 7
      %v4983 = vsub.s32 %v4980, %v4982
      %v4984 = vrot.slane %v4974, %v4983
      %v4986 = vunpack.c.l.s4 842150450
      %v4987 = vunpack.c.0.s8 %v4986
      %v4988 = vlaneseq
      %v4989 = vshrl.u32 %v4988, 7
      %v4990 = vsub.s32 %v4987, %v4989
      %v4991 = vrot.slane %v4974, %v4990
      %v4993 = vunpack.c.l.s4 1414812756
      %v4994 = vunpack.c.0.s8 %v4993
      %v4995 = vlaneseq
      %v4996 = vshrl.u32 %v4995, 7
      %v4997 = vsub.s32 %v4994, %v4996
      %v4998 = vrot.slane %v4974, %v4997
      %v5000 = vunpack.c.l.s4 1987475062
      %v5001 = vunpack.c.0.s8 %v5000
      %v5002 = vlaneseq
      %v5003 = vshrl.u32 %v5002, 7
      %v5004 = vsub.s32 %v5001, %v5003
      %v5005 = vrot.slane %v4974, %v5004
      %v5007 = vunpack.c.l.s4 269488144
      %v5008 = vunpack.c.0.s8 %v5007
      %v5009 = vlaneseq
      %v5010 = vshrl.u32 %v5009, 7
      %v5011 = vsub.s32 %v5008, %v5010
      %v5012 = vrot.slane %v4975, %v5011
      %v5014 = vunpack.c.l.s4 842150450
      %v5015 = vunpack.c.0.s8 %v5014
      %v5016 = vlaneseq
      %v5017 = vshrl.u32 %v5016, 7
      %v5018 = vsub.s32 %v5015, %v5017
      %v5019 = vrot.slane %v4975, %v5018
      %v5021 = vunpack.c.l.s4 1414812756
      %v5022 = vunpack.c.0.s8 %v5021
      %v5023 = vlaneseq
      %v5024 = vshrl.u32 %v5023, 7
      %v5025 = vsub.s32 %v5022, %v5024
      %v5026 = vrot.slane %v4975, %v5025
      %v5028 = vunpack.c.l.s4 1987475062
      %v5029 = vunpack.c.0.s8 %v5028
      %v5030 = vlaneseq
      %v5031 = vshrl.u32 %v5030, 7
      %v5032 = vsub.s32 %v5029, %v5031
      %v5033 = vrot.slane %v4975, %v5032
      %v5042 = vmul.f32 %v4904, %v4984
      %v5043 = vmul.f32 %v4905, %v4991
      %v5044 = vmul.f32 %v4906, %v4998
      %v5045 = vmul.f32 %v4907, %v5005
      %v5046 = vmul.f32 %v4908, %v5012
      %v5047 = vmul.f32 %v4909, %v5019
      %v5048 = vmul.f32 %v4910, %v5026
      %v5049 = vmul.f32 %v4911, %v5033
      %v5051 = vlaneseq
      %v5052 = vshrl.u32 %v5051, 7
      %v5053 = vsub.s32 0, %v5052
      %v5054 = vrot.slane %v4783, %v5053
      %v5055 = vcombine.high %v5054, %v5054
      %v5057 = vunpack.c.l.s4 1983009808
      %v5058 = vunpack.c.0.s8 %v5057
      %v5059 = vlaneseq
      %v5060 = vshrl.u32 %v5059, 7
      %v5061 = vsub.s32 %v5058, %v5060
      %v5062 = vrot.slane %v5054, %v5061
      %v5064 = vunpack.c.l.s4 1983009808
      %v5065 = vunpack.c.0.s8 %v5064
      %v5066 = vlaneseq
      %v5067 = vshrl.u32 %v5066, 7
      %v5068 = vsub.s32 %v5065, %v5067
      %v5069 = vrot.slane %v5055, %v5068
      %v5070 = vcombine.high %v5062, %v5062
      %v5071 = vcombine.high %v5069, %v5069
      %v5076 = vmul.f32 %v5042, %v5062
      %v5077 = vmul.f32 %v5043, %v5070
      %v5078 = vmul.f32 %v5044, %v5069
      %v5079 = vmul.f32 %v5045, %v5071
      %v5080 = vmul.f32 %v5046, %v5062
      %v5081 = vmul.f32 %v5047, %v5070
      %v5082 = vmul.f32 %v5048, %v5069
      %v5083 = vmul.f32 %v5049, %v5071
      %v5085 = vlaneseq
      %v5086 = vshrl.u32 %v5085, 7
      %v5087 = vsub.s32 0, %v5086
      %v5088 = vrot.slane %v4784, %v5087
      %v5089 = vcombine.high %v5088, %v5088
      %v5091 = vunpack.c.l.s4 1983009808
      %v5092 = vunpack.c.0.s8 %v5091
      %v5093 = vlaneseq
      %v5094 = vshrl.u32 %v5093, 7
      %v5095 = vsub.s32 %v5092, %v5094
      %v5096 = vrot.slane %v5088, %v5095
      %v5098 = vunpack.c.l.s4 1983009808
      %v5099 = vunpack.c.0.s8 %v5098
      %v5100 = vlaneseq
      %v5101 = vshrl.u32 %v5100, 7
      %v5102 = vsub.s32 %v5099, %v5101
      %v5103 = vrot.slane %v5089, %v5102
      %v5104 = vcombine.high %v5096, %v5096
      %v5105 = vcombine.high %v5103, %v5103
      %v5110 = vadd.f32 %v5076, %v5096
      %v5111 = vadd.f32 %v5077, %v5104
      %v5112 = vadd.f32 %v5078, %v5103
      %v5113 = vadd.f32 %v5079, %v5105
      %v5114 = vadd.f32 %v5080, %v5096
      %v5115 = vadd.f32 %v5081, %v5104
      %v5116 = vadd.f32 %v5082, %v5103
      %v5117 = vadd.f32 %v5083, %v5105
      %v5118 = vld [vmem:[%s9] sm:$0xf]
      %v5119 = vld [vmem:[%s9 + $0x4] sm:$0xf]
      %v5120 = vld [vmem:[%s9 + $0x8] sm:$0xf]
      %v5121 = vld [vmem:[%s9 + $0xc] sm:$0xf]
      %v5130 = vcombine.low %v5110, %v5111
      %v5131 = vcombine.low %v5112, %v5113
      %v5133 = vunpack.c.l.s4 1983009808
      %v5134 = vunpack.c.0.s8 %v5133
      %v5135 = vlaneseq
      %v5136 = vshrl.u32 %v5135, 7
      %v5137 = vsub.s32 %v5134, %v5136
      %v5138 = vrot.slane %v5130, %v5137
      %v5140 = vunpack.c.l.s4 1983009808
      %v5141 = vunpack.c.0.s8 %v5140
      %v5142 = vlaneseq
      %v5143 = vshrl.u32 %v5142, 7
      %v5144 = vsub.s32 %v5141, %v5143
      %v5145 = vrot.slane %v5131, %v5144
      %v5146 = vcombine.low %v5138, %v5145
      %v5147 = vcombine.low %v5114, %v5115
      %v5148 = vcombine.low %v5116, %v5117
      %v5150 = vunpack.c.l.s4 1983009808
      %v5151 = vunpack.c.0.s8 %v5150
      %v5152 = vlaneseq
      %v5153 = vshrl.u32 %v5152, 7
      %v5154 = vsub.s32 %v5151, %v5153
      %v5155 = vrot.slane %v5147, %v5154
      %v5157 = vunpack.c.l.s4 1983009808
      %v5158 = vunpack.c.0.s8 %v5157
      %v5159 = vlaneseq
      %v5160 = vshrl.u32 %v5159, 7
      %v5161 = vsub.s32 %v5158, %v5160
      %v5162 = vrot.slane %v5148, %v5161
      %v5163 = vcombine.low %v5155, %v5162
      %v5166 = vpack.c.bf16 %v5163, %v5146
      %v5167 = vld [vmem:[%s10] sm:$0x1]
      %v5169 = vlaneseq
      %v5170 = vshrl.u32 %v5169, 7
      %v5171 = vsub.s32 0, %v5170
      %v5172 = vrot.slane %v5167, %v5171
      %v5178 = vunpack.c.l.b16 %v5118
      %v5179 = vunpack.c.l.b16 %v5119
      %v5180 = vunpack.c.l.b16 %v5120
      %v5181 = vunpack.c.l.b16 %v5121
      %v5182 = vpack.c.b16 %v5179, %v5178
      %v5183 = vpack.c.b16 %v5181, %v5180
      %v5187 = vsel %vm783, %v5166, 0
      %5189 = vmatprep.subr.bf16.mxu0 0
      %5190 = vmatpush1.bf16.msra.mxu0 %v5182
      %5191 = vmatprep.subr.bf16.mxu0 0
      %5192 = vmatpush1.bf16.msra.mxu0 %v5183
      %5193 = vmatprep.subr.bf16.mxu0 0
      %5194 = vmatpush1.bf16.msra.mxu0 0
      %5195 = vmatprep.subr.bf16.mxu0 0
      %5196 = vmatpush1.bf16.msra.mxu0 0
      %5197 = vmatprep.subr.bf16.mxu0 0
      %5198 = vmatpush1.bf16.msra.mxu0 0
      %5199 = vmatprep.subr.bf16.mxu0 0
      %5200 = vmatpush1.bf16.msra.mxu0 0
      %5201 = vmatprep.subr.bf16.mxu0 0
      %5202 = vmatpush1.bf16.msra.mxu0 0
      %5203 = vmatprep.subr.bf16.mxu0 0
      %5204 = vmatpush1.bf16.msra.mxu0 0
      %5205 = vmatprep.subr.bf16.mxu0 0
      %5206 = vmatpush1.bf16.msra.mxu0 0
      %5207 = vmatprep.subr.bf16.mxu0 0
      %5208 = vmatpush1.bf16.msra.mxu0 0
      %5209 = vmatprep.subr.bf16.mxu0 0
      %5210 = vmatpush1.bf16.msra.mxu0 0
      %5211 = vmatprep.subr.bf16.mxu0 0
      %5212 = vmatpush1.bf16.msra.mxu0 0
      %5213 = vmatprep.subr.bf16.mxu0 0
      %5214 = vmatpush1.bf16.msra.mxu0 0
      %5215 = vmatprep.subr.bf16.mxu0 0
      %5216 = vmatpush1.bf16.msra.mxu0 0
      %5217 = vmatprep.subr.bf16.mxu0 0
      %5218 = vmatpush1.bf16.msra.mxu0 0
      %5219 = vmatprep.subr.bf16.mxu0 0
      %5220 = vmatpush1.bf16.msra.mxu0 0
      %5221 = vmatprep.mubr.bf16.mxu0 0
      %5222 = vmatmul.mubr.bf16.gmra.mrb[0].mxu0 %v5187
      %v5223 = vpop.f32.mrb[0].mxu0
      %v5224 = vadd.f32 %v5172, %v5223
      %v5225 = vpop.f32.mrb[0].mxu0
      %v5226 = vpop.f32.mrb[0].mxu0
      %v5227 = vadd.f32 %v5172, %v5226
      %v5228 = vpop.f32.mrb[0].mxu0
      %5229 = vdwg.mxu0
      %v5230 = vmul.f32 %v5224, %v5224
      %v5231 = vmul.f32 %v5227, %v5227
      %v5232 = vmul.f32 %v5224, %v5230
      %v5233 = vmul.f32 %v5227, %v5231
      %v5234 = vmul.f32 %v5232, 0.044715
      %v5235 = vmul.f32 %v5233, 0.044715
      %v5236 = vadd.f32 %v5224, %v5234
      %v5237 = vadd.f32 %v5227, %v5235
      %v5238 = vmul.f32 %v5236, 0.7978846
      %v5239 = vmul.f32 %v5237, 0.7978846
      %v5240 = vtanh.pop %v5238
      %v5241 = vtanh.pop %v5239
      %v5242 = vadd.f32 %v5240, 1.0
      %v5243 = vadd.f32 %v5241, 1.0
      %v5244 = vmul.f32 %v5242, 0.5
      %v5245 = vmul.f32 %v5243, 0.5
      %v5246 = vmul.f32 %v5224, %v5244
      %v5247 = vmul.f32 %v5227, %v5245
      %v5248 = vld [vmem:[%s11] sm:$0xf]
      %v5249 = vld [vmem:[%s11 + $0x4] sm:$0xf]
      %v5250 = vld [vmem:[%s11 + $0x8] sm:$0xf]
      %v5251 = vld [vmem:[%s11 + $0xc] sm:$0xf]
      %v5252 = vld [vmem:[%s11 + $0x10] sm:$0xf]
      %v5253 = vld [vmem:[%s11 + $0x14] sm:$0xf]
      %v5254 = vld [vmem:[%s11 + $0x18] sm:$0xf]
      %v5255 = vld [vmem:[%s11 + $0x1c] sm:$0xf]
      %v5256 = vld [vmem:[%s11 + $0x20] sm:$0xf]
      %v5257 = vld [vmem:[%s11 + $0x24] sm:$0xf]
      %v5258 = vld [vmem:[%s11 + $0x28] sm:$0xf]
      %v5259 = vld [vmem:[%s11 + $0x2c] sm:$0xf]
      %v5260 = vld [vmem:[%s11 + $0x30] sm:$0xf]
      %v5261 = vld [vmem:[%s11 + $0x34] sm:$0xf]
      %v5262 = vld [vmem:[%s11 + $0x38] sm:$0xf]
      %v5263 = vld [vmem:[%s11 + $0x3c] sm:$0xf]
      %v5264 = vpack.c.bf16 %v5247, %v5246
      %v5265 = vld [vmem:[%s12] sm:$0x1]
      %v5267 = vlaneseq
      %v5268 = vshrl.u32 %v5267, 7
      %v5269 = vsub.s32 0, %v5268
      %v5270 = vrot.slane %v5265, %v5269
      %v5288 = vunpack.c.l.b16 %v5248
      %v5289 = vunpack.c.l.b16 %v5249
      %v5290 = vunpack.c.l.b16 %v5250
      %v5291 = vunpack.c.l.b16 %v5251
      %v5292 = vunpack.c.l.b16 %v5252
      %v5293 = vunpack.c.l.b16 %v5253
      %v5294 = vunpack.c.l.b16 %v5254
      %v5295 = vunpack.c.l.b16 %v5255
      %v5296 = vunpack.c.l.b16 %v5256
      %v5297 = vunpack.c.l.b16 %v5257
      %v5298 = vunpack.c.l.b16 %v5258
      %v5299 = vunpack.c.l.b16 %v5259
      %v5300 = vunpack.c.l.b16 %v5260
      %v5301 = vunpack.c.l.b16 %v5261
      %v5302 = vunpack.c.l.b16 %v5262
      %v5303 = vunpack.c.l.b16 %v5263
      %v5304 = vpack.c.b16 %v5289, %v5288
      %v5305 = vpack.c.b16 %v5291, %v5290
      %v5306 = vpack.c.b16 %v5293, %v5292
      %v5307 = vpack.c.b16 %v5295, %v5294
      %v5308 = vpack.c.b16 %v5297, %v5296
      %v5309 = vpack.c.b16 %v5299, %v5298
      %v5310 = vpack.c.b16 %v5301, %v5300
      %v5311 = vpack.c.b16 %v5303, %v5302
      %5320 = vmatprep.subr.bf16.mxu0 0
      %5321 = vmatpush1.bf16.msra.mxu0 %v5304
      %5322 = vmatprep.subr.bf16.mxu0 0
      %5323 = vmatpush1.bf16.msra.mxu0 %v5305
      %5324 = vmatprep.subr.bf16.mxu0 0
      %5325 = vmatpush1.bf16.msra.mxu0 %v5306
      %5326 = vmatprep.subr.bf16.mxu0 0
      %5327 = vmatpush1.bf16.msra.mxu0 %v5307
      %5328 = vmatprep.subr.bf16.mxu0 0
      %5329 = vmatpush1.bf16.msra.mxu0 %v5308
      %5330 = vmatprep.subr.bf16.mxu0 0
      %5331 = vmatpush1.bf16.msra.mxu0 %v5309
      %5332 = vmatprep.subr.bf16.mxu0 0
      %5333 = vmatpush1.bf16.msra.mxu0 %v5310
      %5334 = vmatprep.subr.bf16.mxu0 0
      %5335 = vmatpush1.bf16.msra.mxu0 %v5311
      %5336 = vmatprep.subr.bf16.mxu0 0
      %5337 = vmatpush1.bf16.msra.mxu0 0
      %5338 = vmatprep.subr.bf16.mxu0 0
      %5339 = vmatpush1.bf16.msra.mxu0 0
      %5340 = vmatprep.subr.bf16.mxu0 0
      %5341 = vmatpush1.bf16.msra.mxu0 0
      %5342 = vmatprep.subr.bf16.mxu0 0
      %5343 = vmatpush1.bf16.msra.mxu0 0
      %5344 = vmatprep.subr.bf16.mxu0 0
      %5345 = vmatpush1.bf16.msra.mxu0 0
      %5346 = vmatprep.subr.bf16.mxu0 0
      %5347 = vmatpush1.bf16.msra.mxu0 0
      %5348 = vmatprep.subr.bf16.mxu0 0
      %5349 = vmatpush1.bf16.msra.mxu0 0
      %5350 = vmatprep.subr.bf16.mxu0 0
      %5351 = vmatpush1.bf16.msra.mxu0 0
      %5352 = vmatprep.mubr.bf16.mxu0 0
      %5353 = vmatmul.mubr.bf16.gmra.mrb[0].mxu0 %v5264
      %v5354 = vpop.f32.mrb[0].mxu0
      %v5355 = vadd.f32 %v5270, %v5354
      %v5356 = vpop.f32.mrb[0].mxu0
      %v5357 = vpop.f32.mrb[0].mxu0
      %v5358 = vadd.f32 %v5270, %v5357
      %v5359 = vpop.f32.mrb[0].mxu0
      %5360 = vdwg.mxu0
      %v5363 = vcombine.high %v5355, %v5355
      %v5365 = vunpack.c.l.s4 1983009808
      %v5366 = vunpack.c.0.s8 %v5365
      %v5367 = vlaneseq
      %v5368 = vshrl.u32 %v5367, 7
      %v5369 = vsub.s32 %v5366, %v5368
      %v5370 = vrot.slane %v5355, %v5369
      %v5372 = vunpack.c.l.s4 1983009808
      %v5373 = vunpack.c.0.s8 %v5372
      %v5374 = vlaneseq
      %v5375 = vshrl.u32 %v5374, 7
      %v5376 = vsub.s32 %v5373, %v5375
      %v5377 = vrot.slane %v5363, %v5376
      %v5378 = vcombine.high %v5370, %v5370
      %v5379 = vcombine.high %v5377, %v5377
      %v5380 = vcombine.high %v5358, %v5358
      %v5382 = vunpack.c.l.s4 1983009808
      %v5383 = vunpack.c.0.s8 %v5382
      %v5384 = vlaneseq
      %v5385 = vshrl.u32 %v5384, 7
      %v5386 = vsub.s32 %v5383, %v5385
      %v5387 = vrot.slane %v5358, %v5386
      %v5389 = vunpack.c.l.s4 1983009808
      %v5390 = vunpack.c.0.s8 %v5389
      %v5391 = vlaneseq
      %v5392 = vshrl.u32 %v5391, 7
      %v5393 = vsub.s32 %v5390, %v5392
      %v5394 = vrot.slane %v5380, %v5393
      %v5395 = vcombine.high %v5387, %v5387
      %v5396 = vcombine.high %v5394, %v5394
      %v5405 = vadd.f32 %v5110, %v5370
      %v5406 = vadd.f32 %v5111, %v5378
      %v5407 = vadd.f32 %v5112, %v5377
      %v5408 = vadd.f32 %v5113, %v5379
      %v5409 = vadd.f32 %v5114, %v5387
      %v5410 = vadd.f32 %v5115, %v5395
      %v5411 = vadd.f32 %v5116, %v5394
      %v5412 = vadd.f32 %v5117, %v5396
      %v5413 = vld [vmem:[%s13] sm:$0x1]
      %v5414 = vld [vmem:[%s14] sm:$0x1]
      %v5423 = vcombine.low %v5405, %v5406
      %v5424 = vcombine.low %v5407, %v5408
      %v5426 = vunpack.c.l.s4 1983009808
      %v5427 = vunpack.c.0.s8 %v5426
      %v5428 = vlaneseq
      %v5429 = vshrl.u32 %v5428, 7
      %v5430 = vsub.s32 %v5427, %v5429
      %v5431 = vrot.slane %v5423, %v5430
      %v5433 = vunpack.c.l.s4 1983009808
      %v5434 = vunpack.c.0.s8 %v5433
      %v5435 = vlaneseq
      %v5436 = vshrl.u32 %v5435, 7
      %v5437 = vsub.s32 %v5434, %v5436
      %v5438 = vrot.slane %v5424, %v5437
      %v5439 = vcombine.low %v5431, %v5438
      %v5440 = vcombine.low %v5409, %v5410
      %v5441 = vcombine.low %v5411, %v5412
      %v5443 = vunpack.c.l.s4 1983009808
      %v5444 = vunpack.c.0.s8 %v5443
      %v5445 = vlaneseq
      %v5446 = vshrl.u32 %v5445, 7
      %v5447 = vsub.s32 %v5444, %v5446
      %v5448 = vrot.slane %v5440, %v5447
      %v5450 = vunpack.c.l.s4 1983009808
      %v5451 = vunpack.c.0.s8 %v5450
      %v5452 = vlaneseq
      %v5453 = vshrl.u32 %v5452, 7
      %v5454 = vsub.s32 %v5451, %v5453
      %v5455 = vrot.slane %v5441, %v5454
      %v5456 = vcombine.low %v5448, %v5455
      %v5459 = vsel %vm783, %v5439, 0.0
      %5460 = vadd.xlane.f32.xlu0 %v5459
      %v5461 = vpop.xlane.xlu0 %5460
      %v5462 = vsel %vm783, %v5456, 0.0
      %5463 = vadd.xlane.f32.xlu0 %v5462
      %v5464 = vpop.xlane.xlu0 %5463
      %v5465 = vmul.f32 %v5461, %v4835
      %v5466 = vmul.f32 %v5464, %v4835
      %v5470 = vunpack.c.l.s4 269488144
      %v5471 = vunpack.c.0.s8 %v5470
      %v5472 = vlaneseq
      %v5473 = vshrl.u32 %v5472, 7
      %v5474 = vsub.s32 %v5471, %v5473
      %v5475 = vrot.slane %v5465, %v5474
      %v5477 = vunpack.c.l.s4 842150450
      %v5478 = vunpack.c.0.s8 %v5477
      %v5479 = vlaneseq
      %v5480 = vshrl.u32 %v5479, 7
      %v5481 = vsub.s32 %v5478, %v5480
      %v5482 = vrot.slane %v5465, %v5481
      %v5484 = vunpack.c.l.s4 1414812756
      %v5485 = vunpack.c.0.s8 %v5484
      %v5486 = vlaneseq
      %v5487 = vshrl.u32 %v5486, 7
      %v5488 = vsub.s32 %v5485, %v5487
      %v5489 = vrot.slane %v5465, %v5488
      %v5491 = vunpack.c.l.s4 1987475062
      %v5492 = vunpack.c.0.s8 %v5491
      %v5493 = vlaneseq
      %v5494 = vshrl.u32 %v5493, 7
      %v5495 = vsub.s32 %v5492, %v5494
      %v5496 = vrot.slane %v5465, %v5495
      %v5498 = vunpack.c.l.s4 269488144
      %v5499 = vunpack.c.0.s8 %v5498
      %v5500 = vlaneseq
      %v5501 = vshrl.u32 %v5500, 7
      %v5502 = vsub.s32 %v5499, %v5501
      %v5503 = vrot.slane %v5466, %v5502
      %v5505 = vunpack.c.l.s4 842150450
      %v5506 = vunpack.c.0.s8 %v5505
      %v5507 = vlaneseq
      %v5508 = vshrl.u32 %v5507, 7
      %v5509 = vsub.s32 %v5506, %v5508
      %v5510 = vrot.slane %v5466, %v5509
      %v5512 = vunpack.c.l.s4 1414812756
      %v5513 = vunpack.c.0.s8 %v5512
      %v5514 = vlaneseq
      %v5515 = vshrl.u32 %v5514, 7
      %v5516 = vsub.s32 %v5513, %v5515
      %v5517 = vrot.slane %v5466, %v5516
      %v5519 = vunpack.c.l.s4 1987475062
      %v5520 = vunpack.c.0.s8 %v5519
      %v5521 = vlaneseq
      %v5522 = vshrl.u32 %v5521, 7
      %v5523 = vsub.s32 %v5520, %v5522
      %v5524 = vrot.slane %v5466, %v5523
      %v5533 = vsub.f32 %v5405, %v5475
      %v5534 = vsub.f32 %v5406, %v5482
      %v5535 = vsub.f32 %v5407, %v5489
      %v5536 = vsub.f32 %v5408, %v5496
      %v5537 = vsub.f32 %v5409, %v5503
      %v5538 = vsub.f32 %v5410, %v5510
      %v5539 = vsub.f32 %v5411, %v5517
      %v5540 = vsub.f32 %v5412, %v5524
      %v5541 = vmul.f32 %v5533, %v5533
      %v5542 = vmul.f32 %v5534, %v5534
      %v5543 = vmul.f32 %v5535, %v5535
      %v5544 = vmul.f32 %v5536, %v5536
      %v5545 = vmul.f32 %v5537, %v5537
      %v5546 = vmul.f32 %v5538, %v5538
      %v5547 = vmul.f32 %v5539, %v5539
      %v5548 = vmul.f32 %v5540, %v5540
      %v5557 = vcombine.low %v5541, %v5542
      %v5558 = vcombine.low %v5543, %v5544
      %v5560 = vunpack.c.l.s4 1983009808
      %v5561 = vunpack.c.0.s8 %v5560
      %v5562 = vlaneseq
      %v5563 = vshrl.u32 %v5562, 7
      %v5564 = vsub.s32 %v5561, %v5563
      %v5565 = vrot.slane %v5557, %v5564
      %v5567 = vunpack.c.l.s4 1983009808
      %v5568 = vunpack.c.0.s8 %v5567
      %v5569 = vlaneseq
      %v5570 = vshrl.u32 %v5569, 7
      %v5571 = vsub.s32 %v5568, %v5570
      %v5572 = vrot.slane %v5558, %v5571
      %v5573 = vcombine.low %v5565, %v5572
      %v5574 = vcombine.low %v5545, %v5546
      %v5575 = vcombine.low %v5547, %v5548
      %v5577 = vunpack.c.l.s4 1983009808
      %v5578 = vunpack.c.0.s8 %v5577
      %v5579 = vlaneseq
      %v5580 = vshrl.u32 %v5579, 7
      %v5581 = vsub.s32 %v5578, %v5580
      %v5582 = vrot.slane %v5574, %v5581
      %v5584 = vunpack.c.l.s4 1983009808
      %v5585 = vunpack.c.0.s8 %v5584
      %v5586 = vlaneseq
      %v5587 = vshrl.u32 %v5586, 7
      %v5588 = vsub.s32 %v5585, %v5587
      %v5589 = vrot.slane %v5575, %v5588
      %v5590 = vcombine.low %v5582, %v5589
      %v5593 = vsel %vm783, %v5573, 0.0
      %5594 = vadd.xlane.f32.xlu0 %v5593
      %v5595 = vpop.xlane.xlu0 %5594
      %v5596 = vsel %vm783, %v5590, 0.0
      %5597 = vadd.xlane.f32.xlu0 %v5596
      %v5598 = vpop.xlane.xlu0 %5597
      %v5599 = vmul.f32 %v5595, %v4835
      %v5600 = vmul.f32 %v5598, %v4835
      %v5601 = vadd.f32 %v5599, 1e-05
      %v5602 = vadd.f32 %v5600, 1e-05
      %v5603 = vrsqrt.pop %v5601
      %v5604 = vrsqrt.pop %v5602
      %v5608 = vunpack.c.l.s4 269488144
      %v5609 = vunpack.c.0.s8 %v5608
      %v5610 = vlaneseq
      %v5611 = vshrl.u32 %v5610, 7
      %v5612 = vsub.s32 %v5609, %v5611
      %v5613 = vrot.slane %v5603, %v5612
      %v5615 = vunpack.c.l.s4 842150450
      %v5616 = vunpack.c.0.s8 %v5615
      %v5617 = vlaneseq
      %v5618 = vshrl.u32 %v5617, 7
      %v5619 = vsub.s32 %v5616, %v5618
      %v5620 = vrot.slane %v5603, %v5619
      %v5622 = vunpack.c.l.s4 1414812756
      %v5623 = vunpack.c.0.s8 %v5622
      %v5624 = vlaneseq
      %v5625 = vshrl.u32 %v5624, 7
      %v5626 = vsub.s32 %v5623, %v5625
      %v5627 = vrot.slane %v5603, %v5626
      %v5629 = vunpack.c.l.s4 1987475062
      %v5630 = vunpack.c.0.s8 %v5629
      %v5631 = vlaneseq
      %v5632 = vshrl.u32 %v5631, 7
      %v5633 = vsub.s32 %v5630, %v5632
      %v5634 = vrot.slane %v5603, %v5633
      %v5636 = vunpack.c.l.s4 269488144
      %v5637 = vunpack.c.0.s8 %v5636
      %v5638 = vlaneseq
      %v5639 = vshrl.u32 %v5638, 7
      %v5640 = vsub.s32 %v5637, %v5639
      %v5641 = vrot.slane %v5604, %v5640
      %v5643 = vunpack.c.l.s4 842150450
      %v5644 = vunpack.c.0.s8 %v5643
      %v5645 = vlaneseq
      %v5646 = vshrl.u32 %v5645, 7
      %v5647 = vsub.s32 %v5644, %v5646
      %v5648 = vrot.slane %v5604, %v5647
      %v5650 = vunpack.c.l.s4 1414812756
      %v5651 = vunpack.c.0.s8 %v5650
      %v5652 = vlaneseq
      %v5653 = vshrl.u32 %v5652, 7
      %v5654 = vsub.s32 %v5651, %v5653
      %v5655 = vrot.slane %v5604, %v5654
      %v5657 = vunpack.c.l.s4 1987475062
      %v5658 = vunpack.c.0.s8 %v5657
      %v5659 = vlaneseq
      %v5660 = vshrl.u32 %v5659, 7
      %v5661 = vsub.s32 %v5658, %v5660
      %v5662 = vrot.slane %v5604, %v5661
      %v5671 = vmul.f32 %v5533, %v5613
      %v5672 = vmul.f32 %v5534, %v5620
      %v5673 = vmul.f32 %v5535, %v5627
      %v5674 = vmul.f32 %v5536, %v5634
      %v5675 = vmul.f32 %v5537, %v5641
      %v5676 = vmul.f32 %v5538, %v5648
      %v5677 = vmul.f32 %v5539, %v5655
      %v5678 = vmul.f32 %v5540, %v5662
      %v5680 = vlaneseq
      %v5681 = vshrl.u32 %v5680, 7
      %v5682 = vsub.s32 0, %v5681
      %v5683 = vrot.slane %v5413, %v5682
      %v5684 = vcombine.high %v5683, %v5683
      %v5686 = vunpack.c.l.s4 1983009808
      %v5687 = vunpack.c.0.s8 %v5686
      %v5688 = vlaneseq
      %v5689 = vshrl.u32 %v5688, 7
      %v5690 = vsub.s32 %v5687, %v5689
      %v5691 = vrot.slane %v5683, %v5690
      %v5693 = vunpack.c.l.s4 1983009808
      %v5694 = vunpack.c.0.s8 %v5693
      %v5695 = vlaneseq
      %v5696 = vshrl.u32 %v5695, 7
      %v5697 = vsub.s32 %v5694, %v5696
      %v5698 = vrot.slane %v5684, %v5697
      %v5699 = vcombine.high %v5691, %v5691
      %v5700 = vcombine.high %v5698, %v5698
      %v5705 = vmul.f32 %v5671, %v5691
      %v5706 = vmul.f32 %v5672, %v5699
      %v5707 = vmul.f32 %v5673, %v5698
      %v5708 = vmul.f32 %v5674, %v5700
      %v5709 = vmul.f32 %v5675, %v5691
      %v5710 = vmul.f32 %v5676, %v5699
      %v5711 = vmul.f32 %v5677, %v5698
      %v5712 = vmul.f32 %v5678, %v5700
      %v5714 = vlaneseq
      %v5715 = vshrl.u32 %v5714, 7
      %v5716 = vsub.s32 0, %v5715
      %v5717 = vrot.slane %v5414, %v5716
      %v5718 = vcombine.high %v5717, %v5717
      %v5720 = vunpack.c.l.s4 1983009808
      %v5721 = vunpack.c.0.s8 %v5720
      %v5722 = vlaneseq
      %v5723 = vshrl.u32 %v5722, 7
      %v5724 = vsub.s32 %v5721, %v5723
      %v5725 = vrot.slane %v5717, %v5724
      %v5727 = vunpack.c.l.s4 1983009808
      %v5728 = vunpack.c.0.s8 %v5727
      %v5729 = vlaneseq
      %v5730 = vshrl.u32 %v5729, 7
      %v5731 = vsub.s32 %v5728, %v5730
      %v5732 = vrot.slane %v5718, %v5731
      %v5733 = vcombine.high %v5725, %v5725
      %v5734 = vcombine.high %v5732, %v5732
      %v5739 = vadd.f32 %v5705, %v5725
      %v5740 = vadd.f32 %v5706, %v5733
      %v5741 = vadd.f32 %v5707, %v5732
      %v5742 = vadd.f32 %v5708, %v5734
      %v5743 = vadd.f32 %v5709, %v5725
      %v5744 = vadd.f32 %v5710, %v5733
      %v5745 = vadd.f32 %v5711, %v5732
      %v5746 = vadd.f32 %v5712, %v5734
      %v5747 = vpack.c.bf16 %v5739, %v5739
      %v5748 = vpack.c.bf16 %v5740, %v5740
      %v5749 = vpack.c.bf16 %v5741, %v5741
      %v5750 = vpack.c.bf16 %v5742, %v5742
      %v5751 = vpack.c.bf16 %v5743, %v5743
      %v5752 = vpack.c.bf16 %v5744, %v5744
      %v5753 = vpack.c.bf16 %v5745, %v5745
      %v5754 = vpack.c.bf16 %v5746, %v5746
      %v5763 = vunpack.c.l.b16 %v5747
      %v5764 = vunpack.c.l.b16 %v5748
      %v5765 = vunpack.c.l.b16 %v5749
      %v5766 = vunpack.c.l.b16 %v5750
      %v5767 = vunpack.c.l.b16 %v5751
      %v5768 = vunpack.c.l.b16 %v5752
      %v5769 = vunpack.c.l.b16 %v5753
      %v5770 = vunpack.c.l.b16 %v5754
      %v5771 = vpack.c.b16 %v5763, %v5763
      %v5772 = vpack.c.b16 %v5764, %v5764
      %v5773 = vpack.c.b16 %v5765, %v5765
      %v5774 = vpack.c.b16 %v5766, %v5766
      %v5775 = vpack.c.b16 %v5767, %v5767
      %v5776 = vpack.c.b16 %v5768, %v5768
      %v5777 = vpack.c.b16 %v5769, %v5769
      %v5778 = vpack.c.b16 %v5770, %v5770
      %v5779 = vunpack.c.l.b16 %v5771
      %v5780 = vunpack.c.l.b16 %v5772
      %v5781 = vunpack.c.l.b16 %v5773
      %v5782 = vunpack.c.l.b16 %v5774
      %v5783 = vunpack.c.l.b16 %v5775
      %v5784 = vunpack.c.l.b16 %v5776
      %v5785 = vunpack.c.l.b16 %v5777
      %v5786 = vunpack.c.l.b16 %v5778
      %v5787 = vrot.slane %v5780, 7
      %vm5788 = vcmask 1041409
      %v5789 = vsel %vm5788, %v5787, %v5779
      %v5790 = vrot.slane %v5781, 6
      %vm5791 = vcmask 1042434
      %v5792 = vsel %vm5791, %v5790, %v5789
      %v5793 = vrot.slane %v5782, 5
      %vm5794 = vcmask 1043459
      %v5795 = vsel %vm5794, %v5793, %v5792
      %v5796 = vrot.slane %v5783, 4
      %vm5797 = vcmask 1044484
      %v5798 = vsel %vm5797, %v5796, %v5795
      %v5799 = vrot.slane %v5784, 3
      %vm5800 = vcmask 1045509
      %v5801 = vsel %vm5800, %v5799, %v5798
      %v5802 = vrot.slane %v5785, 2
      %vm5803 = vcmask 1046534
      %v5804 = vsel %vm5803, %v5802, %v5801
      %v5805 = vrot.slane %v5786, 1
      %vm5806 = vcmask 1047559
      %v5807 = vsel %vm5806, %v5805, %v5804
      %v5808 = vpack.c.b16 %v5807, %v5807
      %vm5810 = vcmask 257024
      %5811 = vst.msk [vmem:[#allocation2] sm:$0xf] %vm5810, %v5808
      %v5812 = vrot.slane %v5779, 1
      %v5813 = vsel %vm5788, %v5780, %v5812
      %v5814 = vrot.slane %v5781, 7
      %v5815 = vsel %vm5791, %v5814, %v5813
      %v5816 = vrot.slane %v5782, 6
      %v5817 = vsel %vm5794, %v5816, %v5815
      %v5818 = vrot.slane %v5783, 5
      %v5819 = vsel %vm5797, %v5818, %v5817
      %v5820 = vrot.slane %v5784, 4
      %v5821 = vsel %vm5800, %v5820, %v5819
      %v5822 = vrot.slane %v5785, 3
      %v5823 = vsel %vm5803, %v5822, %v5821
      %v5824 = vrot.slane %v5786, 2
      %v5825 = vsel %vm5806, %v5824, %v5823
      %v5826 = vpack.c.b16 %v5825, %v5825
      %5827 = vrot.lane.b32.xlu0 %v5826, 32
      %v5828 = vpop.permute.xlu0 %5827
      %vm5830 = vcmask 519424
      %5831 = vst.msk [vmem:[#allocation2] sm:$0xf] %vm5830, %v5828
      %v5832 = vld [vmem:[#allocation2] sm:$0xf]
      %v5833 = vld [vmem:[%s15] sm:$0xf]
      %v5834 = vld [vmem:[%s15 + $0x4] sm:$0xf]
      %v5835 = vld [vmem:[%s15 + $0x8] sm:$0xf]
      %v5836 = vld [vmem:[%s15 + $0xc] sm:$0xf]
      %v5837 = vld [vmem:[%s15 + $0x10] sm:$0xf]
      %v5838 = vld [vmem:[%s15 + $0x14] sm:$0xf]
      %v5839 = vld [vmem:[%s15 + $0x18] sm:$0xf]
      %v5840 = vld [vmem:[%s15 + $0x1c] sm:$0xf]
      %v5841 = vld [vmem:[%s16] sm:$0x1]
      %v5843 = vlaneseq
      %v5844 = vshrl.u32 %v5843, 7
      %v5845 = vsub.s32 0, %v5844
      %v5846 = vrot.slane %v5841, %v5845
      %v5856 = vunpack.c.l.b16 %v5833
      %v5857 = vunpack.c.l.b16 %v5834
      %v5858 = vunpack.c.l.b16 %v5835
      %v5859 = vunpack.c.l.b16 %v5836
      %v5860 = vunpack.c.l.b16 %v5837
      %v5861 = vunpack.c.l.b16 %v5838
      %v5862 = vunpack.c.l.b16 %v5839
      %v5863 = vunpack.c.l.b16 %v5840
      %v5864 = vpack.c.b16 %v5857, %v5856
      %v5865 = vpack.c.b16 %v5859, %v5858
      %v5866 = vpack.c.b16 %v5861, %v5860
      %v5867 = vpack.c.b16 %v5863, %v5862
      %vm5872 = vcmask 523264
      %v5874 = vsel %vm5872, %v5832, 0
      %5876 = vmatprep.subr.bf16.mxu0 0
      %5877 = vmatpush1.bf16.msra.mxu0 %v5864
      %5878 = vmatprep.subr.bf16.mxu0 0
      %5879 = vmatpush1.bf16.msra.mxu0 %v5865
      %5880 = vmatprep.subr.bf16.mxu0 0
      %5881 = vmatpush1.bf16.msra.mxu0 %v5866
      %5882 = vmatprep.subr.bf16.mxu0 0
      %5883 = vmatpush1.bf16.msra.mxu0 %v5867
      %5884 = vmatprep.subr.bf16.mxu0 0
      %5885 = vmatpush1.bf16.msra.mxu0 0
      %5886 = vmatprep.subr.bf16.mxu0 0
      %5887 = vmatpush1.bf16.msra.mxu0 0
      %5888 = vmatprep.subr.bf16.mxu0 0
      %5889 = vmatpush1.bf16.msra.mxu0 0
      %5890 = vmatprep.subr.bf16.mxu0 0
      %5891 = vmatpush1.bf16.msra.mxu0 0
      %5892 = vmatprep.subr.bf16.mxu0 0
      %5893 = vmatpush1.bf16.msra.mxu0 0
      %5894 = vmatprep.subr.bf16.mxu0 0
      %5895 = vmatpush1.bf16.msra.mxu0 0
      %5896 = vmatprep.subr.bf16.mxu0 0
      %5897 = vmatpush1.bf16.msra.mxu0 0
      %5898 = vmatprep.subr.bf16.mxu0 0
      %5899 = vmatpush1.bf16.msra.mxu0 0
      %5900 = vmatprep.subr.bf16.mxu0 0
      %5901 = vmatpush1.bf16.msra.mxu0 0
      %5902 = vmatprep.subr.bf16.mxu0 0
      %5903 = vmatpush1.bf16.msra.mxu0 0
      %5904 = vmatprep.subr.bf16.mxu0 0
      %5905 = vmatpush1.bf16.msra.mxu0 0
      %5906 = vmatprep.subr.bf16.mxu0 0
      %5907 = vmatpush1.bf16.msra.mxu0 0
      %5908 = vmatprep.mubr.bf16.mxu0 0
      %5909 = vmatmul.mubr.bf16.gmra.mrb[0].mxu0 %v5874
      %v5910 = vpop.f32.mrb[0].mxu0
      %v5911 = vadd.f32 %v5846, %v5910
      %v5912 = vpop.f32.mrb[0].mxu0
      %v5913 = vpop.f32.mrb[0].mxu0
      %v5914 = vpop.f32.mrb[0].mxu0
      %5915 = vdwg.mxu0
      %5916 = vst [vmem:[%s545] sm:$0xff] %v5911
      %p5917 = scmp.lt.s32.totalorder %s28, 1
      %s5918 = scalar_select %p5917, %s28, 1
      %s5919 = smul.addr %s5918, 8
      %s5920 = scalar_lea.vmem %s17, %s5919
      // Predicated region
      $region89: #{patchtstc_forward.1} parent=87 // pred_check
        %p5921 = pneg %p408
      $region90: #{patchtstc_forward.1} parent=87 // pred_check_branch
        %5923 = sbr.rel (%p5921) target = $region92
      $region91: #{patchtstc_forward.1} parent=87 // pred_region
        _
      $region92: #{patchtstc_forward.1} parent=87 // pred_fallthru
        _
    $region88: #{patchtstc_forward.1} parent=5 // pred_fallthru
      _
    %p5924 = scmp.le.s32.totalorder 2, %s23
    // Predicated region
    $region93: #{patchtstc_forward.1} parent=5 // pred_check
      %p5925 = pneg %p5924
    $region94: #{patchtstc_forward.1} parent=5 // pred_check_branch
      %5927 = sbr.rel (%p5925) target = $region96
    $region95: #{patchtstc_forward.1} parent=5 // pred_region
      %s5928 = ssub.s32 %s23, 2
      // Predicated region
      $region97: #{patchtstc_forward.1} parent=95 // pred_check
        %p5929 = pneg %p414
      $region98: #{patchtstc_forward.1} parent=95 // pred_check_branch
        %5931 = sbr.rel (%p5929) target = $region100
      $region99: #{patchtstc_forward.1} parent=95 // pred_region
        %p5932 = scmp.lt.s32.totalorder %s29, 1
        %s5933 = scalar_select %p5932, %s29, 1
        %s5934 = smul.addr %s5933, 8
        %s5935 = scalar_lea.vmem %s17, %s5934
      $region100: #{patchtstc_forward.1} parent=95 // pred_fallthru
        _
    $region96: #{patchtstc_forward.1} parent=5 // pred_fallthru
      _
  $region6: #{patchtstc_forward.1} parent=0 // loop_footer
    %s27 = sadd.s32 1, %s23
  $region7: #{patchtstc_forward.1} parent=0 // loop_footer_branch
    %22 = sbr.rel target = $region3
  $region8: #{patchtstc_forward.1} parent=0 // loop_exit
    _

</llo_original>
